<compile_context>
chip_gen: v6e
topology: v6e:2x2x1
jax: 0.10.0
libtpu: 0.0.40
codegen_flags: <defaults>
</compile_context>

<pallas_src>
import functools
import math

import jax
import jax.numpy as jnp
import numpy as np
from jax import lax
from jax.experimental import pallas as pl
from jax.experimental.pallas import tpu as pltpu


# ----------------------------------------------------------------------------
# Bilinear interpolation (align_corners=False) as constant matrices
# ----------------------------------------------------------------------------

def _interp_matrix_1d(in_size, out_size):
    """1D bilinear weights matching F.upsample(mode='bilinear', align_corners=False)."""
    if in_size == out_size:
        return np.eye(out_size, dtype=np.float64)
    scale = in_size / out_size
    s = (np.arange(out_size, dtype=np.float64) + 0.5) * scale - 0.5
    s = np.maximum(s, 0.0)
    i0 = np.clip(np.floor(s).astype(np.int64), 0, in_size - 1)
    i1 = np.minimum(i0 + 1, in_size - 1)
    w1 = s - i0
    m = np.zeros((out_size, in_size), dtype=np.float64)
    m[np.arange(out_size), i0] += 1.0 - w1
    m[np.arange(out_size), i1] += w1
    return m


def _interp_matrix_2d(in_hw, out_hw):
    """(in_h*in_w, out_h*out_w) matrix U with flat_out = flat_in @ U (row-major)."""
    mh = _interp_matrix_1d(in_hw[0], out_hw[0])       # (out_h, in_h)
    mw = _interp_matrix_1d(in_hw[1], out_hw[1])       # (out_w, in_w)
    u = np.einsum("oi,pj->ijop", mh, mw).reshape(in_hw[0] * in_hw[1],
                                                 out_hw[0] * out_hw[1])
    return jnp.asarray(u, dtype=jnp.float32)


# ----------------------------------------------------------------------------
# Fused Pallas kernel
# ----------------------------------------------------------------------------

def _split_dot_f32(a, b):
    """a @ b with f32-accurate results regardless of the MXU's default f32 pass
    count: `a` is split into bf16 high/low halves (the interpolation-matrix
    operand `b` is exactly bf16-representable); accumulation is f32."""
    hi = a.astype(jnp.bfloat16).astype(jnp.float32)
    lo = a - hi
    return (jnp.dot(hi, b, preferred_element_type=jnp.float32)
            + jnp.dot(lo, b, preferred_element_type=jnp.float32))


def _grid_attention_kernel(xp_ref, gp_ref, x_ref, uphi_ref, uatt_ref,   # VMEM
                           wth_ref, wph_ref, wpsi_ref, bpsi_ref,        # SMEM
                           wWf_ref, bWf_ref,                            # SMEM
                           wy_ref, att_ref):                            # outputs
    B, Kt, _ = xp_ref.shape            # Kt = Cin*kh*kw
    Kp = gp_ref.shape[1]               # Kp = Cg*kh*kw
    Cin = x_ref.shape[1]
    Ci = wth_ref.shape[0]

    uphi = uphi_ref[...]               # (Rg, Rt): coarse-g grid -> theta grid
    uatt = uatt_ref[...]               # (Rt, R) : theta grid    -> full grid

    for b in range(B):                 # B is tiny & static -> unrolled
        xp_b = xp_ref[b]               # (Kt, Rt)  theta-conv patches, spatial on lanes
        gp_b = gp_ref[b]               # (Kp, Rg)  phi-conv patches

        # phi: strided conv on g (VPU scalar-FMAs, exact f32), then bilinear
        # upsample to the theta grid via the constant interpolation matrix.
        ph_rows = []
        for c in range(Ci):
            ph = wph_ref[c, 0] * gp_b[0:1, :]
            for k in range(1, Kp):
                ph = ph + wph_ref[c, k] * gp_b[k:k + 1, :]
            ph_rows.append(ph)                                        # (1, Rg)
        phi_up = _split_dot_f32(jnp.concatenate(ph_rows, axis=0), uphi)  # (Ci, Rt)

        # theta conv + relu + psi 1x1 conv, accumulated per inter-channel (VPU).
        s = None
        for c in range(Ci):
            th = wth_ref[c, 0] * xp_b[0:1, :]
            for k in range(1, Kt):
                th = th + wth_ref[c, k] * xp_b[k:k + 1, :]
            f_c = jnp.maximum(th + phi_up[c:c + 1, :], 0.0)           # (1, Rt)
            contrib = wpsi_ref[c] * f_c
            s = contrib if s is None else s + contrib
        att_t = jax.nn.sigmoid(s + bpsi_ref[0])                       # (1, Rt)

        # bilinear upsample of the attention map to full resolution (lane-dense).
        att_b = _split_dot_f32(att_t, uatt)                           # (1, R)
        att_ref[b] = att_b

        # y = att * x ; W 1x1 conv + folded eval-mode BatchNorm (VPU scalar-FMAs).
        y = att_b * x_ref[b]                                          # (Cin, R)
        rows = []
        for co in range(Cin):
            z = wWf_ref[co, 0] * y[0:1, :]
            for ci in range(1, Cin):
                z = z + wWf_ref[co, ci] * y[ci:ci + 1, :]
            rows.append(z + bWf_ref[co])                              # (1, R)
        wy_ref[b] = jnp.concatenate(rows, axis=0)                     # (Cin, R)


def _fused_grid_attention(xp, gp, x_flat, uphi, uatt,
                          w_theta2, w_phi2, w_psi1, b_psi1, w_Wf, b_Wf):
    B, Cin, R = x_flat.shape
    vmem = [pl.BlockSpec(memory_space=pltpu.MemorySpace.VMEM) for _ in range(5)]
    smem = [pl.BlockSpec(memory_space=pltpu.MemorySpace.SMEM) for _ in range(6)]
    return pl.pallas_call(
        _grid_attention_kernel,
        out_shape=(jax.ShapeDtypeStruct((B, Cin, R), jnp.float32),   # W_y (flattened)
                   jax.ShapeDtypeStruct((B, 1, R), jnp.float32)),    # attention map
        in_specs=vmem + smem,
        out_specs=(pl.BlockSpec(memory_space=pltpu.MemorySpace.VMEM),
                   pl.BlockSpec(memory_space=pltpu.MemorySpace.VMEM)),
    )(xp, gp, x_flat, uphi, uatt, w_theta2, w_phi2, w_psi1, b_psi1, w_Wf, b_Wf)


# ----------------------------------------------------------------------------
# Full forward pass (wrapper does only free reshapes + one tiny transpose each
# for the space-to-depth patches; everything else is inside the kernel)
# ----------------------------------------------------------------------------

@functools.partial(jax.jit, static_argnames=("sub_sample", "bn_eps"))
def grid_attention_forward(x, g, p, sub_sample=(2, 2), bn_eps=1e-5):
    B, Cin, H, W = x.shape
    _, Cg, Hg, Wg = g.shape
    sh, sw = sub_sample
    Ht, Wt = H // sh, W // sw            # theta output grid
    Hgs, Wgs = Hg // sh, Wg // sw        # phi output grid (strided VALID conv)
    Ci = p["w_theta"].shape[0]

    # space-to-depth patches for the strided convs (kernel == stride); spatial stays
    # last (lane) dim.  x needs NO transpose for the output stage (NCHW is already
    # channel-major / spatial-last).
    xp = (x.reshape(B, Cin, Ht, sh, Wt, sw)
           .transpose(0, 1, 3, 5, 2, 4)
           .reshape(B, Cin * sh * sw, Ht * Wt))
    gp = (g.reshape(B, Cg, Hgs, sh, Wgs, sw)
           .transpose(0, 1, 3, 5, 2, 4)
           .reshape(B, Cg * sh * sw, Hgs * Wgs))
    x_flat = x.reshape(B, Cin, H * W)

    # constant bilinear interpolation matrices (align_corners=False)
    uphi = _interp_matrix_2d((Hgs, Wgs), (Ht, Wt))     # (Rg, Rt)
    uatt = _interp_matrix_2d((Ht, Wt), (H, W))         # (Rt, R)

    # small weights go to SMEM; fold eval-mode BatchNorm into the 1x1 W conv.
    w_theta2 = p["w_theta"].reshape(Ci, Cin * sh * sw)
    w_phi2 = p["w_phi"].reshape(Ci, Cg * sh * sw)
    w_psi1 = p["w_psi"].reshape(Ci)
    b_psi1 = p["b_psi"].reshape(1)
    bn_scale = p["bn_gamma"] / jnp.sqrt(p["bn_var"] + bn_eps)
    bn_shift = p["bn_beta"] - p["bn_mean"] * bn_scale
    w_Wf = p["w_W"].reshape(Cin, Cin) * bn_scale[:, None]
    b_Wf = p["b_W"] * bn_scale + bn_shift

    wy, att = _fused_grid_attention(xp, gp, x_flat, uphi, uatt,
                                    w_theta2, w_phi2, w_psi1, b_psi1, w_Wf, b_Wf)
    return wy.reshape(B, Cin, H, W), att.reshape(B, 1, H, W)


# ----------------------------------------------------------------------------
# Pure-JAX reference (lax convs + gather-based bilinear) for correctness check
# ----------------------------------------------------------------------------

def _bilinear_upsample_nchw_ref(x, out_h, out_w):
    B, C, H, W = x.shape

    def src(out_size, in_size):
        scale = in_size / out_size
        s = (jnp.arange(out_size, dtype=jnp.float32) + 0.5) * scale - 0.5
        s = jnp.maximum(s, 0.0)
        i0 = jnp.clip(jnp.floor(s).astype(jnp.int32), 0, in_size - 1)
        i1 = jnp.clip(i0 + 1, 0, in_size - 1)
        return i0, i1, s - i0.astype(jnp.float32)

    y0, y1, wy = src(out_h, H)
    x0, x1, wx = src(out_w, W)
    rows0 = x[:, :, y0, :]
    rows1 = x[:, :, y1, :]
    top = rows0 * (1.0 - wy)[None, None, :, None] + rows1 * wy[None, None, :, None]
    c0 = top[:, :, :, x0]
    c1 = top[:, :, :, x1]
    return c0 * (1.0 - wx) + c1 * wx


def reference_forward(x, g, p, sub_sample=(2, 2), bn_eps=1e-5):
    dn = ("NCHW", "OIHW", "NCHW")
    hp = lax.Precision.HIGHEST
    theta_x = lax.conv_general_dilated(x, p["w_theta"], sub_sample, "VALID",
                                       dimension_numbers=dn, precision=hp)
    phi_g = lax.conv_general_dilated(g, p["w_phi"], sub_sample, "VALID",
                                     dimension_numbers=dn, precision=hp)
    Ht, Wt = theta_x.shape[2], theta_x.shape[3]
    phi_up = _bilinear_upsample_nchw_ref(phi_g, Ht, Wt)
    f = jnp.maximum(theta_x + phi_up, 0.0)
    psi_f = lax.conv_general_dilated(f, p["w_psi"], (1, 1), "VALID",
                                     dimension_numbers=dn, precision=hp)
    psi_f = psi_f + p["b_psi"][None, :, None, None]
    sigm = jax.nn.sigmoid(psi_f)
    H, W = x.shape[2], x.shape[3]
    sigm_up = _bilinear_upsample_nchw_ref(sigm, H, W)
    y = sigm_up * x
    z = lax.conv_general_dilated(y, p["w_W"], (1, 1), "VALID",
                                 dimension_numbers=dn, precision=hp)
    z = z + p["b_W"][None, :, None, None]
    scale = p["bn_gamma"] / jnp.sqrt(p["bn_var"] + bn_eps)
    shift = p["bn_beta"] - p["bn_mean"] * scale
    W_y = z * scale[None, :, None, None] + shift[None, :, None, None]
    return W_y, sigm_up


# ----------------------------------------------------------------------------

if __name__ == "__main__":
    B, Cin, H, W = 2, 4, 16, 16          # x: (b, in_channels, h, w)
    Cg, Hg, Wg = 6, 4, 4                 # gating signal (coarser spatial grid)
    Ci = max(Cin // 2, 1)                # inter_channels = in_channels // 2

    key = jax.random.PRNGKey(0)
    k = jax.random.split(key, 8)

    def kaiming(kk, shape):              # kaiming_normal, a=0, mode='fan_in'
        fan_in = math.prod(shape[1:])
        return ((2.0 / fan_in) ** 0.5) * jax.random.normal(kk, shape, jnp.float32)

    params = dict(
        w_theta=kaiming(k[0], (Ci, Cin, 2, 2)),          # theta: bias=False
        w_phi=kaiming(k[1], (Ci, Cg, 2, 2)),             # phi (TORR): strided, bias=False
        w_psi=kaiming(k[2], (1, Ci, 1, 1)),
        b_psi=jnp.full((1,), 3.0, jnp.float32),          # concatenation_sigmoid init
        w_W=kaiming(k[3], (Cin, Cin, 1, 1)),
        b_W=0.1 * jax.random.normal(k[4], (Cin,), jnp.float32),
        bn_gamma=1.0 + 0.02 * jax.random.normal(k[5], (Cin,), jnp.float32),
        bn_beta=jnp.zeros((Cin,), jnp.float32),
        bn_mean=jnp.zeros((Cin,), jnp.float32),
        bn_var=jnp.ones((Cin,), jnp.float32),
    )

    x = jax.random.normal(k[6], (B, Cin, H, W), jnp.float32)
    g = jax.random.normal(k[7], (B, Cg, Hg, Wg), jnp.float32)

    W_y, sigm = grid_attention_forward(x, g, params)
    jax.block_until_ready((W_y, sigm))

    W_y_ref, sigm_ref = reference_forward(x, g, params)
    assert W_y.shape == (B, Cin, H, W) and sigm.shape == (B, 1, H, W)
    # Tolerance tightened ~40x vs the previous version (catches any layout /
    # indexing bug); the remaining slack only covers MXU f32-pass rounding in the
    # two small resampling contractions (all channel math is exact f32 on the VPU).
    assert jnp.allclose(W_y, W_y_ref, atol=5e-4, rtol=5e-4), \
        float(jnp.max(jnp.abs(W_y - W_y_ref)))
    assert jnp.allclose(sigm, sigm_ref, atol=5e-4, rtol=5e-4), \
        float(jnp.max(jnp.abs(sigm - sigm_ref)))

    print("KERNEL_OK")
</pallas_src>

<mosaic_0001>
module attributes {stable_mosaic.version = 11 : i64} {
  func.func @_grid_attention_kernel(%arg0: memref<2x16x64xf32, #tpu.memory_space<vmem>>, %arg1: memref<2x24x4xf32, #tpu.memory_space<vmem>>, %arg2: memref<2x4x256xf32, #tpu.memory_space<vmem>>, %arg3: memref<4x64xf32, #tpu.memory_space<vmem>>, %arg4: memref<64x256xf32, #tpu.memory_space<vmem>>, %arg5: memref<2x16xf32, #tpu.memory_space<smem>>, %arg6: memref<2x24xf32, #tpu.memory_space<smem>>, %arg7: memref<2xf32, #tpu.memory_space<smem>>, %arg8: memref<1xf32, #tpu.memory_space<smem>>, %arg9: memref<4x4xf32, #tpu.memory_space<smem>>, %arg10: memref<4xf32, #tpu.memory_space<smem>>, %arg11: memref<2x4x256xf32, #tpu.memory_space<vmem>>, %arg12: memref<2x1x256xf32, #tpu.memory_space<vmem>>) attributes {dimension_semantics = [], scalar_prefetch = 0 : i64, scratch_operands = 0 : i64, tpu.core_type = #tpu.core_type<tc>} {
    %c0 = arith.constant 0 : index
    %c0_0 = arith.constant 0 : index
    %0 = vector.load %arg3[%c0, %c0_0] : memref<4x64xf32, #tpu.memory_space<vmem>>, vector<4x64xf32>
    %c0_1 = arith.constant 0 : index
    %c0_2 = arith.constant 0 : index
    %1 = vector.load %arg4[%c0_1, %c0_2] : memref<64x256xf32, #tpu.memory_space<vmem>>, vector<64x256xf32>
    %c0_3 = arith.constant 0 : index
    %c0_4 = arith.constant 0 : index
    %c0_5 = arith.constant 0 : index
    %2 = vector.load %arg0[%c0_3, %c0_4, %c0_5] : memref<2x16x64xf32, #tpu.memory_space<vmem>>, vector<1x16x64xf32>
    %3 = vector.shape_cast %2 : vector<1x16x64xf32> to vector<16x64xf32>
    %c0_6 = arith.constant 0 : index
    %c0_7 = arith.constant 0 : index
    %c0_8 = arith.constant 0 : index
    %4 = vector.load %arg1[%c0_6, %c0_7, %c0_8] : memref<2x24x4xf32, #tpu.memory_space<vmem>>, vector<1x24x4xf32>
    %5 = vector.shape_cast %4 : vector<1x24x4xf32> to vector<24x4xf32>
    %c0_9 = arith.constant 0 : index
    %c0_10 = arith.constant 0 : index
    %6 = memref.load %arg6[%c0_9, %c0_10] : memref<2x24xf32, #tpu.memory_space<smem>>
    %7 = vector.extract_strided_slice %5 {offsets = [0, 0], sizes = [1, 4], strides = [1, 1]} : vector<24x4xf32> to vector<1x4xf32>
    %8 = vector.broadcast %6 : f32 to vector<1x4xf32>
    %9 = arith.mulf %8, %7 : vector<1x4xf32>
    %c0_11 = arith.constant 0 : index
    %c1 = arith.constant 1 : index
    %10 = memref.load %arg6[%c0_11, %c1] : memref<2x24xf32, #tpu.memory_space<smem>>
    %11 = vector.extract_strided_slice %5 {offsets = [1, 0], sizes = [1, 4], strides = [1, 1]} : vector<24x4xf32> to vector<1x4xf32>
    %12 = vector.broadcast %10 : f32 to vector<1x4xf32>
    %13 = arith.mulf %12, %11 : vector<1x4xf32>
    %14 = arith.addf %9, %13 : vector<1x4xf32>
    %c0_12 = arith.constant 0 : index
    %c2 = arith.constant 2 : index
    %15 = memref.load %arg6[%c0_12, %c2] : memref<2x24xf32, #tpu.memory_space<smem>>
    %16 = vector.extract_strided_slice %5 {offsets = [2, 0], sizes = [1, 4], strides = [1, 1]} : vector<24x4xf32> to vector<1x4xf32>
    %17 = vector.broadcast %15 : f32 to vector<1x4xf32>
    %18 = arith.mulf %17, %16 : vector<1x4xf32>
    %19 = arith.addf %14, %18 : vector<1x4xf32>
    %c0_13 = arith.constant 0 : index
    %c3 = arith.constant 3 : index
    %20 = memref.load %arg6[%c0_13, %c3] : memref<2x24xf32, #tpu.memory_space<smem>>
    %21 = vector.extract_strided_slice %5 {offsets = [3, 0], sizes = [1, 4], strides = [1, 1]} : vector<24x4xf32> to vector<1x4xf32>
    %22 = vector.broadcast %20 : f32 to vector<1x4xf32>
    %23 = arith.mulf %22, %21 : vector<1x4xf32>
    %24 = arith.addf %19, %23 : vector<1x4xf32>
    %c0_14 = arith.constant 0 : index
    %c4 = arith.constant 4 : index
    %25 = memref.load %arg6[%c0_14, %c4] : memref<2x24xf32, #tpu.memory_space<smem>>
    %26 = vector.extract_strided_slice %5 {offsets = [4, 0], sizes = [1, 4], strides = [1, 1]} : vector<24x4xf32> to vector<1x4xf32>
    %27 = vector.broadcast %25 : f32 to vector<1x4xf32>
    %28 = arith.mulf %27, %26 : vector<1x4xf32>
    %29 = arith.addf %24, %28 : vector<1x4xf32>
    %c0_15 = arith.constant 0 : index
    %c5 = arith.constant 5 : index
    %30 = memref.load %arg6[%c0_15, %c5] : memref<2x24xf32, #tpu.memory_space<smem>>
    %31 = vector.extract_strided_slice %5 {offsets = [5, 0], sizes = [1, 4], strides = [1, 1]} : vector<24x4xf32> to vector<1x4xf32>
    %32 = vector.broadcast %30 : f32 to vector<1x4xf32>
    %33 = arith.mulf %32, %31 : vector<1x4xf32>
    %34 = arith.addf %29, %33 : vector<1x4xf32>
    %c0_16 = arith.constant 0 : index
    %c6 = arith.constant 6 : index
    %35 = memref.load %arg6[%c0_16, %c6] : memref<2x24xf32, #tpu.memory_space<smem>>
    %36 = vector.extract_strided_slice %5 {offsets = [6, 0], sizes = [1, 4], strides = [1, 1]} : vector<24x4xf32> to vector<1x4xf32>
    %37 = vector.broadcast %35 : f32 to vector<1x4xf32>
    %38 = arith.mulf %37, %36 : vector<1x4xf32>
    %39 = arith.addf %34, %38 : vector<1x4xf32>
    %c0_17 = arith.constant 0 : index
    %c7 = arith.constant 7 : index
    %40 = memref.load %arg6[%c0_17, %c7] : memref<2x24xf32, #tpu.memory_space<smem>>
    %41 = vector.extract_strided_slice %5 {offsets = [7, 0], sizes = [1, 4], strides = [1, 1]} : vector<24x4xf32> to vector<1x4xf32>
    %42 = vector.broadcast %40 : f32 to vector<1x4xf32>
    %43 = arith.mulf %42, %41 : vector<1x4xf32>
    %44 = arith.addf %39, %43 : vector<1x4xf32>
    %c0_18 = arith.constant 0 : index
    %c8 = arith.constant 8 : index
    %45 = memref.load %arg6[%c0_18, %c8] : memref<2x24xf32, #tpu.memory_space<smem>>
    %46 = vector.extract_strided_slice %5 {offsets = [8, 0], sizes = [1, 4], strides = [1, 1]} : vector<24x4xf32> to vector<1x4xf32>
    %47 = vector.broadcast %45 : f32 to vector<1x4xf32>
    %48 = arith.mulf %47, %46 : vector<1x4xf32>
    %49 = arith.addf %44, %48 : vector<1x4xf32>
    %c0_19 = arith.constant 0 : index
    %c9 = arith.constant 9 : index
    %50 = memref.load %arg6[%c0_19, %c9] : memref<2x24xf32, #tpu.memory_space<smem>>
    %51 = vector.extract_strided_slice %5 {offsets = [9, 0], sizes = [1, 4], strides = [1, 1]} : vector<24x4xf32> to vector<1x4xf32>
    %52 = vector.broadcast %50 : f32 to vector<1x4xf32>
    %53 = arith.mulf %52, %51 : vector<1x4xf32>
    %54 = arith.addf %49, %53 : vector<1x4xf32>
    %c0_20 = arith.constant 0 : index
    %c10 = arith.constant 10 : index
    %55 = memref.load %arg6[%c0_20, %c10] : memref<2x24xf32, #tpu.memory_space<smem>>
    %56 = vector.extract_strided_slice %5 {offsets = [10, 0], sizes = [1, 4], strides = [1, 1]} : vector<24x4xf32> to vector<1x4xf32>
    %57 = vector.broadcast %55 : f32 to vector<1x4xf32>
    %58 = arith.mulf %57, %56 : vector<1x4xf32>
    %59 = arith.addf %54, %58 : vector<1x4xf32>
    %c0_21 = arith.constant 0 : index
    %c11 = arith.constant 11 : index
    %60 = memref.load %arg6[%c0_21, %c11] : memref<2x24xf32, #tpu.memory_space<smem>>
    %61 = vector.extract_strided_slice %5 {offsets = [11, 0], sizes = [1, 4], strides = [1, 1]} : vector<24x4xf32> to vector<1x4xf32>
    %62 = vector.broadcast %60 : f32 to vector<1x4xf32>
    %63 = arith.mulf %62, %61 : vector<1x4xf32>
    %64 = arith.addf %59, %63 : vector<1x4xf32>
    %c0_22 = arith.constant 0 : index
    %c12 = arith.constant 12 : index
    %65 = memref.load %arg6[%c0_22, %c12] : memref<2x24xf32, #tpu.memory_space<smem>>
    %66 = vector.extract_strided_slice %5 {offsets = [12, 0], sizes = [1, 4], strides = [1, 1]} : vector<24x4xf32> to vector<1x4xf32>
    %67 = vector.broadcast %65 : f32 to vector<1x4xf32>
    %68 = arith.mulf %67, %66 : vector<1x4xf32>
    %69 = arith.addf %64, %68 : vector<1x4xf32>
    %c0_23 = arith.constant 0 : index
    %c13 = arith.constant 13 : index
    %70 = memref.load %arg6[%c0_23, %c13] : memref<2x24xf32, #tpu.memory_space<smem>>
    %71 = vector.extract_strided_slice %5 {offsets = [13, 0], sizes = [1, 4], strides = [1, 1]} : vector<24x4xf32> to vector<1x4xf32>
    %72 = vector.broadcast %70 : f32 to vector<1x4xf32>
    %73 = arith.mulf %72, %71 : vector<1x4xf32>
    %74 = arith.addf %69, %73 : vector<1x4xf32>
    %c0_24 = arith.constant 0 : index
    %c14 = arith.constant 14 : index
    %75 = memref.load %arg6[%c0_24, %c14] : memref<2x24xf32, #tpu.memory_space<smem>>
    %76 = vector.extract_strided_slice %5 {offsets = [14, 0], sizes = [1, 4], strides = [1, 1]} : vector<24x4xf32> to vector<1x4xf32>
    %77 = vector.broadcast %75 : f32 to vector<1x4xf32>
    %78 = arith.mulf %77, %76 : vector<1x4xf32>
    %79 = arith.addf %74, %78 : vector<1x4xf32>
    %c0_25 = arith.constant 0 : index
    %c15 = arith.constant 15 : index
    %80 = memref.load %arg6[%c0_25, %c15] : memref<2x24xf32, #tpu.memory_space<smem>>
    %81 = vector.extract_strided_slice %5 {offsets = [15, 0], sizes = [1, 4], strides = [1, 1]} : vector<24x4xf32> to vector<1x4xf32>
    %82 = vector.broadcast %80 : f32 to vector<1x4xf32>
    %83 = arith.mulf %82, %81 : vector<1x4xf32>
    %84 = arith.addf %79, %83 : vector<1x4xf32>
    %c0_26 = arith.constant 0 : index
    %c16 = arith.constant 16 : index
    %85 = memref.load %arg6[%c0_26, %c16] : memref<2x24xf32, #tpu.memory_space<smem>>
    %86 = vector.extract_strided_slice %5 {offsets = [16, 0], sizes = [1, 4], strides = [1, 1]} : vector<24x4xf32> to vector<1x4xf32>
    %87 = vector.broadcast %85 : f32 to vector<1x4xf32>
    %88 = arith.mulf %87, %86 : vector<1x4xf32>
    %89 = arith.addf %84, %88 : vector<1x4xf32>
    %c0_27 = arith.constant 0 : index
    %c17 = arith.constant 17 : index
    %90 = memref.load %arg6[%c0_27, %c17] : memref<2x24xf32, #tpu.memory_space<smem>>
    %91 = vector.extract_strided_slice %5 {offsets = [17, 0], sizes = [1, 4], strides = [1, 1]} : vector<24x4xf32> to vector<1x4xf32>
    %92 = vector.broadcast %90 : f32 to vector<1x4xf32>
    %93 = arith.mulf %92, %91 : vector<1x4xf32>
    %94 = arith.addf %89, %93 : vector<1x4xf32>
    %c0_28 = arith.constant 0 : index
    %c18 = arith.constant 18 : index
    %95 = memref.load %arg6[%c0_28, %c18] : memref<2x24xf32, #tpu.memory_space<smem>>
    %96 = vector.extract_strided_slice %5 {offsets = [18, 0], sizes = [1, 4], strides = [1, 1]} : vector<24x4xf32> to vector<1x4xf32>
    %97 = vector.broadcast %95 : f32 to vector<1x4xf32>
    %98 = arith.mulf %97, %96 : vector<1x4xf32>
    %99 = arith.addf %94, %98 : vector<1x4xf32>
    %c0_29 = arith.constant 0 : index
    %c19 = arith.constant 19 : index
    %100 = memref.load %arg6[%c0_29, %c19] : memref<2x24xf32, #tpu.memory_space<smem>>
    %101 = vector.extract_strided_slice %5 {offsets = [19, 0], sizes = [1, 4], strides = [1, 1]} : vector<24x4xf32> to vector<1x4xf32>
    %102 = vector.broadcast %100 : f32 to vector<1x4xf32>
    %103 = arith.mulf %102, %101 : vector<1x4xf32>
    %104 = arith.addf %99, %103 : vector<1x4xf32>
    %c0_30 = arith.constant 0 : index
    %c20 = arith.constant 20 : index
    %105 = memref.load %arg6[%c0_30, %c20] : memref<2x24xf32, #tpu.memory_space<smem>>
    %106 = vector.extract_strided_slice %5 {offsets = [20, 0], sizes = [1, 4], strides = [1, 1]} : vector<24x4xf32> to vector<1x4xf32>
    %107 = vector.broadcast %105 : f32 to vector<1x4xf32>
    %108 = arith.mulf %107, %106 : vector<1x4xf32>
    %109 = arith.addf %104, %108 : vector<1x4xf32>
    %c0_31 = arith.constant 0 : index
    %c21 = arith.constant 21 : index
    %110 = memref.load %arg6[%c0_31, %c21] : memref<2x24xf32, #tpu.memory_space<smem>>
    %111 = vector.extract_strided_slice %5 {offsets = [21, 0], sizes = [1, 4], strides = [1, 1]} : vector<24x4xf32> to vector<1x4xf32>
    %112 = vector.broadcast %110 : f32 to vector<1x4xf32>
    %113 = arith.mulf %112, %111 : vector<1x4xf32>
    %114 = arith.addf %109, %113 : vector<1x4xf32>
    %c0_32 = arith.constant 0 : index
    %c22 = arith.constant 22 : index
    %115 = memref.load %arg6[%c0_32, %c22] : memref<2x24xf32, #tpu.memory_space<smem>>
    %116 = vector.extract_strided_slice %5 {offsets = [22, 0], sizes = [1, 4], strides = [1, 1]} : vector<24x4xf32> to vector<1x4xf32>
    %117 = vector.broadcast %115 : f32 to vector<1x4xf32>
    %118 = arith.mulf %117, %116 : vector<1x4xf32>
    %119 = arith.addf %114, %118 : vector<1x4xf32>
    %c0_33 = arith.constant 0 : index
    %c23 = arith.constant 23 : index
    %120 = memref.load %arg6[%c0_33, %c23] : memref<2x24xf32, #tpu.memory_space<smem>>
    %121 = vector.extract_strided_slice %5 {offsets = [23, 0], sizes = [1, 4], strides = [1, 1]} : vector<24x4xf32> to vector<1x4xf32>
    %122 = vector.broadcast %120 : f32 to vector<1x4xf32>
    %123 = arith.mulf %122, %121 : vector<1x4xf32>
    %124 = arith.addf %119, %123 : vector<1x4xf32>
    %c1_34 = arith.constant 1 : index
    %c0_35 = arith.constant 0 : index
    %125 = memref.load %arg6[%c1_34, %c0_35] : memref<2x24xf32, #tpu.memory_space<smem>>
    %126 = vector.extract_strided_slice %5 {offsets = [0, 0], sizes = [1, 4], strides = [1, 1]} : vector<24x4xf32> to vector<1x4xf32>
    %127 = vector.broadcast %125 : f32 to vector<1x4xf32>
    %128 = arith.mulf %127, %126 : vector<1x4xf32>
    %c1_36 = arith.constant 1 : index
    %c1_37 = arith.constant 1 : index
    %129 = memref.load %arg6[%c1_36, %c1_37] : memref<2x24xf32, #tpu.memory_space<smem>>
    %130 = vector.extract_strided_slice %5 {offsets = [1, 0], sizes = [1, 4], strides = [1, 1]} : vector<24x4xf32> to vector<1x4xf32>
    %131 = vector.broadcast %129 : f32 to vector<1x4xf32>
    %132 = arith.mulf %131, %130 : vector<1x4xf32>
    %133 = arith.addf %128, %132 : vector<1x4xf32>
    %c1_38 = arith.constant 1 : index
    %c2_39 = arith.constant 2 : index
    %134 = memref.load %arg6[%c1_38, %c2_39] : memref<2x24xf32, #tpu.memory_space<smem>>
    %135 = vector.extract_strided_slice %5 {offsets = [2, 0], sizes = [1, 4], strides = [1, 1]} : vector<24x4xf32> to vector<1x4xf32>
    %136 = vector.broadcast %134 : f32 to vector<1x4xf32>
    %137 = arith.mulf %136, %135 : vector<1x4xf32>
    %138 = arith.addf %133, %137 : vector<1x4xf32>
    %c1_40 = arith.constant 1 : index
    %c3_41 = arith.constant 3 : index
    %139 = memref.load %arg6[%c1_40, %c3_41] : memref<2x24xf32, #tpu.memory_space<smem>>
    %140 = vector.extract_strided_slice %5 {offsets = [3, 0], sizes = [1, 4], strides = [1, 1]} : vector<24x4xf32> to vector<1x4xf32>
    %141 = vector.broadcast %139 : f32 to vector<1x4xf32>
    %142 = arith.mulf %141, %140 : vector<1x4xf32>
    %143 = arith.addf %138, %142 : vector<1x4xf32>
    %c1_42 = arith.constant 1 : index
    %c4_43 = arith.constant 4 : index
    %144 = memref.load %arg6[%c1_42, %c4_43] : memref<2x24xf32, #tpu.memory_space<smem>>
    %145 = vector.extract_strided_slice %5 {offsets = [4, 0], sizes = [1, 4], strides = [1, 1]} : vector<24x4xf32> to vector<1x4xf32>
    %146 = vector.broadcast %144 : f32 to vector<1x4xf32>
    %147 = arith.mulf %146, %145 : vector<1x4xf32>
    %148 = arith.addf %143, %147 : vector<1x4xf32>
    %c1_44 = arith.constant 1 : index
    %c5_45 = arith.constant 5 : index
    %149 = memref.load %arg6[%c1_44, %c5_45] : memref<2x24xf32, #tpu.memory_space<smem>>
    %150 = vector.extract_strided_slice %5 {offsets = [5, 0], sizes = [1, 4], strides = [1, 1]} : vector<24x4xf32> to vector<1x4xf32>
    %151 = vector.broadcast %149 : f32 to vector<1x4xf32>
    %152 = arith.mulf %151, %150 : vector<1x4xf32>
    %153 = arith.addf %148, %152 : vector<1x4xf32>
    %c1_46 = arith.constant 1 : index
    %c6_47 = arith.constant 6 : index
    %154 = memref.load %arg6[%c1_46, %c6_47] : memref<2x24xf32, #tpu.memory_space<smem>>
    %155 = vector.extract_strided_slice %5 {offsets = [6, 0], sizes = [1, 4], strides = [1, 1]} : vector<24x4xf32> to vector<1x4xf32>
    %156 = vector.broadcast %154 : f32 to vector<1x4xf32>
    %157 = arith.mulf %156, %155 : vector<1x4xf32>
    %158 = arith.addf %153, %157 : vector<1x4xf32>
    %c1_48 = arith.constant 1 : index
    %c7_49 = arith.constant 7 : index
    %159 = memref.load %arg6[%c1_48, %c7_49] : memref<2x24xf32, #tpu.memory_space<smem>>
    %160 = vector.extract_strided_slice %5 {offsets = [7, 0], sizes = [1, 4], strides = [1, 1]} : vector<24x4xf32> to vector<1x4xf32>
    %161 = vector.broadcast %159 : f32 to vector<1x4xf32>
    %162 = arith.mulf %161, %160 : vector<1x4xf32>
    %163 = arith.addf %158, %162 : vector<1x4xf32>
    %c1_50 = arith.constant 1 : index
    %c8_51 = arith.constant 8 : index
    %164 = memref.load %arg6[%c1_50, %c8_51] : memref<2x24xf32, #tpu.memory_space<smem>>
    %165 = vector.extract_strided_slice %5 {offsets = [8, 0], sizes = [1, 4], strides = [1, 1]} : vector<24x4xf32> to vector<1x4xf32>
    %166 = vector.broadcast %164 : f32 to vector<1x4xf32>
    %167 = arith.mulf %166, %165 : vector<1x4xf32>
    %168 = arith.addf %163, %167 : vector<1x4xf32>
    %c1_52 = arith.constant 1 : index
    %c9_53 = arith.constant 9 : index
    %169 = memref.load %arg6[%c1_52, %c9_53] : memref<2x24xf32, #tpu.memory_space<smem>>
    %170 = vector.extract_strided_slice %5 {offsets = [9, 0], sizes = [1, 4], strides = [1, 1]} : vector<24x4xf32> to vector<1x4xf32>
    %171 = vector.broadcast %169 : f32 to vector<1x4xf32>
    %172 = arith.mulf %171, %170 : vector<1x4xf32>
    %173 = arith.addf %168, %172 : vector<1x4xf32>
    %c1_54 = arith.constant 1 : index
    %c10_55 = arith.constant 10 : index
    %174 = memref.load %arg6[%c1_54, %c10_55] : memref<2x24xf32, #tpu.memory_space<smem>>
    %175 = vector.extract_strided_slice %5 {offsets = [10, 0], sizes = [1, 4], strides = [1, 1]} : vector<24x4xf32> to vector<1x4xf32>
    %176 = vector.broadcast %174 : f32 to vector<1x4xf32>
    %177 = arith.mulf %176, %175 : vector<1x4xf32>
    %178 = arith.addf %173, %177 : vector<1x4xf32>
    %c1_56 = arith.constant 1 : index
    %c11_57 = arith.constant 11 : index
    %179 = memref.load %arg6[%c1_56, %c11_57] : memref<2x24xf32, #tpu.memory_space<smem>>
    %180 = vector.extract_strided_slice %5 {offsets = [11, 0], sizes = [1, 4], strides = [1, 1]} : vector<24x4xf32> to vector<1x4xf32>
    %181 = vector.broadcast %179 : f32 to vector<1x4xf32>
    %182 = arith.mulf %181, %180 : vector<1x4xf32>
    %183 = arith.addf %178, %182 : vector<1x4xf32>
    %c1_58 = arith.constant 1 : index
    %c12_59 = arith.constant 12 : index
    %184 = memref.load %arg6[%c1_58, %c12_59] : memref<2x24xf32, #tpu.memory_space<smem>>
    %185 = vector.extract_strided_slice %5 {offsets = [12, 0], sizes = [1, 4], strides = [1, 1]} : vector<24x4xf32> to vector<1x4xf32>
    %186 = vector.broadcast %184 : f32 to vector<1x4xf32>
    %187 = arith.mulf %186, %185 : vector<1x4xf32>
    %188 = arith.addf %183, %187 : vector<1x4xf32>
    %c1_60 = arith.constant 1 : index
    %c13_61 = arith.constant 13 : index
    %189 = memref.load %arg6[%c1_60, %c13_61] : memref<2x24xf32, #tpu.memory_space<smem>>
    %190 = vector.extract_strided_slice %5 {offsets = [13, 0], sizes = [1, 4], strides = [1, 1]} : vector<24x4xf32> to vector<1x4xf32>
    %191 = vector.broadcast %189 : f32 to vector<1x4xf32>
    %192 = arith.mulf %191, %190 : vector<1x4xf32>
    %193 = arith.addf %188, %192 : vector<1x4xf32>
    %c1_62 = arith.constant 1 : index
    %c14_63 = arith.constant 14 : index
    %194 = memref.load %arg6[%c1_62, %c14_63] : memref<2x24xf32, #tpu.memory_space<smem>>
    %195 = vector.extract_strided_slice %5 {offsets = [14, 0], sizes = [1, 4], strides = [1, 1]} : vector<24x4xf32> to vector<1x4xf32>
    %196 = vector.broadcast %194 : f32 to vector<1x4xf32>
    %197 = arith.mulf %196, %195 : vector<1x4xf32>
    %198 = arith.addf %193, %197 : vector<1x4xf32>
    %c1_64 = arith.constant 1 : index
    %c15_65 = arith.constant 15 : index
    %199 = memref.load %arg6[%c1_64, %c15_65] : memref<2x24xf32, #tpu.memory_space<smem>>
    %200 = vector.extract_strided_slice %5 {offsets = [15, 0], sizes = [1, 4], strides = [1, 1]} : vector<24x4xf32> to vector<1x4xf32>
    %201 = vector.broadcast %199 : f32 to vector<1x4xf32>
    %202 = arith.mulf %201, %200 : vector<1x4xf32>
    %203 = arith.addf %198, %202 : vector<1x4xf32>
    %c1_66 = arith.constant 1 : index
    %c16_67 = arith.constant 16 : index
    %204 = memref.load %arg6[%c1_66, %c16_67] : memref<2x24xf32, #tpu.memory_space<smem>>
    %205 = vector.extract_strided_slice %5 {offsets = [16, 0], sizes = [1, 4], strides = [1, 1]} : vector<24x4xf32> to vector<1x4xf32>
    %206 = vector.broadcast %204 : f32 to vector<1x4xf32>
    %207 = arith.mulf %206, %205 : vector<1x4xf32>
    %208 = arith.addf %203, %207 : vector<1x4xf32>
    %c1_68 = arith.constant 1 : index
    %c17_69 = arith.constant 17 : index
    %209 = memref.load %arg6[%c1_68, %c17_69] : memref<2x24xf32, #tpu.memory_space<smem>>
    %210 = vector.extract_strided_slice %5 {offsets = [17, 0], sizes = [1, 4], strides = [1, 1]} : vector<24x4xf32> to vector<1x4xf32>
    %211 = vector.broadcast %209 : f32 to vector<1x4xf32>
    %212 = arith.mulf %211, %210 : vector<1x4xf32>
    %213 = arith.addf %208, %212 : vector<1x4xf32>
    %c1_70 = arith.constant 1 : index
    %c18_71 = arith.constant 18 : index
    %214 = memref.load %arg6[%c1_70, %c18_71] : memref<2x24xf32, #tpu.memory_space<smem>>
    %215 = vector.extract_strided_slice %5 {offsets = [18, 0], sizes = [1, 4], strides = [1, 1]} : vector<24x4xf32> to vector<1x4xf32>
    %216 = vector.broadcast %214 : f32 to vector<1x4xf32>
    %217 = arith.mulf %216, %215 : vector<1x4xf32>
    %218 = arith.addf %213, %217 : vector<1x4xf32>
    %c1_72 = arith.constant 1 : index
    %c19_73 = arith.constant 19 : index
    %219 = memref.load %arg6[%c1_72, %c19_73] : memref<2x24xf32, #tpu.memory_space<smem>>
    %220 = vector.extract_strided_slice %5 {offsets = [19, 0], sizes = [1, 4], strides = [1, 1]} : vector<24x4xf32> to vector<1x4xf32>
    %221 = vector.broadcast %219 : f32 to vector<1x4xf32>
    %222 = arith.mulf %221, %220 : vector<1x4xf32>
    %223 = arith.addf %218, %222 : vector<1x4xf32>
    %c1_74 = arith.constant 1 : index
    %c20_75 = arith.constant 20 : index
    %224 = memref.load %arg6[%c1_74, %c20_75] : memref<2x24xf32, #tpu.memory_space<smem>>
    %225 = vector.extract_strided_slice %5 {offsets = [20, 0], sizes = [1, 4], strides = [1, 1]} : vector<24x4xf32> to vector<1x4xf32>
    %226 = vector.broadcast %224 : f32 to vector<1x4xf32>
    %227 = arith.mulf %226, %225 : vector<1x4xf32>
    %228 = arith.addf %223, %227 : vector<1x4xf32>
    %c1_76 = arith.constant 1 : index
    %c21_77 = arith.constant 21 : index
    %229 = memref.load %arg6[%c1_76, %c21_77] : memref<2x24xf32, #tpu.memory_space<smem>>
    %230 = vector.extract_strided_slice %5 {offsets = [21, 0], sizes = [1, 4], strides = [1, 1]} : vector<24x4xf32> to vector<1x4xf32>
    %231 = vector.broadcast %229 : f32 to vector<1x4xf32>
    %232 = arith.mulf %231, %230 : vector<1x4xf32>
    %233 = arith.addf %228, %232 : vector<1x4xf32>
    %c1_78 = arith.constant 1 : index
    %c22_79 = arith.constant 22 : index
    %234 = memref.load %arg6[%c1_78, %c22_79] : memref<2x24xf32, #tpu.memory_space<smem>>
    %235 = vector.extract_strided_slice %5 {offsets = [22, 0], sizes = [1, 4], strides = [1, 1]} : vector<24x4xf32> to vector<1x4xf32>
    %236 = vector.broadcast %234 : f32 to vector<1x4xf32>
    %237 = arith.mulf %236, %235 : vector<1x4xf32>
    %238 = arith.addf %233, %237 : vector<1x4xf32>
    %c1_80 = arith.constant 1 : index
    %c23_81 = arith.constant 23 : index
    %239 = memref.load %arg6[%c1_80, %c23_81] : memref<2x24xf32, #tpu.memory_space<smem>>
    %240 = vector.extract_strided_slice %5 {offsets = [23, 0], sizes = [1, 4], strides = [1, 1]} : vector<24x4xf32> to vector<1x4xf32>
    %241 = vector.broadcast %239 : f32 to vector<1x4xf32>
    %242 = arith.mulf %241, %240 : vector<1x4xf32>
    %243 = arith.addf %238, %242 : vector<1x4xf32>
    %244 = tpu.concatenate %124, %243 in 0 : vector<1x4xf32>, vector<1x4xf32> -> vector<2x4xf32>
    %245 = arith.truncf %244 : vector<2x4xf32> to vector<2x4xbf16>
    %246 = arith.extf %245 : vector<2x4xbf16> to vector<2x4xf32>
    %247 = arith.subf %244, %246 : vector<2x4xf32>
    %cst = arith.constant dense<0.000000e+00> : vector<2x64xf32>
    %248 = tpu.matmul %246, %0, %cst {dimension_numbers = #tpu.dot_dimension_numbers<[1], [0], [0], [1], [0, 0, 1, 1], [], []>} : vector<2x4xf32>, vector<4x64xf32>, vector<2x64xf32> -> vector<2x64xf32>
    %cst_82 = arith.constant dense<0.000000e+00> : vector<2x64xf32>
    %249 = tpu.matmul %247, %0, %cst_82 {dimension_numbers = #tpu.dot_dimension_numbers<[1], [0], [0], [1], [0, 0, 1, 1], [], []>} : vector<2x4xf32>, vector<4x64xf32>, vector<2x64xf32> -> vector<2x64xf32>
    %250 = arith.addf %248, %249 : vector<2x64xf32>
    %c0_83 = arith.constant 0 : index
    %c0_84 = arith.constant 0 : index
    %251 = memref.load %arg5[%c0_83, %c0_84] : memref<2x16xf32, #tpu.memory_space<smem>>
    %252 = vector.extract_strided_slice %3 {offsets = [0, 0], sizes = [1, 64], strides = [1, 1]} : vector<16x64xf32> to vector<1x64xf32>
    %253 = vector.broadcast %251 : f32 to vector<1x64xf32>
    %254 = arith.mulf %253, %252 : vector<1x64xf32>
    %c0_85 = arith.constant 0 : index
    %c1_86 = arith.constant 1 : index
    %255 = memref.load %arg5[%c0_85, %c1_86] : memref<2x16xf32, #tpu.memory_space<smem>>
    %256 = vector.extract_strided_slice %3 {offsets = [1, 0], sizes = [1, 64], strides = [1, 1]} : vector<16x64xf32> to vector<1x64xf32>
    %257 = vector.broadcast %255 : f32 to vector<1x64xf32>
    %258 = arith.mulf %257, %256 : vector<1x64xf32>
    %259 = arith.addf %254, %258 : vector<1x64xf32>
    %c0_87 = arith.constant 0 : index
    %c2_88 = arith.constant 2 : index
    %260 = memref.load %arg5[%c0_87, %c2_88] : memref<2x16xf32, #tpu.memory_space<smem>>
    %261 = vector.extract_strided_slice %3 {offsets = [2, 0], sizes = [1, 64], strides = [1, 1]} : vector<16x64xf32> to vector<1x64xf32>
    %262 = vector.broadcast %260 : f32 to vector<1x64xf32>
    %263 = arith.mulf %262, %261 : vector<1x64xf32>
    %264 = arith.addf %259, %263 : vector<1x64xf32>
    %c0_89 = arith.constant 0 : index
    %c3_90 = arith.constant 3 : index
    %265 = memref.load %arg5[%c0_89, %c3_90] : memref<2x16xf32, #tpu.memory_space<smem>>
    %266 = vector.extract_strided_slice %3 {offsets = [3, 0], sizes = [1, 64], strides = [1, 1]} : vector<16x64xf32> to vector<1x64xf32>
    %267 = vector.broadcast %265 : f32 to vector<1x64xf32>
    %268 = arith.mulf %267, %266 : vector<1x64xf32>
    %269 = arith.addf %264, %268 : vector<1x64xf32>
    %c0_91 = arith.constant 0 : index
    %c4_92 = arith.constant 4 : index
    %270 = memref.load %arg5[%c0_91, %c4_92] : memref<2x16xf32, #tpu.memory_space<smem>>
    %271 = vector.extract_strided_slice %3 {offsets = [4, 0], sizes = [1, 64], strides = [1, 1]} : vector<16x64xf32> to vector<1x64xf32>
    %272 = vector.broadcast %270 : f32 to vector<1x64xf32>
    %273 = arith.mulf %272, %271 : vector<1x64xf32>
    %274 = arith.addf %269, %273 : vector<1x64xf32>
    %c0_93 = arith.constant 0 : index
    %c5_94 = arith.constant 5 : index
    %275 = memref.load %arg5[%c0_93, %c5_94] : memref<2x16xf32, #tpu.memory_space<smem>>
    %276 = vector.extract_strided_slice %3 {offsets = [5, 0], sizes = [1, 64], strides = [1, 1]} : vector<16x64xf32> to vector<1x64xf32>
    %277 = vector.broadcast %275 : f32 to vector<1x64xf32>
    %278 = arith.mulf %277, %276 : vector<1x64xf32>
    %279 = arith.addf %274, %278 : vector<1x64xf32>
    %c0_95 = arith.constant 0 : index
    %c6_96 = arith.constant 6 : index
    %280 = memref.load %arg5[%c0_95, %c6_96] : memref<2x16xf32, #tpu.memory_space<smem>>
    %281 = vector.extract_strided_slice %3 {offsets = [6, 0], sizes = [1, 64], strides = [1, 1]} : vector<16x64xf32> to vector<1x64xf32>
    %282 = vector.broadcast %280 : f32 to vector<1x64xf32>
    %283 = arith.mulf %282, %281 : vector<1x64xf32>
    %284 = arith.addf %279, %283 : vector<1x64xf32>
    %c0_97 = arith.constant 0 : index
    %c7_98 = arith.constant 7 : index
    %285 = memref.load %arg5[%c0_97, %c7_98] : memref<2x16xf32, #tpu.memory_space<smem>>
    %286 = vector.extract_strided_slice %3 {offsets = [7, 0], sizes = [1, 64], strides = [1, 1]} : vector<16x64xf32> to vector<1x64xf32>
    %287 = vector.broadcast %285 : f32 to vector<1x64xf32>
    %288 = arith.mulf %287, %286 : vector<1x64xf32>
    %289 = arith.addf %284, %288 : vector<1x64xf32>
    %c0_99 = arith.constant 0 : index
    %c8_100 = arith.constant 8 : index
    %290 = memref.load %arg5[%c0_99, %c8_100] : memref<2x16xf32, #tpu.memory_space<smem>>
    %291 = vector.extract_strided_slice %3 {offsets = [8, 0], sizes = [1, 64], strides = [1, 1]} : vector<16x64xf32> to vector<1x64xf32>
    %292 = vector.broadcast %290 : f32 to vector<1x64xf32>
    %293 = arith.mulf %292, %291 : vector<1x64xf32>
    %294 = arith.addf %289, %293 : vector<1x64xf32>
    %c0_101 = arith.constant 0 : index
    %c9_102 = arith.constant 9 : index
    %295 = memref.load %arg5[%c0_101, %c9_102] : memref<2x16xf32, #tpu.memory_space<smem>>
    %296 = vector.extract_strided_slice %3 {offsets = [9, 0], sizes = [1, 64], strides = [1, 1]} : vector<16x64xf32> to vector<1x64xf32>
    %297 = vector.broadcast %295 : f32 to vector<1x64xf32>
    %298 = arith.mulf %297, %296 : vector<1x64xf32>
    %299 = arith.addf %294, %298 : vector<1x64xf32>
    %c0_103 = arith.constant 0 : index
    %c10_104 = arith.constant 10 : index
    %300 = memref.load %arg5[%c0_103, %c10_104] : memref<2x16xf32, #tpu.memory_space<smem>>
    %301 = vector.extract_strided_slice %3 {offsets = [10, 0], sizes = [1, 64], strides = [1, 1]} : vector<16x64xf32> to vector<1x64xf32>
    %302 = vector.broadcast %300 : f32 to vector<1x64xf32>
    %303 = arith.mulf %302, %301 : vector<1x64xf32>
    %304 = arith.addf %299, %303 : vector<1x64xf32>
    %c0_105 = arith.constant 0 : index
    %c11_106 = arith.constant 11 : index
    %305 = memref.load %arg5[%c0_105, %c11_106] : memref<2x16xf32, #tpu.memory_space<smem>>
    %306 = vector.extract_strided_slice %3 {offsets = [11, 0], sizes = [1, 64], strides = [1, 1]} : vector<16x64xf32> to vector<1x64xf32>
    %307 = vector.broadcast %305 : f32 to vector<1x64xf32>
    %308 = arith.mulf %307, %306 : vector<1x64xf32>
    %309 = arith.addf %304, %308 : vector<1x64xf32>
    %c0_107 = arith.constant 0 : index
    %c12_108 = arith.constant 12 : index
    %310 = memref.load %arg5[%c0_107, %c12_108] : memref<2x16xf32, #tpu.memory_space<smem>>
    %311 = vector.extract_strided_slice %3 {offsets = [12, 0], sizes = [1, 64], strides = [1, 1]} : vector<16x64xf32> to vector<1x64xf32>
    %312 = vector.broadcast %310 : f32 to vector<1x64xf32>
    %313 = arith.mulf %312, %311 : vector<1x64xf32>
    %314 = arith.addf %309, %313 : vector<1x64xf32>
    %c0_109 = arith.constant 0 : index
    %c13_110 = arith.constant 13 : index
    %315 = memref.load %arg5[%c0_109, %c13_110] : memref<2x16xf32, #tpu.memory_space<smem>>
    %316 = vector.extract_strided_slice %3 {offsets = [13, 0], sizes = [1, 64], strides = [1, 1]} : vector<16x64xf32> to vector<1x64xf32>
    %317 = vector.broadcast %315 : f32 to vector<1x64xf32>
    %318 = arith.mulf %317, %316 : vector<1x64xf32>
    %319 = arith.addf %314, %318 : vector<1x64xf32>
    %c0_111 = arith.constant 0 : index
    %c14_112 = arith.constant 14 : index
    %320 = memref.load %arg5[%c0_111, %c14_112] : memref<2x16xf32, #tpu.memory_space<smem>>
    %321 = vector.extract_strided_slice %3 {offsets = [14, 0], sizes = [1, 64], strides = [1, 1]} : vector<16x64xf32> to vector<1x64xf32>
    %322 = vector.broadcast %320 : f32 to vector<1x64xf32>
    %323 = arith.mulf %322, %321 : vector<1x64xf32>
    %324 = arith.addf %319, %323 : vector<1x64xf32>
    %c0_113 = arith.constant 0 : index
    %c15_114 = arith.constant 15 : index
    %325 = memref.load %arg5[%c0_113, %c15_114] : memref<2x16xf32, #tpu.memory_space<smem>>
    %326 = vector.extract_strided_slice %3 {offsets = [15, 0], sizes = [1, 64], strides = [1, 1]} : vector<16x64xf32> to vector<1x64xf32>
    %327 = vector.broadcast %325 : f32 to vector<1x64xf32>
    %328 = arith.mulf %327, %326 : vector<1x64xf32>
    %329 = arith.addf %324, %328 : vector<1x64xf32>
    %330 = vector.extract_strided_slice %250 {offsets = [0, 0], sizes = [1, 64], strides = [1, 1]} : vector<2x64xf32> to vector<1x64xf32>
    %331 = arith.addf %329, %330 : vector<1x64xf32>
    %cst_115 = arith.constant 0.000000e+00 : f32
    %332 = vector.broadcast %cst_115 : f32 to vector<1x64xf32>
    %333 = arith.maximumf %331, %332 : vector<1x64xf32>
    %c0_116 = arith.constant 0 : index
    %334 = memref.load %arg7[%c0_116] : memref<2xf32, #tpu.memory_space<smem>>
    %335 = vector.broadcast %334 : f32 to vector<1x64xf32>
    %336 = arith.mulf %335, %333 : vector<1x64xf32>
    %c1_117 = arith.constant 1 : index
    %c0_118 = arith.constant 0 : index
    %337 = memref.load %arg5[%c1_117, %c0_118] : memref<2x16xf32, #tpu.memory_space<smem>>
    %338 = vector.extract_strided_slice %3 {offsets = [0, 0], sizes = [1, 64], strides = [1, 1]} : vector<16x64xf32> to vector<1x64xf32>
    %339 = vector.broadcast %337 : f32 to vector<1x64xf32>
    %340 = arith.mulf %339, %338 : vector<1x64xf32>
    %c1_119 = arith.constant 1 : index
    %c1_120 = arith.constant 1 : index
    %341 = memref.load %arg5[%c1_119, %c1_120] : memref<2x16xf32, #tpu.memory_space<smem>>
    %342 = vector.extract_strided_slice %3 {offsets = [1, 0], sizes = [1, 64], strides = [1, 1]} : vector<16x64xf32> to vector<1x64xf32>
    %343 = vector.broadcast %341 : f32 to vector<1x64xf32>
    %344 = arith.mulf %343, %342 : vector<1x64xf32>
    %345 = arith.addf %340, %344 : vector<1x64xf32>
    %c1_121 = arith.constant 1 : index
    %c2_122 = arith.constant 2 : index
    %346 = memref.load %arg5[%c1_121, %c2_122] : memref<2x16xf32, #tpu.memory_space<smem>>
    %347 = vector.extract_strided_slice %3 {offsets = [2, 0], sizes = [1, 64], strides = [1, 1]} : vector<16x64xf32> to vector<1x64xf32>
    %348 = vector.broadcast %346 : f32 to vector<1x64xf32>
    %349 = arith.mulf %348, %347 : vector<1x64xf32>
    %350 = arith.addf %345, %349 : vector<1x64xf32>
    %c1_123 = arith.constant 1 : index
    %c3_124 = arith.constant 3 : index
    %351 = memref.load %arg5[%c1_123, %c3_124] : memref<2x16xf32, #tpu.memory_space<smem>>
    %352 = vector.extract_strided_slice %3 {offsets = [3, 0], sizes = [1, 64], strides = [1, 1]} : vector<16x64xf32> to vector<1x64xf32>
    %353 = vector.broadcast %351 : f32 to vector<1x64xf32>
    %354 = arith.mulf %353, %352 : vector<1x64xf32>
    %355 = arith.addf %350, %354 : vector<1x64xf32>
    %c1_125 = arith.constant 1 : index
    %c4_126 = arith.constant 4 : index
    %356 = memref.load %arg5[%c1_125, %c4_126] : memref<2x16xf32, #tpu.memory_space<smem>>
    %357 = vector.extract_strided_slice %3 {offsets = [4, 0], sizes = [1, 64], strides = [1, 1]} : vector<16x64xf32> to vector<1x64xf32>
    %358 = vector.broadcast %356 : f32 to vector<1x64xf32>
    %359 = arith.mulf %358, %357 : vector<1x64xf32>
    %360 = arith.addf %355, %359 : vector<1x64xf32>
    %c1_127 = arith.constant 1 : index
    %c5_128 = arith.constant 5 : index
    %361 = memref.load %arg5[%c1_127, %c5_128] : memref<2x16xf32, #tpu.memory_space<smem>>
    %362 = vector.extract_strided_slice %3 {offsets = [5, 0], sizes = [1, 64], strides = [1, 1]} : vector<16x64xf32> to vector<1x64xf32>
    %363 = vector.broadcast %361 : f32 to vector<1x64xf32>
    %364 = arith.mulf %363, %362 : vector<1x64xf32>
    %365 = arith.addf %360, %364 : vector<1x64xf32>
    %c1_129 = arith.constant 1 : index
    %c6_130 = arith.constant 6 : index
    %366 = memref.load %arg5[%c1_129, %c6_130] : memref<2x16xf32, #tpu.memory_space<smem>>
    %367 = vector.extract_strided_slice %3 {offsets = [6, 0], sizes = [1, 64], strides = [1, 1]} : vector<16x64xf32> to vector<1x64xf32>
    %368 = vector.broadcast %366 : f32 to vector<1x64xf32>
    %369 = arith.mulf %368, %367 : vector<1x64xf32>
    %370 = arith.addf %365, %369 : vector<1x64xf32>
    %c1_131 = arith.constant 1 : index
    %c7_132 = arith.constant 7 : index
    %371 = memref.load %arg5[%c1_131, %c7_132] : memref<2x16xf32, #tpu.memory_space<smem>>
    %372 = vector.extract_strided_slice %3 {offsets = [7, 0], sizes = [1, 64], strides = [1, 1]} : vector<16x64xf32> to vector<1x64xf32>
    %373 = vector.broadcast %371 : f32 to vector<1x64xf32>
    %374 = arith.mulf %373, %372 : vector<1x64xf32>
    %375 = arith.addf %370, %374 : vector<1x64xf32>
    %c1_133 = arith.constant 1 : index
    %c8_134 = arith.constant 8 : index
    %376 = memref.load %arg5[%c1_133, %c8_134] : memref<2x16xf32, #tpu.memory_space<smem>>
    %377 = vector.extract_strided_slice %3 {offsets = [8, 0], sizes = [1, 64], strides = [1, 1]} : vector<16x64xf32> to vector<1x64xf32>
    %378 = vector.broadcast %376 : f32 to vector<1x64xf32>
    %379 = arith.mulf %378, %377 : vector<1x64xf32>
    %380 = arith.addf %375, %379 : vector<1x64xf32>
    %c1_135 = arith.constant 1 : index
    %c9_136 = arith.constant 9 : index
    %381 = memref.load %arg5[%c1_135, %c9_136] : memref<2x16xf32, #tpu.memory_space<smem>>
    %382 = vector.extract_strided_slice %3 {offsets = [9, 0], sizes = [1, 64], strides = [1, 1]} : vector<16x64xf32> to vector<1x64xf32>
    %383 = vector.broadcast %381 : f32 to vector<1x64xf32>
    %384 = arith.mulf %383, %382 : vector<1x64xf32>
    %385 = arith.addf %380, %384 : vector<1x64xf32>
    %c1_137 = arith.constant 1 : index
    %c10_138 = arith.constant 10 : index
    %386 = memref.load %arg5[%c1_137, %c10_138] : memref<2x16xf32, #tpu.memory_space<smem>>
    %387 = vector.extract_strided_slice %3 {offsets = [10, 0], sizes = [1, 64], strides = [1, 1]} : vector<16x64xf32> to vector<1x64xf32>
    %388 = vector.broadcast %386 : f32 to vector<1x64xf32>
    %389 = arith.mulf %388, %387 : vector<1x64xf32>
    %390 = arith.addf %385, %389 : vector<1x64xf32>
    %c1_139 = arith.constant 1 : index
    %c11_140 = arith.constant 11 : index
    %391 = memref.load %arg5[%c1_139, %c11_140] : memref<2x16xf32, #tpu.memory_space<smem>>
    %392 = vector.extract_strided_slice %3 {offsets = [11, 0], sizes = [1, 64], strides = [1, 1]} : vector<16x64xf32> to vector<1x64xf32>
    %393 = vector.broadcast %391 : f32 to vector<1x64xf32>
    %394 = arith.mulf %393, %392 : vector<1x64xf32>
    %395 = arith.addf %390, %394 : vector<1x64xf32>
    %c1_141 = arith.constant 1 : index
    %c12_142 = arith.constant 12 : index
    %396 = memref.load %arg5[%c1_141, %c12_142] : memref<2x16xf32, #tpu.memory_space<smem>>
    %397 = vector.extract_strided_slice %3 {offsets = [12, 0], sizes = [1, 64], strides = [1, 1]} : vector<16x64xf32> to vector<1x64xf32>
    %398 = vector.broadcast %396 : f32 to vector<1x64xf32>
    %399 = arith.mulf %398, %397 : vector<1x64xf32>
    %400 = arith.addf %395, %399 : vector<1x64xf32>
    %c1_143 = arith.constant 1 : index
    %c13_144 = arith.constant 13 : index
    %401 = memref.load %arg5[%c1_143, %c13_144] : memref<2x16xf32, #tpu.memory_space<smem>>
    %402 = vector.extract_strided_slice %3 {offsets = [13, 0], sizes = [1, 64], strides = [1, 1]} : vector<16x64xf32> to vector<1x64xf32>
    %403 = vector.broadcast %401 : f32 to vector<1x64xf32>
    %404 = arith.mulf %403, %402 : vector<1x64xf32>
    %405 = arith.addf %400, %404 : vector<1x64xf32>
    %c1_145 = arith.constant 1 : index
    %c14_146 = arith.constant 14 : index
    %406 = memref.load %arg5[%c1_145, %c14_146] : memref<2x16xf32, #tpu.memory_space<smem>>
    %407 = vector.extract_strided_slice %3 {offsets = [14, 0], sizes = [1, 64], strides = [1, 1]} : vector<16x64xf32> to vector<1x64xf32>
    %408 = vector.broadcast %406 : f32 to vector<1x64xf32>
    %409 = arith.mulf %408, %407 : vector<1x64xf32>
    %410 = arith.addf %405, %409 : vector<1x64xf32>
    %c1_147 = arith.constant 1 : index
    %c15_148 = arith.constant 15 : index
    %411 = memref.load %arg5[%c1_147, %c15_148] : memref<2x16xf32, #tpu.memory_space<smem>>
    %412 = vector.extract_strided_slice %3 {offsets = [15, 0], sizes = [1, 64], strides = [1, 1]} : vector<16x64xf32> to vector<1x64xf32>
    %413 = vector.broadcast %411 : f32 to vector<1x64xf32>
    %414 = arith.mulf %413, %412 : vector<1x64xf32>
    %415 = arith.addf %410, %414 : vector<1x64xf32>
    %416 = vector.extract_strided_slice %250 {offsets = [1, 0], sizes = [1, 64], strides = [1, 1]} : vector<2x64xf32> to vector<1x64xf32>
    %417 = arith.addf %415, %416 : vector<1x64xf32>
    %cst_149 = arith.constant 0.000000e+00 : f32
    %418 = vector.broadcast %cst_149 : f32 to vector<1x64xf32>
    %419 = arith.maximumf %417, %418 : vector<1x64xf32>
    %c1_150 = arith.constant 1 : index
    %420 = memref.load %arg7[%c1_150] : memref<2xf32, #tpu.memory_space<smem>>
    %421 = vector.broadcast %420 : f32 to vector<1x64xf32>
    %422 = arith.mulf %421, %419 : vector<1x64xf32>
    %423 = arith.addf %336, %422 : vector<1x64xf32>
    %c0_151 = arith.constant 0 : index
    %424 = memref.load %arg8[%c0_151] : memref<1xf32, #tpu.memory_space<smem>>
    %425 = vector.broadcast %424 : f32 to vector<1x64xf32>
    %426 = arith.addf %423, %425 : vector<1x64xf32>
    %427 = arith.negf %426 : vector<1x64xf32>
    %428 = math.exp %427 : vector<1x64xf32>
    %cst_152 = arith.constant 1.000000e+00 : f32
    %429 = vector.broadcast %cst_152 : f32 to vector<1x64xf32>
    %430 = arith.addf %429, %428 : vector<1x64xf32>
    %431 = arith.divf %429, %430 : vector<1x64xf32>
    %432 = arith.truncf %431 : vector<1x64xf32> to vector<1x64xbf16>
    %433 = arith.extf %432 : vector<1x64xbf16> to vector<1x64xf32>
    %434 = arith.subf %431, %433 : vector<1x64xf32>
    %cst_153 = arith.constant dense<0.000000e+00> : vector<1x256xf32>
    %435 = tpu.matmul %433, %1, %cst_153 {dimension_numbers = #tpu.dot_dimension_numbers<[1], [0], [0], [1], [0, 0, 1, 1], [], []>} : vector<1x64xf32>, vector<64x256xf32>, vector<1x256xf32> -> vector<1x256xf32>
    %cst_154 = arith.constant dense<0.000000e+00> : vector<1x256xf32>
    %436 = tpu.matmul %434, %1, %cst_154 {dimension_numbers = #tpu.dot_dimension_numbers<[1], [0], [0], [1], [0, 0, 1, 1], [], []>} : vector<1x64xf32>, vector<64x256xf32>, vector<1x256xf32> -> vector<1x256xf32>
    %437 = arith.addf %435, %436 : vector<1x256xf32>
    %c0_155 = arith.constant 0 : index
    %c0_156 = arith.constant 0 : index
    %c0_157 = arith.constant 0 : index
    %438 = vector.load %arg12[%c0_155, %c0_156, %c0_157] : memref<2x1x256xf32, #tpu.memory_space<vmem>>, vector<1x1x256xf32>
    %439 = vector.shape_cast %438 : vector<1x1x256xf32> to vector<1x256xf32>
    %440 = vector.shape_cast %437 : vector<1x256xf32> to vector<1x1x256xf32>
    tpu.vector_store %arg12[%c0_155, %c0_156, %c0_157], %440 {strides = array<i32>} : memref<2x1x256xf32, #tpu.memory_space<vmem>>, vector<1x1x256xf32>,
    %c0_158 = arith.constant 0 : index
    %c0_159 = arith.constant 0 : index
    %c0_160 = arith.constant 0 : index
    %441 = vector.load %arg2[%c0_158, %c0_159, %c0_160] : memref<2x4x256xf32, #tpu.memory_space<vmem>>, vector<1x4x256xf32>
    %442 = vector.shape_cast %441 : vector<1x4x256xf32> to vector<4x256xf32>
    %443 = vector.broadcast %437 : vector<1x256xf32> to vector<4x256xf32>
    %444 = arith.mulf %443, %442 : vector<4x256xf32>
    %c0_161 = arith.constant 0 : index
    %c0_162 = arith.constant 0 : index
    %445 = memref.load %arg9[%c0_161, %c0_162] : memref<4x4xf32, #tpu.memory_space<smem>>
    %446 = vector.extract_strided_slice %444 {offsets = [0, 0], sizes = [1, 256], strides = [1, 1]} : vector<4x256xf32> to vector<1x256xf32>
    %447 = vector.broadcast %445 : f32 to vector<1x256xf32>
    %448 = arith.mulf %447, %446 : vector<1x256xf32>
    %c0_163 = arith.constant 0 : index
    %c1_164 = arith.constant 1 : index
    %449 = memref.load %arg9[%c0_163, %c1_164] : memref<4x4xf32, #tpu.memory_space<smem>>
    %450 = vector.extract_strided_slice %444 {offsets = [1, 0], sizes = [1, 256], strides = [1, 1]} : vector<4x256xf32> to vector<1x256xf32>
    %451 = vector.broadcast %449 : f32 to vector<1x256xf32>
    %452 = arith.mulf %451, %450 : vector<1x256xf32>
    %453 = arith.addf %448, %452 : vector<1x256xf32>
    %c0_165 = arith.constant 0 : index
    %c2_166 = arith.constant 2 : index
    %454 = memref.load %arg9[%c0_165, %c2_166] : memref<4x4xf32, #tpu.memory_space<smem>>
    %455 = vector.extract_strided_slice %444 {offsets = [2, 0], sizes = [1, 256], strides = [1, 1]} : vector<4x256xf32> to vector<1x256xf32>
    %456 = vector.broadcast %454 : f32 to vector<1x256xf32>
    %457 = arith.mulf %456, %455 : vector<1x256xf32>
    %458 = arith.addf %453, %457 : vector<1x256xf32>
    %c0_167 = arith.constant 0 : index
    %c3_168 = arith.constant 3 : index
    %459 = memref.load %arg9[%c0_167, %c3_168] : memref<4x4xf32, #tpu.memory_space<smem>>
    %460 = vector.extract_strided_slice %444 {offsets = [3, 0], sizes = [1, 256], strides = [1, 1]} : vector<4x256xf32> to vector<1x256xf32>
    %461 = vector.broadcast %459 : f32 to vector<1x256xf32>
    %462 = arith.mulf %461, %460 : vector<1x256xf32>
    %463 = arith.addf %458, %462 : vector<1x256xf32>
    %c0_169 = arith.constant 0 : index
    %464 = memref.load %arg10[%c0_169] : memref<4xf32, #tpu.memory_space<smem>>
    %465 = vector.broadcast %464 : f32 to vector<1x256xf32>
    %466 = arith.addf %463, %465 : vector<1x256xf32>
    %c1_170 = arith.constant 1 : index
    %c0_171 = arith.constant 0 : index
    %467 = memref.load %arg9[%c1_170, %c0_171] : memref<4x4xf32, #tpu.memory_space<smem>>
    %468 = vector.extract_strided_slice %444 {offsets = [0, 0], sizes = [1, 256], strides = [1, 1]} : vector<4x256xf32> to vector<1x256xf32>
    %469 = vector.broadcast %467 : f32 to vector<1x256xf32>
    %470 = arith.mulf %469, %468 : vector<1x256xf32>
    %c1_172 = arith.constant 1 : index
    %c1_173 = arith.constant 1 : index
    %471 = memref.load %arg9[%c1_172, %c1_173] : memref<4x4xf32, #tpu.memory_space<smem>>
    %472 = vector.extract_strided_slice %444 {offsets = [1, 0], sizes = [1, 256], strides = [1, 1]} : vector<4x256xf32> to vector<1x256xf32>
    %473 = vector.broadcast %471 : f32 to vector<1x256xf32>
    %474 = arith.mulf %473, %472 : vector<1x256xf32>
    %475 = arith.addf %470, %474 : vector<1x256xf32>
    %c1_174 = arith.constant 1 : index
    %c2_175 = arith.constant 2 : index
    %476 = memref.load %arg9[%c1_174, %c2_175] : memref<4x4xf32, #tpu.memory_space<smem>>
    %477 = vector.extract_strided_slice %444 {offsets = [2, 0], sizes = [1, 256], strides = [1, 1]} : vector<4x256xf32> to vector<1x256xf32>
    %478 = vector.broadcast %476 : f32 to vector<1x256xf32>
    %479 = arith.mulf %478, %477 : vector<1x256xf32>
    %480 = arith.addf %475, %479 : vector<1x256xf32>
    %c1_176 = arith.constant 1 : index
    %c3_177 = arith.constant 3 : index
    %481 = memref.load %arg9[%c1_176, %c3_177] : memref<4x4xf32, #tpu.memory_space<smem>>
    %482 = vector.extract_strided_slice %444 {offsets = [3, 0], sizes = [1, 256], strides = [1, 1]} : vector<4x256xf32> to vector<1x256xf32>
    %483 = vector.broadcast %481 : f32 to vector<1x256xf32>
    %484 = arith.mulf %483, %482 : vector<1x256xf32>
    %485 = arith.addf %480, %484 : vector<1x256xf32>
    %c1_178 = arith.constant 1 : index
    %486 = memref.load %arg10[%c1_178] : memref<4xf32, #tpu.memory_space<smem>>
    %487 = vector.broadcast %486 : f32 to vector<1x256xf32>
    %488 = arith.addf %485, %487 : vector<1x256xf32>
    %c2_179 = arith.constant 2 : index
    %c0_180 = arith.constant 0 : index
    %489 = memref.load %arg9[%c2_179, %c0_180] : memref<4x4xf32, #tpu.memory_space<smem>>
    %490 = vector.extract_strided_slice %444 {offsets = [0, 0], sizes = [1, 256], strides = [1, 1]} : vector<4x256xf32> to vector<1x256xf32>
    %491 = vector.broadcast %489 : f32 to vector<1x256xf32>
    %492 = arith.mulf %491, %490 : vector<1x256xf32>
    %c2_181 = arith.constant 2 : index
    %c1_182 = arith.constant 1 : index
    %493 = memref.load %arg9[%c2_181, %c1_182] : memref<4x4xf32, #tpu.memory_space<smem>>
    %494 = vector.extract_strided_slice %444 {offsets = [1, 0], sizes = [1, 256], strides = [1, 1]} : vector<4x256xf32> to vector<1x256xf32>
    %495 = vector.broadcast %493 : f32 to vector<1x256xf32>
    %496 = arith.mulf %495, %494 : vector<1x256xf32>
    %497 = arith.addf %492, %496 : vector<1x256xf32>
    %c2_183 = arith.constant 2 : index
    %c2_184 = arith.constant 2 : index
    %498 = memref.load %arg9[%c2_183, %c2_184] : memref<4x4xf32, #tpu.memory_space<smem>>
    %499 = vector.extract_strided_slice %444 {offsets = [2, 0], sizes = [1, 256], strides = [1, 1]} : vector<4x256xf32> to vector<1x256xf32>
    %500 = vector.broadcast %498 : f32 to vector<1x256xf32>
    %501 = arith.mulf %500, %499 : vector<1x256xf32>
    %502 = arith.addf %497, %501 : vector<1x256xf32>
    %c2_185 = arith.constant 2 : index
    %c3_186 = arith.constant 3 : index
    %503 = memref.load %arg9[%c2_185, %c3_186] : memref<4x4xf32, #tpu.memory_space<smem>>
    %504 = vector.extract_strided_slice %444 {offsets = [3, 0], sizes = [1, 256], strides = [1, 1]} : vector<4x256xf32> to vector<1x256xf32>
    %505 = vector.broadcast %503 : f32 to vector<1x256xf32>
    %506 = arith.mulf %505, %504 : vector<1x256xf32>
    %507 = arith.addf %502, %506 : vector<1x256xf32>
    %c2_187 = arith.constant 2 : index
    %508 = memref.load %arg10[%c2_187] : memref<4xf32, #tpu.memory_space<smem>>
    %509 = vector.broadcast %508 : f32 to vector<1x256xf32>
    %510 = arith.addf %507, %509 : vector<1x256xf32>
    %c3_188 = arith.constant 3 : index
    %c0_189 = arith.constant 0 : index
    %511 = memref.load %arg9[%c3_188, %c0_189] : memref<4x4xf32, #tpu.memory_space<smem>>
    %512 = vector.extract_strided_slice %444 {offsets = [0, 0], sizes = [1, 256], strides = [1, 1]} : vector<4x256xf32> to vector<1x256xf32>
    %513 = vector.broadcast %511 : f32 to vector<1x256xf32>
    %514 = arith.mulf %513, %512 : vector<1x256xf32>
    %c3_190 = arith.constant 3 : index
    %c1_191 = arith.constant 1 : index
    %515 = memref.load %arg9[%c3_190, %c1_191] : memref<4x4xf32, #tpu.memory_space<smem>>
    %516 = vector.extract_strided_slice %444 {offsets = [1, 0], sizes = [1, 256], strides = [1, 1]} : vector<4x256xf32> to vector<1x256xf32>
    %517 = vector.broadcast %515 : f32 to vector<1x256xf32>
    %518 = arith.mulf %517, %516 : vector<1x256xf32>
    %519 = arith.addf %514, %518 : vector<1x256xf32>
    %c3_192 = arith.constant 3 : index
    %c2_193 = arith.constant 2 : index
    %520 = memref.load %arg9[%c3_192, %c2_193] : memref<4x4xf32, #tpu.memory_space<smem>>
    %521 = vector.extract_strided_slice %444 {offsets = [2, 0], sizes = [1, 256], strides = [1, 1]} : vector<4x256xf32> to vector<1x256xf32>
    %522 = vector.broadcast %520 : f32 to vector<1x256xf32>
    %523 = arith.mulf %522, %521 : vector<1x256xf32>
    %524 = arith.addf %519, %523 : vector<1x256xf32>
    %c3_194 = arith.constant 3 : index
    %c3_195 = arith.constant 3 : index
    %525 = memref.load %arg9[%c3_194, %c3_195] : memref<4x4xf32, #tpu.memory_space<smem>>
    %526 = vector.extract_strided_slice %444 {offsets = [3, 0], sizes = [1, 256], strides = [1, 1]} : vector<4x256xf32> to vector<1x256xf32>
    %527 = vector.broadcast %525 : f32 to vector<1x256xf32>
    %528 = arith.mulf %527, %526 : vector<1x256xf32>
    %529 = arith.addf %524, %528 : vector<1x256xf32>
    %c3_196 = arith.constant 3 : index
    %530 = memref.load %arg10[%c3_196] : memref<4xf32, #tpu.memory_space<smem>>
    %531 = vector.broadcast %530 : f32 to vector<1x256xf32>
    %532 = arith.addf %529, %531 : vector<1x256xf32>
    %533 = tpu.concatenate %466, %488, %510, %532 in 0 : vector<1x256xf32>, vector<1x256xf32>, vector<1x256xf32>, vector<1x256xf32> -> vector<4x256xf32>
    %c0_197 = arith.constant 0 : index
    %c0_198 = arith.constant 0 : index
    %c0_199 = arith.constant 0 : index
    %534 = vector.load %arg11[%c0_197, %c0_198, %c0_199] : memref<2x4x256xf32, #tpu.memory_space<vmem>>, vector<1x4x256xf32>
    %535 = vector.shape_cast %534 : vector<1x4x256xf32> to vector<4x256xf32>
    %536 = vector.shape_cast %533 : vector<4x256xf32> to vector<1x4x256xf32>
    tpu.vector_store %arg11[%c0_197, %c0_198, %c0_199], %536 {strides = array<i32>} : memref<2x4x256xf32, #tpu.memory_space<vmem>>, vector<1x4x256xf32>,
    %c1_200 = arith.constant 1 : index
    %c0_201 = arith.constant 0 : index
    %c0_202 = arith.constant 0 : index
    %537 = vector.load %arg0[%c1_200, %c0_201, %c0_202] : memref<2x16x64xf32, #tpu.memory_space<vmem>>, vector<1x16x64xf32>
    %538 = vector.shape_cast %537 : vector<1x16x64xf32> to vector<16x64xf32>
    %c1_203 = arith.constant 1 : index
    %c0_204 = arith.constant 0 : index
    %c0_205 = arith.constant 0 : index
    %539 = vector.load %arg1[%c1_203, %c0_204, %c0_205] : memref<2x24x4xf32, #tpu.memory_space<vmem>>, vector<1x24x4xf32>
    %540 = vector.shape_cast %539 : vector<1x24x4xf32> to vector<24x4xf32>
    %c0_206 = arith.constant 0 : index
    %c0_207 = arith.constant 0 : index
    %541 = memref.load %arg6[%c0_206, %c0_207] : memref<2x24xf32, #tpu.memory_space<smem>>
    %542 = vector.extract_strided_slice %540 {offsets = [0, 0], sizes = [1, 4], strides = [1, 1]} : vector<24x4xf32> to vector<1x4xf32>
    %543 = vector.broadcast %541 : f32 to vector<1x4xf32>
    %544 = arith.mulf %543, %542 : vector<1x4xf32>
    %c0_208 = arith.constant 0 : index
    %c1_209 = arith.constant 1 : index
    %545 = memref.load %arg6[%c0_208, %c1_209] : memref<2x24xf32, #tpu.memory_space<smem>>
    %546 = vector.extract_strided_slice %540 {offsets = [1, 0], sizes = [1, 4], strides = [1, 1]} : vector<24x4xf32> to vector<1x4xf32>
    %547 = vector.broadcast %545 : f32 to vector<1x4xf32>
    %548 = arith.mulf %547, %546 : vector<1x4xf32>
    %549 = arith.addf %544, %548 : vector<1x4xf32>
    %c0_210 = arith.constant 0 : index
    %c2_211 = arith.constant 2 : index
    %550 = memref.load %arg6[%c0_210, %c2_211] : memref<2x24xf32, #tpu.memory_space<smem>>
    %551 = vector.extract_strided_slice %540 {offsets = [2, 0], sizes = [1, 4], strides = [1, 1]} : vector<24x4xf32> to vector<1x4xf32>
    %552 = vector.broadcast %550 : f32 to vector<1x4xf32>
    %553 = arith.mulf %552, %551 : vector<1x4xf32>
    %554 = arith.addf %549, %553 : vector<1x4xf32>
    %c0_212 = arith.constant 0 : index
    %c3_213 = arith.constant 3 : index
    %555 = memref.load %arg6[%c0_212, %c3_213] : memref<2x24xf32, #tpu.memory_space<smem>>
    %556 = vector.extract_strided_slice %540 {offsets = [3, 0], sizes = [1, 4], strides = [1, 1]} : vector<24x4xf32> to vector<1x4xf32>
    %557 = vector.broadcast %555 : f32 to vector<1x4xf32>
    %558 = arith.mulf %557, %556 : vector<1x4xf32>
    %559 = arith.addf %554, %558 : vector<1x4xf32>
    %c0_214 = arith.constant 0 : index
    %c4_215 = arith.constant 4 : index
    %560 = memref.load %arg6[%c0_214, %c4_215] : memref<2x24xf32, #tpu.memory_space<smem>>
    %561 = vector.extract_strided_slice %540 {offsets = [4, 0], sizes = [1, 4], strides = [1, 1]} : vector<24x4xf32> to vector<1x4xf32>
    %562 = vector.broadcast %560 : f32 to vector<1x4xf32>
    %563 = arith.mulf %562, %561 : vector<1x4xf32>
    %564 = arith.addf %559, %563 : vector<1x4xf32>
    %c0_216 = arith.constant 0 : index
    %c5_217 = arith.constant 5 : index
    %565 = memref.load %arg6[%c0_216, %c5_217] : memref<2x24xf32, #tpu.memory_space<smem>>
    %566 = vector.extract_strided_slice %540 {offsets = [5, 0], sizes = [1, 4], strides = [1, 1]} : vector<24x4xf32> to vector<1x4xf32>
    %567 = vector.broadcast %565 : f32 to vector<1x4xf32>
    %568 = arith.mulf %567, %566 : vector<1x4xf32>
    %569 = arith.addf %564, %568 : vector<1x4xf32>
    %c0_218 = arith.constant 0 : index
    %c6_219 = arith.constant 6 : index
    %570 = memref.load %arg6[%c0_218, %c6_219] : memref<2x24xf32, #tpu.memory_space<smem>>
    %571 = vector.extract_strided_slice %540 {offsets = [6, 0], sizes = [1, 4], strides = [1, 1]} : vector<24x4xf32> to vector<1x4xf32>
    %572 = vector.broadcast %570 : f32 to vector<1x4xf32>
    %573 = arith.mulf %572, %571 : vector<1x4xf32>
    %574 = arith.addf %569, %573 : vector<1x4xf32>
    %c0_220 = arith.constant 0 : index
    %c7_221 = arith.constant 7 : index
    %575 = memref.load %arg6[%c0_220, %c7_221] : memref<2x24xf32, #tpu.memory_space<smem>>
    %576 = vector.extract_strided_slice %540 {offsets = [7, 0], sizes = [1, 4], strides = [1, 1]} : vector<24x4xf32> to vector<1x4xf32>
    %577 = vector.broadcast %575 : f32 to vector<1x4xf32>
    %578 = arith.mulf %577, %576 : vector<1x4xf32>
    %579 = arith.addf %574, %578 : vector<1x4xf32>
    %c0_222 = arith.constant 0 : index
    %c8_223 = arith.constant 8 : index
    %580 = memref.load %arg6[%c0_222, %c8_223] : memref<2x24xf32, #tpu.memory_space<smem>>
    %581 = vector.extract_strided_slice %540 {offsets = [8, 0], sizes = [1, 4], strides = [1, 1]} : vector<24x4xf32> to vector<1x4xf32>
    %582 = vector.broadcast %580 : f32 to vector<1x4xf32>
    %583 = arith.mulf %582, %581 : vector<1x4xf32>
    %584 = arith.addf %579, %583 : vector<1x4xf32>
    %c0_224 = arith.constant 0 : index
    %c9_225 = arith.constant 9 : index
    %585 = memref.load %arg6[%c0_224, %c9_225] : memref<2x24xf32, #tpu.memory_space<smem>>
    %586 = vector.extract_strided_slice %540 {offsets = [9, 0], sizes = [1, 4], strides = [1, 1]} : vector<24x4xf32> to vector<1x4xf32>
    %587 = vector.broadcast %585 : f32 to vector<1x4xf32>
    %588 = arith.mulf %587, %586 : vector<1x4xf32>
    %589 = arith.addf %584, %588 : vector<1x4xf32>
    %c0_226 = arith.constant 0 : index
    %c10_227 = arith.constant 10 : index
    %590 = memref.load %arg6[%c0_226, %c10_227] : memref<2x24xf32, #tpu.memory_space<smem>>
    %591 = vector.extract_strided_slice %540 {offsets = [10, 0], sizes = [1, 4], strides = [1, 1]} : vector<24x4xf32> to vector<1x4xf32>
    %592 = vector.broadcast %590 : f32 to vector<1x4xf32>
    %593 = arith.mulf %592, %591 : vector<1x4xf32>
    %594 = arith.addf %589, %593 : vector<1x4xf32>
    %c0_228 = arith.constant 0 : index
    %c11_229 = arith.constant 11 : index
    %595 = memref.load %arg6[%c0_228, %c11_229] : memref<2x24xf32, #tpu.memory_space<smem>>
    %596 = vector.extract_strided_slice %540 {offsets = [11, 0], sizes = [1, 4], strides = [1, 1]} : vector<24x4xf32> to vector<1x4xf32>
    %597 = vector.broadcast %595 : f32 to vector<1x4xf32>
    %598 = arith.mulf %597, %596 : vector<1x4xf32>
    %599 = arith.addf %594, %598 : vector<1x4xf32>
    %c0_230 = arith.constant 0 : index
    %c12_231 = arith.constant 12 : index
    %600 = memref.load %arg6[%c0_230, %c12_231] : memref<2x24xf32, #tpu.memory_space<smem>>
    %601 = vector.extract_strided_slice %540 {offsets = [12, 0], sizes = [1, 4], strides = [1, 1]} : vector<24x4xf32> to vector<1x4xf32>
    %602 = vector.broadcast %600 : f32 to vector<1x4xf32>
    %603 = arith.mulf %602, %601 : vector<1x4xf32>
    %604 = arith.addf %599, %603 : vector<1x4xf32>
    %c0_232 = arith.constant 0 : index
    %c13_233 = arith.constant 13 : index
    %605 = memref.load %arg6[%c0_232, %c13_233] : memref<2x24xf32, #tpu.memory_space<smem>>
    %606 = vector.extract_strided_slice %540 {offsets = [13, 0], sizes = [1, 4], strides = [1, 1]} : vector<24x4xf32> to vector<1x4xf32>
    %607 = vector.broadcast %605 : f32 to vector<1x4xf32>
    %608 = arith.mulf %607, %606 : vector<1x4xf32>
    %609 = arith.addf %604, %608 : vector<1x4xf32>
    %c0_234 = arith.constant 0 : index
    %c14_235 = arith.constant 14 : index
    %610 = memref.load %arg6[%c0_234, %c14_235] : memref<2x24xf32, #tpu.memory_space<smem>>
    %611 = vector.extract_strided_slice %540 {offsets = [14, 0], sizes = [1, 4], strides = [1, 1]} : vector<24x4xf32> to vector<1x4xf32>
    %612 = vector.broadcast %610 : f32 to vector<1x4xf32>
    %613 = arith.mulf %612, %611 : vector<1x4xf32>
    %614 = arith.addf %609, %613 : vector<1x4xf32>
    %c0_236 = arith.constant 0 : index
    %c15_237 = arith.constant 15 : index
    %615 = memref.load %arg6[%c0_236, %c15_237] : memref<2x24xf32, #tpu.memory_space<smem>>
    %616 = vector.extract_strided_slice %540 {offsets = [15, 0], sizes = [1, 4], strides = [1, 1]} : vector<24x4xf32> to vector<1x4xf32>
    %617 = vector.broadcast %615 : f32 to vector<1x4xf32>
    %618 = arith.mulf %617, %616 : vector<1x4xf32>
    %619 = arith.addf %614, %618 : vector<1x4xf32>
    %c0_238 = arith.constant 0 : index
    %c16_239 = arith.constant 16 : index
    %620 = memref.load %arg6[%c0_238, %c16_239] : memref<2x24xf32, #tpu.memory_space<smem>>
    %621 = vector.extract_strided_slice %540 {offsets = [16, 0], sizes = [1, 4], strides = [1, 1]} : vector<24x4xf32> to vector<1x4xf32>
    %622 = vector.broadcast %620 : f32 to vector<1x4xf32>
    %623 = arith.mulf %622, %621 : vector<1x4xf32>
    %624 = arith.addf %619, %623 : vector<1x4xf32>
    %c0_240 = arith.constant 0 : index
    %c17_241 = arith.constant 17 : index
    %625 = memref.load %arg6[%c0_240, %c17_241] : memref<2x24xf32, #tpu.memory_space<smem>>
    %626 = vector.extract_strided_slice %540 {offsets = [17, 0], sizes = [1, 4], strides = [1, 1]} : vector<24x4xf32> to vector<1x4xf32>
    %627 = vector.broadcast %625 : f32 to vector<1x4xf32>
    %628 = arith.mulf %627, %626 : vector<1x4xf32>
    %629 = arith.addf %624, %628 : vector<1x4xf32>
    %c0_242 = arith.constant 0 : index
    %c18_243 = arith.constant 18 : index
    %630 = memref.load %arg6[%c0_242, %c18_243] : memref<2x24xf32, #tpu.memory_space<smem>>
    %631 = vector.extract_strided_slice %540 {offsets = [18, 0], sizes = [1, 4], strides = [1, 1]} : vector<24x4xf32> to vector<1x4xf32>
    %632 = vector.broadcast %630 : f32 to vector<1x4xf32>
    %633 = arith.mulf %632, %631 : vector<1x4xf32>
    %634 = arith.addf %629, %633 : vector<1x4xf32>
    %c0_244 = arith.constant 0 : index
    %c19_245 = arith.constant 19 : index
    %635 = memref.load %arg6[%c0_244, %c19_245] : memref<2x24xf32, #tpu.memory_space<smem>>
    %636 = vector.extract_strided_slice %540 {offsets = [19, 0], sizes = [1, 4], strides = [1, 1]} : vector<24x4xf32> to vector<1x4xf32>
    %637 = vector.broadcast %635 : f32 to vector<1x4xf32>
    %638 = arith.mulf %637, %636 : vector<1x4xf32>
    %639 = arith.addf %634, %638 : vector<1x4xf32>
    %c0_246 = arith.constant 0 : index
    %c20_247 = arith.constant 20 : index
    %640 = memref.load %arg6[%c0_246, %c20_247] : memref<2x24xf32, #tpu.memory_space<smem>>
    %641 = vector.extract_strided_slice %540 {offsets = [20, 0], sizes = [1, 4], strides = [1, 1]} : vector<24x4xf32> to vector<1x4xf32>
    %642 = vector.broadcast %640 : f32 to vector<1x4xf32>
    %643 = arith.mulf %642, %641 : vector<1x4xf32>
    %644 = arith.addf %639, %643 : vector<1x4xf32>
    %c0_248 = arith.constant 0 : index
    %c21_249 = arith.constant 21 : index
    %645 = memref.load %arg6[%c0_248, %c21_249] : memref<2x24xf32, #tpu.memory_space<smem>>
    %646 = vector.extract_strided_slice %540 {offsets = [21, 0], sizes = [1, 4], strides = [1, 1]} : vector<24x4xf32> to vector<1x4xf32>
    %647 = vector.broadcast %645 : f32 to vector<1x4xf32>
    %648 = arith.mulf %647, %646 : vector<1x4xf32>
    %649 = arith.addf %644, %648 : vector<1x4xf32>
    %c0_250 = arith.constant 0 : index
    %c22_251 = arith.constant 22 : index
    %650 = memref.load %arg6[%c0_250, %c22_251] : memref<2x24xf32, #tpu.memory_space<smem>>
    %651 = vector.extract_strided_slice %540 {offsets = [22, 0], sizes = [1, 4], strides = [1, 1]} : vector<24x4xf32> to vector<1x4xf32>
    %652 = vector.broadcast %650 : f32 to vector<1x4xf32>
    %653 = arith.mulf %652, %651 : vector<1x4xf32>
    %654 = arith.addf %649, %653 : vector<1x4xf32>
    %c0_252 = arith.constant 0 : index
    %c23_253 = arith.constant 23 : index
    %655 = memref.load %arg6[%c0_252, %c23_253] : memref<2x24xf32, #tpu.memory_space<smem>>
    %656 = vector.extract_strided_slice %540 {offsets = [23, 0], sizes = [1, 4], strides = [1, 1]} : vector<24x4xf32> to vector<1x4xf32>
    %657 = vector.broadcast %655 : f32 to vector<1x4xf32>
    %658 = arith.mulf %657, %656 : vector<1x4xf32>
    %659 = arith.addf %654, %658 : vector<1x4xf32>
    %c1_254 = arith.constant 1 : index
    %c0_255 = arith.constant 0 : index
    %660 = memref.load %arg6[%c1_254, %c0_255] : memref<2x24xf32, #tpu.memory_space<smem>>
    %661 = vector.extract_strided_slice %540 {offsets = [0, 0], sizes = [1, 4], strides = [1, 1]} : vector<24x4xf32> to vector<1x4xf32>
    %662 = vector.broadcast %660 : f32 to vector<1x4xf32>
    %663 = arith.mulf %662, %661 : vector<1x4xf32>
    %c1_256 = arith.constant 1 : index
    %c1_257 = arith.constant 1 : index
    %664 = memref.load %arg6[%c1_256, %c1_257] : memref<2x24xf32, #tpu.memory_space<smem>>
    %665 = vector.extract_strided_slice %540 {offsets = [1, 0], sizes = [1, 4], strides = [1, 1]} : vector<24x4xf32> to vector<1x4xf32>
    %666 = vector.broadcast %664 : f32 to vector<1x4xf32>
    %667 = arith.mulf %666, %665 : vector<1x4xf32>
    %668 = arith.addf %663, %667 : vector<1x4xf32>
    %c1_258 = arith.constant 1 : index
    %c2_259 = arith.constant 2 : index
    %669 = memref.load %arg6[%c1_258, %c2_259] : memref<2x24xf32, #tpu.memory_space<smem>>
    %670 = vector.extract_strided_slice %540 {offsets = [2, 0], sizes = [1, 4], strides = [1, 1]} : vector<24x4xf32> to vector<1x4xf32>
    %671 = vector.broadcast %669 : f32 to vector<1x4xf32>
    %672 = arith.mulf %671, %670 : vector<1x4xf32>
    %673 = arith.addf %668, %672 : vector<1x4xf32>
    %c1_260 = arith.constant 1 : index
    %c3_261 = arith.constant 3 : index
    %674 = memref.load %arg6[%c1_260, %c3_261] : memref<2x24xf32, #tpu.memory_space<smem>>
    %675 = vector.extract_strided_slice %540 {offsets = [3, 0], sizes = [1, 4], strides = [1, 1]} : vector<24x4xf32> to vector<1x4xf32>
    %676 = vector.broadcast %674 : f32 to vector<1x4xf32>
    %677 = arith.mulf %676, %675 : vector<1x4xf32>
    %678 = arith.addf %673, %677 : vector<1x4xf32>
    %c1_262 = arith.constant 1 : index
    %c4_263 = arith.constant 4 : index
    %679 = memref.load %arg6[%c1_262, %c4_263] : memref<2x24xf32, #tpu.memory_space<smem>>
    %680 = vector.extract_strided_slice %540 {offsets = [4, 0], sizes = [1, 4], strides = [1, 1]} : vector<24x4xf32> to vector<1x4xf32>
    %681 = vector.broadcast %679 : f32 to vector<1x4xf32>
    %682 = arith.mulf %681, %680 : vector<1x4xf32>
    %683 = arith.addf %678, %682 : vector<1x4xf32>
    %c1_264 = arith.constant 1 : index
    %c5_265 = arith.constant 5 : index
    %684 = memref.load %arg6[%c1_264, %c5_265] : memref<2x24xf32, #tpu.memory_space<smem>>
    %685 = vector.extract_strided_slice %540 {offsets = [5, 0], sizes = [1, 4], strides = [1, 1]} : vector<24x4xf32> to vector<1x4xf32>
    %686 = vector.broadcast %684 : f32 to vector<1x4xf32>
    %687 = arith.mulf %686, %685 : vector<1x4xf32>
    %688 = arith.addf %683, %687 : vector<1x4xf32>
    %c1_266 = arith.constant 1 : index
    %c6_267 = arith.constant 6 : index
    %689 = memref.load %arg6[%c1_266, %c6_267] : memref<2x24xf32, #tpu.memory_space<smem>>
    %690 = vector.extract_strided_slice %540 {offsets = [6, 0], sizes = [1, 4], strides = [1, 1]} : vector<24x4xf32> to vector<1x4xf32>
    %691 = vector.broadcast %689 : f32 to vector<1x4xf32>
    %692 = arith.mulf %691, %690 : vector<1x4xf32>
    %693 = arith.addf %688, %692 : vector<1x4xf32>
    %c1_268 = arith.constant 1 : index
    %c7_269 = arith.constant 7 : index
    %694 = memref.load %arg6[%c1_268, %c7_269] : memref<2x24xf32, #tpu.memory_space<smem>>
    %695 = vector.extract_strided_slice %540 {offsets = [7, 0], sizes = [1, 4], strides = [1, 1]} : vector<24x4xf32> to vector<1x4xf32>
    %696 = vector.broadcast %694 : f32 to vector<1x4xf32>
    %697 = arith.mulf %696, %695 : vector<1x4xf32>
    %698 = arith.addf %693, %697 : vector<1x4xf32>
    %c1_270 = arith.constant 1 : index
    %c8_271 = arith.constant 8 : index
    %699 = memref.load %arg6[%c1_270, %c8_271] : memref<2x24xf32, #tpu.memory_space<smem>>
    %700 = vector.extract_strided_slice %540 {offsets = [8, 0], sizes = [1, 4], strides = [1, 1]} : vector<24x4xf32> to vector<1x4xf32>
    %701 = vector.broadcast %699 : f32 to vector<1x4xf32>
    %702 = arith.mulf %701, %700 : vector<1x4xf32>
    %703 = arith.addf %698, %702 : vector<1x4xf32>
    %c1_272 = arith.constant 1 : index
    %c9_273 = arith.constant 9 : index
    %704 = memref.load %arg6[%c1_272, %c9_273] : memref<2x24xf32, #tpu.memory_space<smem>>
    %705 = vector.extract_strided_slice %540 {offsets = [9, 0], sizes = [1, 4], strides = [1, 1]} : vector<24x4xf32> to vector<1x4xf32>
    %706 = vector.broadcast %704 : f32 to vector<1x4xf32>
    %707 = arith.mulf %706, %705 : vector<1x4xf32>
    %708 = arith.addf %703, %707 : vector<1x4xf32>
    %c1_274 = arith.constant 1 : index
    %c10_275 = arith.constant 10 : index
    %709 = memref.load %arg6[%c1_274, %c10_275] : memref<2x24xf32, #tpu.memory_space<smem>>
    %710 = vector.extract_strided_slice %540 {offsets = [10, 0], sizes = [1, 4], strides = [1, 1]} : vector<24x4xf32> to vector<1x4xf32>
    %711 = vector.broadcast %709 : f32 to vector<1x4xf32>
    %712 = arith.mulf %711, %710 : vector<1x4xf32>
    %713 = arith.addf %708, %712 : vector<1x4xf32>
    %c1_276 = arith.constant 1 : index
    %c11_277 = arith.constant 11 : index
    %714 = memref.load %arg6[%c1_276, %c11_277] : memref<2x24xf32, #tpu.memory_space<smem>>
    %715 = vector.extract_strided_slice %540 {offsets = [11, 0], sizes = [1, 4], strides = [1, 1]} : vector<24x4xf32> to vector<1x4xf32>
    %716 = vector.broadcast %714 : f32 to vector<1x4xf32>
    %717 = arith.mulf %716, %715 : vector<1x4xf32>
    %718 = arith.addf %713, %717 : vector<1x4xf32>
    %c1_278 = arith.constant 1 : index
    %c12_279 = arith.constant 12 : index
    %719 = memref.load %arg6[%c1_278, %c12_279] : memref<2x24xf32, #tpu.memory_space<smem>>
    %720 = vector.extract_strided_slice %540 {offsets = [12, 0], sizes = [1, 4], strides = [1, 1]} : vector<24x4xf32> to vector<1x4xf32>
    %721 = vector.broadcast %719 : f32 to vector<1x4xf32>
    %722 = arith.mulf %721, %720 : vector<1x4xf32>
    %723 = arith.addf %718, %722 : vector<1x4xf32>
    %c1_280 = arith.constant 1 : index
    %c13_281 = arith.constant 13 : index
    %724 = memref.load %arg6[%c1_280, %c13_281] : memref<2x24xf32, #tpu.memory_space<smem>>
    %725 = vector.extract_strided_slice %540 {offsets = [13, 0], sizes = [1, 4], strides = [1, 1]} : vector<24x4xf32> to vector<1x4xf32>
    %726 = vector.broadcast %724 : f32 to vector<1x4xf32>
    %727 = arith.mulf %726, %725 : vector<1x4xf32>
    %728 = arith.addf %723, %727 : vector<1x4xf32>
    %c1_282 = arith.constant 1 : index
    %c14_283 = arith.constant 14 : index
    %729 = memref.load %arg6[%c1_282, %c14_283] : memref<2x24xf32, #tpu.memory_space<smem>>
    %730 = vector.extract_strided_slice %540 {offsets = [14, 0], sizes = [1, 4], strides = [1, 1]} : vector<24x4xf32> to vector<1x4xf32>
    %731 = vector.broadcast %729 : f32 to vector<1x4xf32>
    %732 = arith.mulf %731, %730 : vector<1x4xf32>
    %733 = arith.addf %728, %732 : vector<1x4xf32>
    %c1_284 = arith.constant 1 : index
    %c15_285 = arith.constant 15 : index
    %734 = memref.load %arg6[%c1_284, %c15_285] : memref<2x24xf32, #tpu.memory_space<smem>>
    %735 = vector.extract_strided_slice %540 {offsets = [15, 0], sizes = [1, 4], strides = [1, 1]} : vector<24x4xf32> to vector<1x4xf32>
    %736 = vector.broadcast %734 : f32 to vector<1x4xf32>
    %737 = arith.mulf %736, %735 : vector<1x4xf32>
    %738 = arith.addf %733, %737 : vector<1x4xf32>
    %c1_286 = arith.constant 1 : index
    %c16_287 = arith.constant 16 : index
    %739 = memref.load %arg6[%c1_286, %c16_287] : memref<2x24xf32, #tpu.memory_space<smem>>
    %740 = vector.extract_strided_slice %540 {offsets = [16, 0], sizes = [1, 4], strides = [1, 1]} : vector<24x4xf32> to vector<1x4xf32>
    %741 = vector.broadcast %739 : f32 to vector<1x4xf32>
    %742 = arith.mulf %741, %740 : vector<1x4xf32>
    %743 = arith.addf %738, %742 : vector<1x4xf32>
    %c1_288 = arith.constant 1 : index
    %c17_289 = arith.constant 17 : index
    %744 = memref.load %arg6[%c1_288, %c17_289] : memref<2x24xf32, #tpu.memory_space<smem>>
    %745 = vector.extract_strided_slice %540 {offsets = [17, 0], sizes = [1, 4], strides = [1, 1]} : vector<24x4xf32> to vector<1x4xf32>
    %746 = vector.broadcast %744 : f32 to vector<1x4xf32>
    %747 = arith.mulf %746, %745 : vector<1x4xf32>
    %748 = arith.addf %743, %747 : vector<1x4xf32>
    %c1_290 = arith.constant 1 : index
    %c18_291 = arith.constant 18 : index
    %749 = memref.load %arg6[%c1_290, %c18_291] : memref<2x24xf32, #tpu.memory_space<smem>>
    %750 = vector.extract_strided_slice %540 {offsets = [18, 0], sizes = [1, 4], strides = [1, 1]} : vector<24x4xf32> to vector<1x4xf32>
    %751 = vector.broadcast %749 : f32 to vector<1x4xf32>
    %752 = arith.mulf %751, %750 : vector<1x4xf32>
    %753 = arith.addf %748, %752 : vector<1x4xf32>
    %c1_292 = arith.constant 1 : index
    %c19_293 = arith.constant 19 : index
    %754 = memref.load %arg6[%c1_292, %c19_293] : memref<2x24xf32, #tpu.memory_space<smem>>
    %755 = vector.extract_strided_slice %540 {offsets = [19, 0], sizes = [1, 4], strides = [1, 1]} : vector<24x4xf32> to vector<1x4xf32>
    %756 = vector.broadcast %754 : f32 to vector<1x4xf32>
    %757 = arith.mulf %756, %755 : vector<1x4xf32>
    %758 = arith.addf %753, %757 : vector<1x4xf32>
    %c1_294 = arith.constant 1 : index
    %c20_295 = arith.constant 20 : index
    %759 = memref.load %arg6[%c1_294, %c20_295] : memref<2x24xf32, #tpu.memory_space<smem>>
    %760 = vector.extract_strided_slice %540 {offsets = [20, 0], sizes = [1, 4], strides = [1, 1]} : vector<24x4xf32> to vector<1x4xf32>
    %761 = vector.broadcast %759 : f32 to vector<1x4xf32>
    %762 = arith.mulf %761, %760 : vector<1x4xf32>
    %763 = arith.addf %758, %762 : vector<1x4xf32>
    %c1_296 = arith.constant 1 : index
    %c21_297 = arith.constant 21 : index
    %764 = memref.load %arg6[%c1_296, %c21_297] : memref<2x24xf32, #tpu.memory_space<smem>>
    %765 = vector.extract_strided_slice %540 {offsets = [21, 0], sizes = [1, 4], strides = [1, 1]} : vector<24x4xf32> to vector<1x4xf32>
    %766 = vector.broadcast %764 : f32 to vector<1x4xf32>
    %767 = arith.mulf %766, %765 : vector<1x4xf32>
    %768 = arith.addf %763, %767 : vector<1x4xf32>
    %c1_298 = arith.constant 1 : index
    %c22_299 = arith.constant 22 : index
    %769 = memref.load %arg6[%c1_298, %c22_299] : memref<2x24xf32, #tpu.memory_space<smem>>
    %770 = vector.extract_strided_slice %540 {offsets = [22, 0], sizes = [1, 4], strides = [1, 1]} : vector<24x4xf32> to vector<1x4xf32>
    %771 = vector.broadcast %769 : f32 to vector<1x4xf32>
    %772 = arith.mulf %771, %770 : vector<1x4xf32>
    %773 = arith.addf %768, %772 : vector<1x4xf32>
    %c1_300 = arith.constant 1 : index
    %c23_301 = arith.constant 23 : index
    %774 = memref.load %arg6[%c1_300, %c23_301] : memref<2x24xf32, #tpu.memory_space<smem>>
    %775 = vector.extract_strided_slice %540 {offsets = [23, 0], sizes = [1, 4], strides = [1, 1]} : vector<24x4xf32> to vector<1x4xf32>
    %776 = vector.broadcast %774 : f32 to vector<1x4xf32>
    %777 = arith.mulf %776, %775 : vector<1x4xf32>
    %778 = arith.addf %773, %777 : vector<1x4xf32>
    %779 = tpu.concatenate %659, %778 in 0 : vector<1x4xf32>, vector<1x4xf32> -> vector<2x4xf32>
    %780 = arith.truncf %779 : vector<2x4xf32> to vector<2x4xbf16>
    %781 = arith.extf %780 : vector<2x4xbf16> to vector<2x4xf32>
    %782 = arith.subf %779, %781 : vector<2x4xf32>
    %cst_302 = arith.constant dense<0.000000e+00> : vector<2x64xf32>
    %783 = tpu.matmul %781, %0, %cst_302 {dimension_numbers = #tpu.dot_dimension_numbers<[1], [0], [0], [1], [0, 0, 1, 1], [], []>} : vector<2x4xf32>, vector<4x64xf32>, vector<2x64xf32> -> vector<2x64xf32>
    %cst_303 = arith.constant dense<0.000000e+00> : vector<2x64xf32>
    %784 = tpu.matmul %782, %0, %cst_303 {dimension_numbers = #tpu.dot_dimension_numbers<[1], [0], [0], [1], [0, 0, 1, 1], [], []>} : vector<2x4xf32>, vector<4x64xf32>, vector<2x64xf32> -> vector<2x64xf32>
    %785 = arith.addf %783, %784 : vector<2x64xf32>
    %c0_304 = arith.constant 0 : index
    %c0_305 = arith.constant 0 : index
    %786 = memref.load %arg5[%c0_304, %c0_305] : memref<2x16xf32, #tpu.memory_space<smem>>
    %787 = vector.extract_strided_slice %538 {offsets = [0, 0], sizes = [1, 64], strides = [1, 1]} : vector<16x64xf32> to vector<1x64xf32>
    %788 = vector.broadcast %786 : f32 to vector<1x64xf32>
    %789 = arith.mulf %788, %787 : vector<1x64xf32>
    %c0_306 = arith.constant 0 : index
    %c1_307 = arith.constant 1 : index
    %790 = memref.load %arg5[%c0_306, %c1_307] : memref<2x16xf32, #tpu.memory_space<smem>>
    %791 = vector.extract_strided_slice %538 {offsets = [1, 0], sizes = [1, 64], strides = [1, 1]} : vector<16x64xf32> to vector<1x64xf32>
    %792 = vector.broadcast %790 : f32 to vector<1x64xf32>
    %793 = arith.mulf %792, %791 : vector<1x64xf32>
    %794 = arith.addf %789, %793 : vector<1x64xf32>
    %c0_308 = arith.constant 0 : index
    %c2_309 = arith.constant 2 : index
    %795 = memref.load %arg5[%c0_308, %c2_309] : memref<2x16xf32, #tpu.memory_space<smem>>
    %796 = vector.extract_strided_slice %538 {offsets = [2, 0], sizes = [1, 64], strides = [1, 1]} : vector<16x64xf32> to vector<1x64xf32>
    %797 = vector.broadcast %795 : f32 to vector<1x64xf32>
    %798 = arith.mulf %797, %796 : vector<1x64xf32>
    %799 = arith.addf %794, %798 : vector<1x64xf32>
    %c0_310 = arith.constant 0 : index
    %c3_311 = arith.constant 3 : index
    %800 = memref.load %arg5[%c0_310, %c3_311] : memref<2x16xf32, #tpu.memory_space<smem>>
    %801 = vector.extract_strided_slice %538 {offsets = [3, 0], sizes = [1, 64], strides = [1, 1]} : vector<16x64xf32> to vector<1x64xf32>
    %802 = vector.broadcast %800 : f32 to vector<1x64xf32>
    %803 = arith.mulf %802, %801 : vector<1x64xf32>
    %804 = arith.addf %799, %803 : vector<1x64xf32>
    %c0_312 = arith.constant 0 : index
    %c4_313 = arith.constant 4 : index
    %805 = memref.load %arg5[%c0_312, %c4_313] : memref<2x16xf32, #tpu.memory_space<smem>>
    %806 = vector.extract_strided_slice %538 {offsets = [4, 0], sizes = [1, 64], strides = [1, 1]} : vector<16x64xf32> to vector<1x64xf32>
    %807 = vector.broadcast %805 : f32 to vector<1x64xf32>
    %808 = arith.mulf %807, %806 : vector<1x64xf32>
    %809 = arith.addf %804, %808 : vector<1x64xf32>
    %c0_314 = arith.constant 0 : index
    %c5_315 = arith.constant 5 : index
    %810 = memref.load %arg5[%c0_314, %c5_315] : memref<2x16xf32, #tpu.memory_space<smem>>
    %811 = vector.extract_strided_slice %538 {offsets = [5, 0], sizes = [1, 64], strides = [1, 1]} : vector<16x64xf32> to vector<1x64xf32>
    %812 = vector.broadcast %810 : f32 to vector<1x64xf32>
    %813 = arith.mulf %812, %811 : vector<1x64xf32>
    %814 = arith.addf %809, %813 : vector<1x64xf32>
    %c0_316 = arith.constant 0 : index
    %c6_317 = arith.constant 6 : index
    %815 = memref.load %arg5[%c0_316, %c6_317] : memref<2x16xf32, #tpu.memory_space<smem>>
    %816 = vector.extract_strided_slice %538 {offsets = [6, 0], sizes = [1, 64], strides = [1, 1]} : vector<16x64xf32> to vector<1x64xf32>
    %817 = vector.broadcast %815 : f32 to vector<1x64xf32>
    %818 = arith.mulf %817, %816 : vector<1x64xf32>
    %819 = arith.addf %814, %818 : vector<1x64xf32>
    %c0_318 = arith.constant 0 : index
    %c7_319 = arith.constant 7 : index
    %820 = memref.load %arg5[%c0_318, %c7_319] : memref<2x16xf32, #tpu.memory_space<smem>>
    %821 = vector.extract_strided_slice %538 {offsets = [7, 0], sizes = [1, 64], strides = [1, 1]} : vector<16x64xf32> to vector<1x64xf32>
    %822 = vector.broadcast %820 : f32 to vector<1x64xf32>
    %823 = arith.mulf %822, %821 : vector<1x64xf32>
    %824 = arith.addf %819, %823 : vector<1x64xf32>
    %c0_320 = arith.constant 0 : index
    %c8_321 = arith.constant 8 : index
    %825 = memref.load %arg5[%c0_320, %c8_321] : memref<2x16xf32, #tpu.memory_space<smem>>
    %826 = vector.extract_strided_slice %538 {offsets = [8, 0], sizes = [1, 64], strides = [1, 1]} : vector<16x64xf32> to vector<1x64xf32>
    %827 = vector.broadcast %825 : f32 to vector<1x64xf32>
    %828 = arith.mulf %827, %826 : vector<1x64xf32>
    %829 = arith.addf %824, %828 : vector<1x64xf32>
    %c0_322 = arith.constant 0 : index
    %c9_323 = arith.constant 9 : index
    %830 = memref.load %arg5[%c0_322, %c9_323] : memref<2x16xf32, #tpu.memory_space<smem>>
    %831 = vector.extract_strided_slice %538 {offsets = [9, 0], sizes = [1, 64], strides = [1, 1]} : vector<16x64xf32> to vector<1x64xf32>
    %832 = vector.broadcast %830 : f32 to vector<1x64xf32>
    %833 = arith.mulf %832, %831 : vector<1x64xf32>
    %834 = arith.addf %829, %833 : vector<1x64xf32>
    %c0_324 = arith.constant 0 : index
    %c10_325 = arith.constant 10 : index
    %835 = memref.load %arg5[%c0_324, %c10_325] : memref<2x16xf32, #tpu.memory_space<smem>>
    %836 = vector.extract_strided_slice %538 {offsets = [10, 0], sizes = [1, 64], strides = [1, 1]} : vector<16x64xf32> to vector<1x64xf32>
    %837 = vector.broadcast %835 : f32 to vector<1x64xf32>
    %838 = arith.mulf %837, %836 : vector<1x64xf32>
    %839 = arith.addf %834, %838 : vector<1x64xf32>
    %c0_326 = arith.constant 0 : index
    %c11_327 = arith.constant 11 : index
    %840 = memref.load %arg5[%c0_326, %c11_327] : memref<2x16xf32, #tpu.memory_space<smem>>
    %841 = vector.extract_strided_slice %538 {offsets = [11, 0], sizes = [1, 64], strides = [1, 1]} : vector<16x64xf32> to vector<1x64xf32>
    %842 = vector.broadcast %840 : f32 to vector<1x64xf32>
    %843 = arith.mulf %842, %841 : vector<1x64xf32>
    %844 = arith.addf %839, %843 : vector<1x64xf32>
    %c0_328 = arith.constant 0 : index
    %c12_329 = arith.constant 12 : index
    %845 = memref.load %arg5[%c0_328, %c12_329] : memref<2x16xf32, #tpu.memory_space<smem>>
    %846 = vector.extract_strided_slice %538 {offsets = [12, 0], sizes = [1, 64], strides = [1, 1]} : vector<16x64xf32> to vector<1x64xf32>
    %847 = vector.broadcast %845 : f32 to vector<1x64xf32>
    %848 = arith.mulf %847, %846 : vector<1x64xf32>
    %849 = arith.addf %844, %848 : vector<1x64xf32>
    %c0_330 = arith.constant 0 : index
    %c13_331 = arith.constant 13 : index
    %850 = memref.load %arg5[%c0_330, %c13_331] : memref<2x16xf32, #tpu.memory_space<smem>>
    %851 = vector.extract_strided_slice %538 {offsets = [13, 0], sizes = [1, 64], strides = [1, 1]} : vector<16x64xf32> to vector<1x64xf32>
    %852 = vector.broadcast %850 : f32 to vector<1x64xf32>
    %853 = arith.mulf %852, %851 : vector<1x64xf32>
    %854 = arith.addf %849, %853 : vector<1x64xf32>
    %c0_332 = arith.constant 0 : index
    %c14_333 = arith.constant 14 : index
    %855 = memref.load %arg5[%c0_332, %c14_333] : memref<2x16xf32, #tpu.memory_space<smem>>
    %856 = vector.extract_strided_slice %538 {offsets = [14, 0], sizes = [1, 64], strides = [1, 1]} : vector<16x64xf32> to vector<1x64xf32>
    %857 = vector.broadcast %855 : f32 to vector<1x64xf32>
    %858 = arith.mulf %857, %856 : vector<1x64xf32>
    %859 = arith.addf %854, %858 : vector<1x64xf32>
    %c0_334 = arith.constant 0 : index
    %c15_335 = arith.constant 15 : index
    %860 = memref.load %arg5[%c0_334, %c15_335] : memref<2x16xf32, #tpu.memory_space<smem>>
    %861 = vector.extract_strided_slice %538 {offsets = [15, 0], sizes = [1, 64], strides = [1, 1]} : vector<16x64xf32> to vector<1x64xf32>
    %862 = vector.broadcast %860 : f32 to vector<1x64xf32>
    %863 = arith.mulf %862, %861 : vector<1x64xf32>
    %864 = arith.addf %859, %863 : vector<1x64xf32>
    %865 = vector.extract_strided_slice %785 {offsets = [0, 0], sizes = [1, 64], strides = [1, 1]} : vector<2x64xf32> to vector<1x64xf32>
    %866 = arith.addf %864, %865 : vector<1x64xf32>
    %cst_336 = arith.constant 0.000000e+00 : f32
    %867 = vector.broadcast %cst_336 : f32 to vector<1x64xf32>
    %868 = arith.maximumf %866, %867 : vector<1x64xf32>
    %c0_337 = arith.constant 0 : index
    %869 = memref.load %arg7[%c0_337] : memref<2xf32, #tpu.memory_space<smem>>
    %870 = vector.broadcast %869 : f32 to vector<1x64xf32>
    %871 = arith.mulf %870, %868 : vector<1x64xf32>
    %c1_338 = arith.constant 1 : index
    %c0_339 = arith.constant 0 : index
    %872 = memref.load %arg5[%c1_338, %c0_339] : memref<2x16xf32, #tpu.memory_space<smem>>
    %873 = vector.extract_strided_slice %538 {offsets = [0, 0], sizes = [1, 64], strides = [1, 1]} : vector<16x64xf32> to vector<1x64xf32>
    %874 = vector.broadcast %872 : f32 to vector<1x64xf32>
    %875 = arith.mulf %874, %873 : vector<1x64xf32>
    %c1_340 = arith.constant 1 : index
    %c1_341 = arith.constant 1 : index
    %876 = memref.load %arg5[%c1_340, %c1_341] : memref<2x16xf32, #tpu.memory_space<smem>>
    %877 = vector.extract_strided_slice %538 {offsets = [1, 0], sizes = [1, 64], strides = [1, 1]} : vector<16x64xf32> to vector<1x64xf32>
    %878 = vector.broadcast %876 : f32 to vector<1x64xf32>
    %879 = arith.mulf %878, %877 : vector<1x64xf32>
    %880 = arith.addf %875, %879 : vector<1x64xf32>
    %c1_342 = arith.constant 1 : index
    %c2_343 = arith.constant 2 : index
    %881 = memref.load %arg5[%c1_342, %c2_343] : memref<2x16xf32, #tpu.memory_space<smem>>
    %882 = vector.extract_strided_slice %538 {offsets = [2, 0], sizes = [1, 64], strides = [1, 1]} : vector<16x64xf32> to vector<1x64xf32>
    %883 = vector.broadcast %881 : f32 to vector<1x64xf32>
    %884 = arith.mulf %883, %882 : vector<1x64xf32>
    %885 = arith.addf %880, %884 : vector<1x64xf32>
    %c1_344 = arith.constant 1 : index
    %c3_345 = arith.constant 3 : index
    %886 = memref.load %arg5[%c1_344, %c3_345] : memref<2x16xf32, #tpu.memory_space<smem>>
    %887 = vector.extract_strided_slice %538 {offsets = [3, 0], sizes = [1, 64], strides = [1, 1]} : vector<16x64xf32> to vector<1x64xf32>
    %888 = vector.broadcast %886 : f32 to vector<1x64xf32>
    %889 = arith.mulf %888, %887 : vector<1x64xf32>
    %890 = arith.addf %885, %889 : vector<1x64xf32>
    %c1_346 = arith.constant 1 : index
    %c4_347 = arith.constant 4 : index
    %891 = memref.load %arg5[%c1_346, %c4_347] : memref<2x16xf32, #tpu.memory_space<smem>>
    %892 = vector.extract_strided_slice %538 {offsets = [4, 0], sizes = [1, 64], strides = [1, 1]} : vector<16x64xf32> to vector<1x64xf32>
    %893 = vector.broadcast %891 : f32 to vector<1x64xf32>
    %894 = arith.mulf %893, %892 : vector<1x64xf32>
    %895 = arith.addf %890, %894 : vector<1x64xf32>
    %c1_348 = arith.constant 1 : index
    %c5_349 = arith.constant 5 : index
    %896 = memref.load %arg5[%c1_348, %c5_349] : memref<2x16xf32, #tpu.memory_space<smem>>
    %897 = vector.extract_strided_slice %538 {offsets = [5, 0], sizes = [1, 64], strides = [1, 1]} : vector<16x64xf32> to vector<1x64xf32>
    %898 = vector.broadcast %896 : f32 to vector<1x64xf32>
    %899 = arith.mulf %898, %897 : vector<1x64xf32>
    %900 = arith.addf %895, %899 : vector<1x64xf32>
    %c1_350 = arith.constant 1 : index
    %c6_351 = arith.constant 6 : index
    %901 = memref.load %arg5[%c1_350, %c6_351] : memref<2x16xf32, #tpu.memory_space<smem>>
    %902 = vector.extract_strided_slice %538 {offsets = [6, 0], sizes = [1, 64], strides = [1, 1]} : vector<16x64xf32> to vector<1x64xf32>
    %903 = vector.broadcast %901 : f32 to vector<1x64xf32>
    %904 = arith.mulf %903, %902 : vector<1x64xf32>
    %905 = arith.addf %900, %904 : vector<1x64xf32>
    %c1_352 = arith.constant 1 : index
    %c7_353 = arith.constant 7 : index
    %906 = memref.load %arg5[%c1_352, %c7_353] : memref<2x16xf32, #tpu.memory_space<smem>>
    %907 = vector.extract_strided_slice %538 {offsets = [7, 0], sizes = [1, 64], strides = [1, 1]} : vector<16x64xf32> to vector<1x64xf32>
    %908 = vector.broadcast %906 : f32 to vector<1x64xf32>
    %909 = arith.mulf %908, %907 : vector<1x64xf32>
    %910 = arith.addf %905, %909 : vector<1x64xf32>
    %c1_354 = arith.constant 1 : index
    %c8_355 = arith.constant 8 : index
    %911 = memref.load %arg5[%c1_354, %c8_355] : memref<2x16xf32, #tpu.memory_space<smem>>
    %912 = vector.extract_strided_slice %538 {offsets = [8, 0], sizes = [1, 64], strides = [1, 1]} : vector<16x64xf32> to vector<1x64xf32>
    %913 = vector.broadcast %911 : f32 to vector<1x64xf32>
    %914 = arith.mulf %913, %912 : vector<1x64xf32>
    %915 = arith.addf %910, %914 : vector<1x64xf32>
    %c1_356 = arith.constant 1 : index
    %c9_357 = arith.constant 9 : index
    %916 = memref.load %arg5[%c1_356, %c9_357] : memref<2x16xf32, #tpu.memory_space<smem>>
    %917 = vector.extract_strided_slice %538 {offsets = [9, 0], sizes = [1, 64], strides = [1, 1]} : vector<16x64xf32> to vector<1x64xf32>
    %918 = vector.broadcast %916 : f32 to vector<1x64xf32>
    %919 = arith.mulf %918, %917 : vector<1x64xf32>
    %920 = arith.addf %915, %919 : vector<1x64xf32>
    %c1_358 = arith.constant 1 : index
    %c10_359 = arith.constant 10 : index
    %921 = memref.load %arg5[%c1_358, %c10_359] : memref<2x16xf32, #tpu.memory_space<smem>>
    %922 = vector.extract_strided_slice %538 {offsets = [10, 0], sizes = [1, 64], strides = [1, 1]} : vector<16x64xf32> to vector<1x64xf32>
    %923 = vector.broadcast %921 : f32 to vector<1x64xf32>
    %924 = arith.mulf %923, %922 : vector<1x64xf32>
    %925 = arith.addf %920, %924 : vector<1x64xf32>
    %c1_360 = arith.constant 1 : index
    %c11_361 = arith.constant 11 : index
    %926 = memref.load %arg5[%c1_360, %c11_361] : memref<2x16xf32, #tpu.memory_space<smem>>
    %927 = vector.extract_strided_slice %538 {offsets = [11, 0], sizes = [1, 64], strides = [1, 1]} : vector<16x64xf32> to vector<1x64xf32>
    %928 = vector.broadcast %926 : f32 to vector<1x64xf32>
    %929 = arith.mulf %928, %927 : vector<1x64xf32>
    %930 = arith.addf %925, %929 : vector<1x64xf32>
    %c1_362 = arith.constant 1 : index
    %c12_363 = arith.constant 12 : index
    %931 = memref.load %arg5[%c1_362, %c12_363] : memref<2x16xf32, #tpu.memory_space<smem>>
    %932 = vector.extract_strided_slice %538 {offsets = [12, 0], sizes = [1, 64], strides = [1, 1]} : vector<16x64xf32> to vector<1x64xf32>
    %933 = vector.broadcast %931 : f32 to vector<1x64xf32>
    %934 = arith.mulf %933, %932 : vector<1x64xf32>
    %935 = arith.addf %930, %934 : vector<1x64xf32>
    %c1_364 = arith.constant 1 : index
    %c13_365 = arith.constant 13 : index
    %936 = memref.load %arg5[%c1_364, %c13_365] : memref<2x16xf32, #tpu.memory_space<smem>>
    %937 = vector.extract_strided_slice %538 {offsets = [13, 0], sizes = [1, 64], strides = [1, 1]} : vector<16x64xf32> to vector<1x64xf32>
    %938 = vector.broadcast %936 : f32 to vector<1x64xf32>
    %939 = arith.mulf %938, %937 : vector<1x64xf32>
    %940 = arith.addf %935, %939 : vector<1x64xf32>
    %c1_366 = arith.constant 1 : index
    %c14_367 = arith.constant 14 : index
    %941 = memref.load %arg5[%c1_366, %c14_367] : memref<2x16xf32, #tpu.memory_space<smem>>
    %942 = vector.extract_strided_slice %538 {offsets = [14, 0], sizes = [1, 64], strides = [1, 1]} : vector<16x64xf32> to vector<1x64xf32>
    %943 = vector.broadcast %941 : f32 to vector<1x64xf32>
    %944 = arith.mulf %943, %942 : vector<1x64xf32>
    %945 = arith.addf %940, %944 : vector<1x64xf32>
    %c1_368 = arith.constant 1 : index
    %c15_369 = arith.constant 15 : index
    %946 = memref.load %arg5[%c1_368, %c15_369] : memref<2x16xf32, #tpu.memory_space<smem>>
    %947 = vector.extract_strided_slice %538 {offsets = [15, 0], sizes = [1, 64], strides = [1, 1]} : vector<16x64xf32> to vector<1x64xf32>
    %948 = vector.broadcast %946 : f32 to vector<1x64xf32>
    %949 = arith.mulf %948, %947 : vector<1x64xf32>
    %950 = arith.addf %945, %949 : vector<1x64xf32>
    %951 = vector.extract_strided_slice %785 {offsets = [1, 0], sizes = [1, 64], strides = [1, 1]} : vector<2x64xf32> to vector<1x64xf32>
    %952 = arith.addf %950, %951 : vector<1x64xf32>
    %cst_370 = arith.constant 0.000000e+00 : f32
    %953 = vector.broadcast %cst_370 : f32 to vector<1x64xf32>
    %954 = arith.maximumf %952, %953 : vector<1x64xf32>
    %c1_371 = arith.constant 1 : index
    %955 = memref.load %arg7[%c1_371] : memref<2xf32, #tpu.memory_space<smem>>
    %956 = vector.broadcast %955 : f32 to vector<1x64xf32>
    %957 = arith.mulf %956, %954 : vector<1x64xf32>
    %958 = arith.addf %871, %957 : vector<1x64xf32>
    %c0_372 = arith.constant 0 : index
    %959 = memref.load %arg8[%c0_372] : memref<1xf32, #tpu.memory_space<smem>>
    %960 = vector.broadcast %959 : f32 to vector<1x64xf32>
    %961 = arith.addf %958, %960 : vector<1x64xf32>
    %962 = arith.negf %961 : vector<1x64xf32>
    %963 = math.exp %962 : vector<1x64xf32>
    %cst_373 = arith.constant 1.000000e+00 : f32
    %964 = vector.broadcast %cst_373 : f32 to vector<1x64xf32>
    %965 = arith.addf %964, %963 : vector<1x64xf32>
    %966 = arith.divf %964, %965 : vector<1x64xf32>
    %967 = arith.truncf %966 : vector<1x64xf32> to vector<1x64xbf16>
    %968 = arith.extf %967 : vector<1x64xbf16> to vector<1x64xf32>
    %969 = arith.subf %966, %968 : vector<1x64xf32>
    %cst_374 = arith.constant dense<0.000000e+00> : vector<1x256xf32>
    %970 = tpu.matmul %968, %1, %cst_374 {dimension_numbers = #tpu.dot_dimension_numbers<[1], [0], [0], [1], [0, 0, 1, 1], [], []>} : vector<1x64xf32>, vector<64x256xf32>, vector<1x256xf32> -> vector<1x256xf32>
    %cst_375 = arith.constant dense<0.000000e+00> : vector<1x256xf32>
    %971 = tpu.matmul %969, %1, %cst_375 {dimension_numbers = #tpu.dot_dimension_numbers<[1], [0], [0], [1], [0, 0, 1, 1], [], []>} : vector<1x64xf32>, vector<64x256xf32>, vector<1x256xf32> -> vector<1x256xf32>
    %972 = arith.addf %970, %971 : vector<1x256xf32>
    %c1_376 = arith.constant 1 : index
    %c0_377 = arith.constant 0 : index
    %c0_378 = arith.constant 0 : index
    %973 = vector.load %arg12[%c1_376, %c0_377, %c0_378] : memref<2x1x256xf32, #tpu.memory_space<vmem>>, vector<1x1x256xf32>
    %974 = vector.shape_cast %973 : vector<1x1x256xf32> to vector<1x256xf32>
    %975 = vector.shape_cast %972 : vector<1x256xf32> to vector<1x1x256xf32>
    tpu.vector_store %arg12[%c1_376, %c0_377, %c0_378], %975 {strides = array<i32>} : memref<2x1x256xf32, #tpu.memory_space<vmem>>, vector<1x1x256xf32>,
    %c1_379 = arith.constant 1 : index
    %c0_380 = arith.constant 0 : index
    %c0_381 = arith.constant 0 : index
    %976 = vector.load %arg2[%c1_379, %c0_380, %c0_381] : memref<2x4x256xf32, #tpu.memory_space<vmem>>, vector<1x4x256xf32>
    %977 = vector.shape_cast %976 : vector<1x4x256xf32> to vector<4x256xf32>
    %978 = vector.broadcast %972 : vector<1x256xf32> to vector<4x256xf32>
    %979 = arith.mulf %978, %977 : vector<4x256xf32>
    %c0_382 = arith.constant 0 : index
    %c0_383 = arith.constant 0 : index
    %980 = memref.load %arg9[%c0_382, %c0_383] : memref<4x4xf32, #tpu.memory_space<smem>>
    %981 = vector.extract_strided_slice %979 {offsets = [0, 0], sizes = [1, 256], strides = [1, 1]} : vector<4x256xf32> to vector<1x256xf32>
    %982 = vector.broadcast %980 : f32 to vector<1x256xf32>
    %983 = arith.mulf %982, %981 : vector<1x256xf32>
    %c0_384 = arith.constant 0 : index
    %c1_385 = arith.constant 1 : index
    %984 = memref.load %arg9[%c0_384, %c1_385] : memref<4x4xf32, #tpu.memory_space<smem>>
    %985 = vector.extract_strided_slice %979 {offsets = [1, 0], sizes = [1, 256], strides = [1, 1]} : vector<4x256xf32> to vector<1x256xf32>
    %986 = vector.broadcast %984 : f32 to vector<1x256xf32>
    %987 = arith.mulf %986, %985 : vector<1x256xf32>
    %988 = arith.addf %983, %987 : vector<1x256xf32>
    %c0_386 = arith.constant 0 : index
    %c2_387 = arith.constant 2 : index
    %989 = memref.load %arg9[%c0_386, %c2_387] : memref<4x4xf32, #tpu.memory_space<smem>>
    %990 = vector.extract_strided_slice %979 {offsets = [2, 0], sizes = [1, 256], strides = [1, 1]} : vector<4x256xf32> to vector<1x256xf32>
    %991 = vector.broadcast %989 : f32 to vector<1x256xf32>
    %992 = arith.mulf %991, %990 : vector<1x256xf32>
    %993 = arith.addf %988, %992 : vector<1x256xf32>
    %c0_388 = arith.constant 0 : index
    %c3_389 = arith.constant 3 : index
    %994 = memref.load %arg9[%c0_388, %c3_389] : memref<4x4xf32, #tpu.memory_space<smem>>
    %995 = vector.extract_strided_slice %979 {offsets = [3, 0], sizes = [1, 256], strides = [1, 1]} : vector<4x256xf32> to vector<1x256xf32>
    %996 = vector.broadcast %994 : f32 to vector<1x256xf32>
    %997 = arith.mulf %996, %995 : vector<1x256xf32>
    %998 = arith.addf %993, %997 : vector<1x256xf32>
    %c0_390 = arith.constant 0 : index
    %999 = memref.load %arg10[%c0_390] : memref<4xf32, #tpu.memory_space<smem>>
    %1000 = vector.broadcast %999 : f32 to vector<1x256xf32>
    %1001 = arith.addf %998, %1000 : vector<1x256xf32>
    %c1_391 = arith.constant 1 : index
    %c0_392 = arith.constant 0 : index
    %1002 = memref.load %arg9[%c1_391, %c0_392] : memref<4x4xf32, #tpu.memory_space<smem>>
    %1003 = vector.extract_strided_slice %979 {offsets = [0, 0], sizes = [1, 256], strides = [1, 1]} : vector<4x256xf32> to vector<1x256xf32>
    %1004 = vector.broadcast %1002 : f32 to vector<1x256xf32>
    %1005 = arith.mulf %1004, %1003 : vector<1x256xf32>
    %c1_393 = arith.constant 1 : index
    %c1_394 = arith.constant 1 : index
    %1006 = memref.load %arg9[%c1_393, %c1_394] : memref<4x4xf32, #tpu.memory_space<smem>>
    %1007 = vector.extract_strided_slice %979 {offsets = [1, 0], sizes = [1, 256], strides = [1, 1]} : vector<4x256xf32> to vector<1x256xf32>
    %1008 = vector.broadcast %1006 : f32 to vector<1x256xf32>
    %1009 = arith.mulf %1008, %1007 : vector<1x256xf32>
    %1010 = arith.addf %1005, %1009 : vector<1x256xf32>
    %c1_395 = arith.constant 1 : index
    %c2_396 = arith.constant 2 : index
    %1011 = memref.load %arg9[%c1_395, %c2_396] : memref<4x4xf32, #tpu.memory_space<smem>>
    %1012 = vector.extract_strided_slice %979 {offsets = [2, 0], sizes = [1, 256], strides = [1, 1]} : vector<4x256xf32> to vector<1x256xf32>
    %1013 = vector.broadcast %1011 : f32 to vector<1x256xf32>
    %1014 = arith.mulf %1013, %1012 : vector<1x256xf32>
    %1015 = arith.addf %1010, %1014 : vector<1x256xf32>
    %c1_397 = arith.constant 1 : index
    %c3_398 = arith.constant 3 : index
    %1016 = memref.load %arg9[%c1_397, %c3_398] : memref<4x4xf32, #tpu.memory_space<smem>>
    %1017 = vector.extract_strided_slice %979 {offsets = [3, 0], sizes = [1, 256], strides = [1, 1]} : vector<4x256xf32> to vector<1x256xf32>
    %1018 = vector.broadcast %1016 : f32 to vector<1x256xf32>
    %1019 = arith.mulf %1018, %1017 : vector<1x256xf32>
    %1020 = arith.addf %1015, %1019 : vector<1x256xf32>
    %c1_399 = arith.constant 1 : index
    %1021 = memref.load %arg10[%c1_399] : memref<4xf32, #tpu.memory_space<smem>>
    %1022 = vector.broadcast %1021 : f32 to vector<1x256xf32>
    %1023 = arith.addf %1020, %1022 : vector<1x256xf32>
    %c2_400 = arith.constant 2 : index
    %c0_401 = arith.constant 0 : index
    %1024 = memref.load %arg9[%c2_400, %c0_401] : memref<4x4xf32, #tpu.memory_space<smem>>
    %1025 = vector.extract_strided_slice %979 {offsets = [0, 0], sizes = [1, 256], strides = [1, 1]} : vector<4x256xf32> to vector<1x256xf32>
    %1026 = vector.broadcast %1024 : f32 to vector<1x256xf32>
    %1027 = arith.mulf %1026, %1025 : vector<1x256xf32>
    %c2_402 = arith.constant 2 : index
    %c1_403 = arith.constant 1 : index
    %1028 = memref.load %arg9[%c2_402, %c1_403] : memref<4x4xf32, #tpu.memory_space<smem>>
    %1029 = vector.extract_strided_slice %979 {offsets = [1, 0], sizes = [1, 256], strides = [1, 1]} : vector<4x256xf32> to vector<1x256xf32>
    %1030 = vector.broadcast %1028 : f32 to vector<1x256xf32>
    %1031 = arith.mulf %1030, %1029 : vector<1x256xf32>
    %1032 = arith.addf %1027, %1031 : vector<1x256xf32>
    %c2_404 = arith.constant 2 : index
    %c2_405 = arith.constant 2 : index
    %1033 = memref.load %arg9[%c2_404, %c2_405] : memref<4x4xf32, #tpu.memory_space<smem>>
    %1034 = vector.extract_strided_slice %979 {offsets = [2, 0], sizes = [1, 256], strides = [1, 1]} : vector<4x256xf32> to vector<1x256xf32>
    %1035 = vector.broadcast %1033 : f32 to vector<1x256xf32>
    %1036 = arith.mulf %1035, %1034 : vector<1x256xf32>
    %1037 = arith.addf %1032, %1036 : vector<1x256xf32>
    %c2_406 = arith.constant 2 : index
    %c3_407 = arith.constant 3 : index
    %1038 = memref.load %arg9[%c2_406, %c3_407] : memref<4x4xf32, #tpu.memory_space<smem>>
    %1039 = vector.extract_strided_slice %979 {offsets = [3, 0], sizes = [1, 256], strides = [1, 1]} : vector<4x256xf32> to vector<1x256xf32>
    %1040 = vector.broadcast %1038 : f32 to vector<1x256xf32>
    %1041 = arith.mulf %1040, %1039 : vector<1x256xf32>
    %1042 = arith.addf %1037, %1041 : vector<1x256xf32>
    %c2_408 = arith.constant 2 : index
    %1043 = memref.load %arg10[%c2_408] : memref<4xf32, #tpu.memory_space<smem>>
    %1044 = vector.broadcast %1043 : f32 to vector<1x256xf32>
    %1045 = arith.addf %1042, %1044 : vector<1x256xf32>
    %c3_409 = arith.constant 3 : index
    %c0_410 = arith.constant 0 : index
    %1046 = memref.load %arg9[%c3_409, %c0_410] : memref<4x4xf32, #tpu.memory_space<smem>>
    %1047 = vector.extract_strided_slice %979 {offsets = [0, 0], sizes = [1, 256], strides = [1, 1]} : vector<4x256xf32> to vector<1x256xf32>
    %1048 = vector.broadcast %1046 : f32 to vector<1x256xf32>
    %1049 = arith.mulf %1048, %1047 : vector<1x256xf32>
    %c3_411 = arith.constant 3 : index
    %c1_412 = arith.constant 1 : index
    %1050 = memref.load %arg9[%c3_411, %c1_412] : memref<4x4xf32, #tpu.memory_space<smem>>
    %1051 = vector.extract_strided_slice %979 {offsets = [1, 0], sizes = [1, 256], strides = [1, 1]} : vector<4x256xf32> to vector<1x256xf32>
    %1052 = vector.broadcast %1050 : f32 to vector<1x256xf32>
    %1053 = arith.mulf %1052, %1051 : vector<1x256xf32>
    %1054 = arith.addf %1049, %1053 : vector<1x256xf32>
    %c3_413 = arith.constant 3 : index
    %c2_414 = arith.constant 2 : index
    %1055 = memref.load %arg9[%c3_413, %c2_414] : memref<4x4xf32, #tpu.memory_space<smem>>
    %1056 = vector.extract_strided_slice %979 {offsets = [2, 0], sizes = [1, 256], strides = [1, 1]} : vector<4x256xf32> to vector<1x256xf32>
    %1057 = vector.broadcast %1055 : f32 to vector<1x256xf32>
    %1058 = arith.mulf %1057, %1056 : vector<1x256xf32>
    %1059 = arith.addf %1054, %1058 : vector<1x256xf32>
    %c3_415 = arith.constant 3 : index
    %c3_416 = arith.constant 3 : index
    %1060 = memref.load %arg9[%c3_415, %c3_416] : memref<4x4xf32, #tpu.memory_space<smem>>
    %1061 = vector.extract_strided_slice %979 {offsets = [3, 0], sizes = [1, 256], strides = [1, 1]} : vector<4x256xf32> to vector<1x256xf32>
    %1062 = vector.broadcast %1060 : f32 to vector<1x256xf32>
    %1063 = arith.mulf %1062, %1061 : vector<1x256xf32>
    %1064 = arith.addf %1059, %1063 : vector<1x256xf32>
    %c3_417 = arith.constant 3 : index
    %1065 = memref.load %arg10[%c3_417] : memref<4xf32, #tpu.memory_space<smem>>
    %1066 = vector.broadcast %1065 : f32 to vector<1x256xf32>
    %1067 = arith.addf %1064, %1066 : vector<1x256xf32>
    %1068 = tpu.concatenate %1001, %1023, %1045, %1067 in 0 : vector<1x256xf32>, vector<1x256xf32>, vector<1x256xf32>, vector<1x256xf32> -> vector<4x256xf32>
    %c1_418 = arith.constant 1 : index
    %c0_419 = arith.constant 0 : index
    %c0_420 = arith.constant 0 : index
    %1069 = vector.load %arg11[%c1_418, %c0_419, %c0_420] : memref<2x4x256xf32, #tpu.memory_space<vmem>>, vector<1x4x256xf32>
    %1070 = vector.shape_cast %1069 : vector<1x4x256xf32> to vector<4x256xf32>
    %1071 = vector.shape_cast %1068 : vector<4x256xf32> to vector<1x4x256xf32>
    tpu.vector_store %arg11[%c1_418, %c0_419, %c0_420], %1071 {strides = array<i32>} : memref<2x4x256xf32, #tpu.memory_space<vmem>>, vector<1x4x256xf32>,
    return
  }
}

</mosaic_0001>

<llo_original>
// kernel: grid_attention_forward.1
$region0: #{grid_attention_forward.1}
  #allocation0 [shape = 'u32[]', space=smem, size = 0x4, offset = 0x4, fixed_abs, tag = 'smem constant byte address 0x4 - core index']
  #allocation1 [shape = 'u32[144,128]{1,0:T(1,128)}', space=vmem, size = 0x12000, scoped, tag = 'internal scratch']
  #allocation2 [shape = 'f32[1]{0:T(128)S(6)}', space=smem, size = 0x200, scoped, tag = 'scoped memory for grid_attention_forward.1']
  %s0 = inlined_call_operand.vmem [shape: f32[2,16,64], index: 0, kind: input, shape index: {}]
  %s1 = inlined_call_operand.vmem [shape: f32[2,24,4], index: 1, kind: input, shape index: {}]
  %s2 = inlined_call_operand.vmem [shape: f32[2,4,256], index: 2, kind: input, shape index: {}]
  %s3 = inlined_call_operand.vmem [shape: f32[4,64], index: 3, kind: input, shape index: {}]
  %s4 = inlined_call_operand.vmem [shape: f32[64,256], index: 4, kind: input, shape index: {}]
  %s5 = inlined_call_operand.vmem [shape: f32[2,16], index: 5, kind: input, shape index: {}]
  %s6 = inlined_call_operand.vmem [shape: f32[2,24], index: 6, kind: input, shape index: {}]
  %s7 = inlined_call_operand.vmem [shape: f32[2], index: 7, kind: input, shape index: {}]
  %s8 = inlined_call_operand.<no memory space> [shape: f32[1], index: 8, kind: input, shape index: {}]
  %s9 = inlined_call_operand.vmem [shape: f32[4,4], index: 9, kind: input, shape index: {}]
  %s10 = inlined_call_operand.vmem [shape: f32[4], index: 10, kind: input, shape index: {}]
  %s11 = inlined_call_operand.vmem [shape: f32[2,4,256], index: 11, kind: output, shape index: {0}]
  %s12 = inlined_call_operand.vmem [shape: f32[2,1,256], index: 12, kind: output, shape index: {1}]
  %13 = xla_tuple %s11, %s12
  %s14 = sld [smem:[#allocation0]]
  $region82: #{grid_attention_forward.1} parent=0
    _
  %s16 = ssub.s32 1, %s14
  %s17 = scalar_select 0, %s16, %s14
  %18 = sst [smem:[#allocation2]] %s8
  $region1: #{grid_attention_forward.1} parent=0
    #allocation3 [shape = 'u8[1024]{0}', space=smem, size = 0x400, scoped, tag = 'input window, operand 5, single buffered']
    #allocation4 [shape = 's32[1]{0}', space=sflag, size = 0x4, scoped, tag = 'scoped memory for grid_attention_forward.1']
    #allocation5 [shape = 'u8[1024]{0}', space=smem, size = 0x400, scoped, tag = 'input window, operand 6, single buffered']
    #allocation6 [shape = 's32[1]{0}', space=sflag, size = 0x4, scoped, tag = 'scoped memory for grid_attention_forward.1']
    #allocation7 [shape = 'u8[512]{0}', space=smem, size = 0x200, scoped, tag = 'input window, operand 7, single buffered']
    #allocation8 [shape = 'u8[2048]{0}', space=smem, size = 0x800, scoped, tag = 'input window, operand 9, single buffered']
    #allocation9 [shape = 's32[1]{0}', space=sflag, size = 0x4, scoped, tag = 'scoped memory for grid_attention_forward.1']
    #allocation10 [shape = 'u8[512]{0}', space=smem, size = 0x200, scoped, tag = 'input window, operand 10, single buffered']
    %19 = vsyncpa [#allocation4], 0
    %20 = vsyncpa [#allocation6], 0
    %21 = vsyncpa [#allocation9], 0
    // Predicated region
    $region2: #{grid_attention_forward.1} parent=1 // pred_check
      _
    $region3: #{grid_attention_forward.1} parent=1 // pred_check_branch
      %23 = sbr.rel (0) target = $region5
    $region4: #{grid_attention_forward.1} parent=1 // pred_region
      _
    $region5: #{grid_attention_forward.1} parent=1 // pred_fallthru
      _
    // Predicated region
    $region6: #{grid_attention_forward.1} parent=1 // pred_check
      _
    $region7: #{grid_attention_forward.1} parent=1 // pred_check_branch
      %25 = sbr.rel (0) target = $region9
    $region8: #{grid_attention_forward.1} parent=1 // pred_region
      _
    $region9: #{grid_attention_forward.1} parent=1 // pred_fallthru
      _
    // Predicated region
    $region10: #{grid_attention_forward.1} parent=1 // pred_check
      _
    $region11: #{grid_attention_forward.1} parent=1 // pred_check_branch
      %27 = sbr.rel (0) target = $region13
    $region12: #{grid_attention_forward.1} parent=1 // pred_region
      _
    $region13: #{grid_attention_forward.1} parent=1 // pred_fallthru
      _
    // Predicated region
    $region14: #{grid_attention_forward.1} parent=1 // pred_check
      _
    $region15: #{grid_attention_forward.1} parent=1 // pred_check_branch
      %29 = sbr.rel (0) target = $region17
    $region16: #{grid_attention_forward.1} parent=1 // pred_region
      _
    $region17: #{grid_attention_forward.1} parent=1 // pred_fallthru
      _
    // Predicated region
    $region18: #{grid_attention_forward.1} parent=1 // pred_check
      _
    $region19: #{grid_attention_forward.1} parent=1 // pred_check_branch
      %31 = sbr.rel (0) target = $region21
    $region20: #{grid_attention_forward.1} parent=1 // pred_region
      _
    $region21: #{grid_attention_forward.1} parent=1 // pred_fallthru
      _
    // Predicated region
    $region22: #{grid_attention_forward.1} parent=1 // pred_check
      _
    $region23: #{grid_attention_forward.1} parent=1 // pred_check_branch
      %33 = sbr.rel (0) target = $region25
    $region24: #{grid_attention_forward.1} parent=1 // pred_region
      %s35 = ssub.s32 32, 32
      %36 = vsyncadd [#allocation4], %s35
      %s38 = sshll.u32 %s5, 4
      %s39 = int_to_ptr.vmem [resolvable:$true] %s38
      %41 = dma.vmem_to_smem %s39, 32, [#allocation3], [#allocation4]
    $region25: #{grid_attention_forward.1} parent=1 // pred_fallthru
      _
    // Predicated region
    $region26: #{grid_attention_forward.1} parent=1 // pred_check
      _
    $region27: #{grid_attention_forward.1} parent=1 // pred_check_branch
      %43 = sbr.rel (0) target = $region29
    $region28: #{grid_attention_forward.1} parent=1 // pred_region
      %s45 = ssub.s32 32, 32
      %46 = vsyncadd [#allocation6], %s45
      %s48 = sshll.u32 %s6, 4
      %s49 = int_to_ptr.vmem [resolvable:$true] %s48
      %51 = dma.vmem_to_smem %s49, 32, [#allocation5], [#allocation6]
    $region29: #{grid_attention_forward.1} parent=1 // pred_fallthru
      _
    // Predicated region
    $region30: #{grid_attention_forward.1} parent=1 // pred_check
      _
    $region31: #{grid_attention_forward.1} parent=1 // pred_check_branch
      %53 = sbr.rel (0) target = $region33
    $region32: #{grid_attention_forward.1} parent=1 // pred_region
      %s55 = ssub.s32 16, 16
      %56 = vsyncadd [#allocation6], %s55
      %s58 = sshll.u32 %s7, 4
      %s59 = int_to_ptr.vmem [resolvable:$true] %s58
      %61 = dma.vmem_to_smem %s59, 16, [#allocation7], [#allocation6]
    $region33: #{grid_attention_forward.1} parent=1 // pred_fallthru
      _
    // Predicated region
    $region34: #{grid_attention_forward.1} parent=1 // pred_check
      _
    $region35: #{grid_attention_forward.1} parent=1 // pred_check_branch
      %63 = sbr.rel (0) target = $region37
    $region36: #{grid_attention_forward.1} parent=1 // pred_region
      _
    $region37: #{grid_attention_forward.1} parent=1 // pred_fallthru
      _
    // Predicated region
    $region38: #{grid_attention_forward.1} parent=1 // pred_check
      _
    $region39: #{grid_attention_forward.1} parent=1 // pred_check_branch
      %65 = sbr.rel (0) target = $region41
    $region40: #{grid_attention_forward.1} parent=1 // pred_region
      %s67 = ssub.s32 64, 64
      %68 = vsyncadd [#allocation9], %s67
      %s70 = sshll.u32 %s9, 4
      %s71 = int_to_ptr.vmem [resolvable:$true] %s70
      %73 = dma.vmem_to_smem %s71, 64, [#allocation8], [#allocation9]
    $region41: #{grid_attention_forward.1} parent=1 // pred_fallthru
      _
    // Predicated region
    $region42: #{grid_attention_forward.1} parent=1 // pred_check
      _
    $region43: #{grid_attention_forward.1} parent=1 // pred_check_branch
      %75 = sbr.rel (0) target = $region45
    $region44: #{grid_attention_forward.1} parent=1 // pred_region
      %s77 = ssub.s32 16, 16
      %78 = vsyncadd [#allocation9], %s77
      %s80 = sshll.u32 %s10, 4
      %s81 = int_to_ptr.vmem [resolvable:$true] %s80
      %83 = dma.vmem_to_smem %s81, 16, [#allocation10], [#allocation9]
    $region45: #{grid_attention_forward.1} parent=1 // pred_fallthru
      _
    // Predicated region
    $region46: #{grid_attention_forward.1} parent=1 // pred_check
      _
    $region47: #{grid_attention_forward.1} parent=1 // pred_check_branch
      %85 = sbr.rel (0) target = $region49
    $region48: #{grid_attention_forward.1} parent=1 // pred_region
      %86 = dma.done [#allocation4], 32
    $region49: #{grid_attention_forward.1} parent=1 // pred_fallthru
      _
    // Predicated region
    $region50: #{grid_attention_forward.1} parent=1 // pred_check
      _
    $region51: #{grid_attention_forward.1} parent=1 // pred_check_branch
      %88 = sbr.rel (0) target = $region53
    $region52: #{grid_attention_forward.1} parent=1 // pred_region
      %89 = dma.done [#allocation6], 32
    $region53: #{grid_attention_forward.1} parent=1 // pred_fallthru
      _
    // Predicated region
    $region54: #{grid_attention_forward.1} parent=1 // pred_check
      _
    $region55: #{grid_attention_forward.1} parent=1 // pred_check_branch
      %91 = sbr.rel (0) target = $region57
    $region56: #{grid_attention_forward.1} parent=1 // pred_region
      %92 = dma.done [#allocation6], 16
    $region57: #{grid_attention_forward.1} parent=1 // pred_fallthru
      _
    // Predicated region
    $region58: #{grid_attention_forward.1} parent=1 // pred_check
      _
    $region59: #{grid_attention_forward.1} parent=1 // pred_check_branch
      %94 = sbr.rel (0) target = $region61
    $region60: #{grid_attention_forward.1} parent=1 // pred_region
      %95 = dma.done [#allocation9], 64
    $region61: #{grid_attention_forward.1} parent=1 // pred_fallthru
      _
    // Predicated region
    $region62: #{grid_attention_forward.1} parent=1 // pred_check
      _
    $region63: #{grid_attention_forward.1} parent=1 // pred_check_branch
      %97 = sbr.rel (0) target = $region65
    $region64: #{grid_attention_forward.1} parent=1 // pred_region
      %98 = dma.done [#allocation9], 16
    $region65: #{grid_attention_forward.1} parent=1 // pred_fallthru
      _
    %99 = sfence
    %v100 = vld [vmem:[%s3] sm:$0xf]
    %v101 = vld [vmem:[%s4] sm:$0xff]
    %v102 = vld [vmem:[%s4 + $0x8] sm:$0xff]
    %v103 = vld [vmem:[%s4 + $0x10] sm:$0xff]
    %v104 = vld [vmem:[%s4 + $0x18] sm:$0xff]
    %v105 = vld [vmem:[%s4 + $0x20] sm:$0xff]
    %v106 = vld [vmem:[%s4 + $0x28] sm:$0xff]
    %v107 = vld [vmem:[%s4 + $0x30] sm:$0xff]
    %v108 = vld [vmem:[%s4 + $0x38] sm:$0xff]
    %v109 = vld [vmem:[%s4 + $0x40] sm:$0xff]
    %v110 = vld [vmem:[%s4 + $0x48] sm:$0xff]
    %v111 = vld [vmem:[%s4 + $0x50] sm:$0xff]
    %v112 = vld [vmem:[%s4 + $0x58] sm:$0xff]
    %v113 = vld [vmem:[%s4 + $0x60] sm:$0xff]
    %v114 = vld [vmem:[%s4 + $0x68] sm:$0xff]
    %v115 = vld [vmem:[%s4 + $0x70] sm:$0xff]
    %v116 = vld [vmem:[%s4 + $0x78] sm:$0xff]
    %v117 = vld [vmem:[%s0] sm:$0xff]
    %v118 = vld [vmem:[%s0 + $0x8] sm:$0xff]
    %v119 = vld [vmem:[%s1] sm:$0xff]
    %v120 = vld [vmem:[%s1 + $0x8] sm:$0xff]
    %v121 = vld [vmem:[%s1 + $0x10] sm:$0xff]
    %s122 = sld [smem:[#allocation5]]
    %v123 = vstv %s122
    %v124 = vmul.f32 %v123, %v119
    %s125 = sld [smem:[#allocation5 + $0x1]]
    %v126 = vstv %s125
    %v127 = vmul.f32 %v126, %v119
    %v129 = vrot.slane %v127, 1
    %v131 = vadd.f32 %v124, %v129
    %s132 = sld [smem:[#allocation5 + $0x2]]
    %v133 = vstv %s132
    %v134 = vmul.f32 %v133, %v119
    %v136 = vrot.slane %v134, 2
    %v138 = vadd.f32 %v131, %v136
    %s139 = sld [smem:[#allocation5 + $0x3]]
    %v140 = vstv %s139
    %v141 = vmul.f32 %v140, %v119
    %v143 = vrot.slane %v141, 3
    %v145 = vadd.f32 %v138, %v143
    %s146 = sld [smem:[#allocation5 + $0x4]]
    %v147 = vstv %s146
    %v148 = vmul.f32 %v147, %v119
    %v150 = vrot.slane %v148, 4
    %v152 = vadd.f32 %v145, %v150
    %s153 = sld [smem:[#allocation5 + $0x5]]
    %v154 = vstv %s153
    %v155 = vmul.f32 %v154, %v119
    %v157 = vrot.slane %v155, 5
    %v159 = vadd.f32 %v152, %v157
    %s160 = sld [smem:[#allocation5 + $0x6]]
    %v161 = vstv %s160
    %v162 = vmul.f32 %v161, %v119
    %v164 = vrot.slane %v162, 6
    %v166 = vadd.f32 %v159, %v164
    %s167 = sld [smem:[#allocation5 + $0x7]]
    %v168 = vstv %s167
    %v169 = vmul.f32 %v168, %v119
    %v171 = vrot.slane %v169, 7
    %v173 = vadd.f32 %v166, %v171
    %s174 = sld [smem:[#allocation5 + $0x8]]
    %v175 = vstv %s174
    %v176 = vmul.f32 %v175, %v120
    %v177 = vadd.f32 %v173, %v176
    %s178 = sld [smem:[#allocation5 + $0x9]]
    %v179 = vstv %s178
    %v180 = vmul.f32 %v179, %v120
    %v182 = vrot.slane %v180, 1
    %v184 = vadd.f32 %v177, %v182
    %s185 = sld [smem:[#allocation5 + $0xa]]
    %v186 = vstv %s185
    %v187 = vmul.f32 %v186, %v120
    %v189 = vrot.slane %v187, 2
    %v191 = vadd.f32 %v184, %v189
    %s192 = sld [smem:[#allocation5 + $0xb]]
    %v193 = vstv %s192
    %v194 = vmul.f32 %v193, %v120
    %v196 = vrot.slane %v194, 3
    %v198 = vadd.f32 %v191, %v196
    %s199 = sld [smem:[#allocation5 + $0xc]]
    %v200 = vstv %s199
    %v201 = vmul.f32 %v200, %v120
    %v203 = vrot.slane %v201, 4
    %v205 = vadd.f32 %v198, %v203
    %s206 = sld [smem:[#allocation5 + $0xd]]
    %v207 = vstv %s206
    %v208 = vmul.f32 %v207, %v120
    %v210 = vrot.slane %v208, 5
    %v212 = vadd.f32 %v205, %v210
    %s213 = sld [smem:[#allocation5 + $0xe]]
    %v214 = vstv %s213
    %v215 = vmul.f32 %v214, %v120
    %v217 = vrot.slane %v215, 6
    %v219 = vadd.f32 %v212, %v217
    %s220 = sld [smem:[#allocation5 + $0xf]]
    %v221 = vstv %s220
    %v222 = vmul.f32 %v221, %v120
    %v224 = vrot.slane %v222, 7
    %v226 = vadd.f32 %v219, %v224
    %s227 = sld [smem:[#allocation5 + $0x10]]
    %v228 = vstv %s227
    %v229 = vmul.f32 %v228, %v121
    %v230 = vadd.f32 %v226, %v229
    %s231 = sld [smem:[#allocation5 + $0x11]]
    %v232 = vstv %s231
    %v233 = vmul.f32 %v232, %v121
    %v235 = vrot.slane %v233, 1
    %v237 = vadd.f32 %v230, %v235
    %s238 = sld [smem:[#allocation5 + $0x12]]
    %v239 = vstv %s238
    %v240 = vmul.f32 %v239, %v121
    %v242 = vrot.slane %v240, 2
    %v244 = vadd.f32 %v237, %v242
    %s245 = sld [smem:[#allocation5 + $0x13]]
    %v246 = vstv %s245
    %v247 = vmul.f32 %v246, %v121
    %v249 = vrot.slane %v247, 3
    %v251 = vadd.f32 %v244, %v249
    %s252 = sld [smem:[#allocation5 + $0x14]]
    %v253 = vstv %s252
    %v254 = vmul.f32 %v253, %v121
    %v256 = vrot.slane %v254, 4
    %v258 = vadd.f32 %v251, %v256
    %s259 = sld [smem:[#allocation5 + $0x15]]
    %v260 = vstv %s259
    %v261 = vmul.f32 %v260, %v121
    %v263 = vrot.slane %v261, 5
    %v265 = vadd.f32 %v258, %v263
    %s266 = sld [smem:[#allocation5 + $0x16]]
    %v267 = vstv %s266
    %v268 = vmul.f32 %v267, %v121
    %v270 = vrot.slane %v268, 6
    %v272 = vadd.f32 %v265, %v270
    %s273 = sld [smem:[#allocation5 + $0x17]]
    %v274 = vstv %s273
    %v275 = vmul.f32 %v274, %v121
    %v277 = vrot.slane %v275, 7
    %v279 = vadd.f32 %v272, %v277
    %s280 = sld [smem:[#allocation5 + $0x80]]
    %v281 = vstv %s280
    %v282 = vmul.f32 %v281, %v119
    %s283 = sld [smem:[#allocation5 + $0x81]]
    %v284 = vstv %s283
    %v285 = vmul.f32 %v284, %v119
    %v287 = vrot.slane %v285, 1
    %v289 = vadd.f32 %v282, %v287
    %s290 = sld [smem:[#allocation5 + $0x82]]
    %v291 = vstv %s290
    %v292 = vmul.f32 %v291, %v119
    %v294 = vrot.slane %v292, 2
    %v296 = vadd.f32 %v289, %v294
    %s297 = sld [smem:[#allocation5 + $0x83]]
    %v298 = vstv %s297
    %v299 = vmul.f32 %v298, %v119
    %v301 = vrot.slane %v299, 3
    %v303 = vadd.f32 %v296, %v301
    %s304 = sld [smem:[#allocation5 + $0x84]]
    %v305 = vstv %s304
    %v306 = vmul.f32 %v305, %v119
    %v308 = vrot.slane %v306, 4
    %v310 = vadd.f32 %v303, %v308
    %s311 = sld [smem:[#allocation5 + $0x85]]
    %v312 = vstv %s311
    %v313 = vmul.f32 %v312, %v119
    %v315 = vrot.slane %v313, 5
    %v317 = vadd.f32 %v310, %v315
    %s318 = sld [smem:[#allocation5 + $0x86]]
    %v319 = vstv %s318
    %v320 = vmul.f32 %v319, %v119
    %v322 = vrot.slane %v320, 6
    %v324 = vadd.f32 %v317, %v322
    %s325 = sld [smem:[#allocation5 + $0x87]]
    %v326 = vstv %s325
    %v327 = vmul.f32 %v326, %v119
    %v329 = vrot.slane %v327, 7
    %v331 = vadd.f32 %v324, %v329
    %s332 = sld [smem:[#allocation5 + $0x88]]
    %v333 = vstv %s332
    %v334 = vmul.f32 %v333, %v120
    %v335 = vadd.f32 %v331, %v334
    %s336 = sld [smem:[#allocation5 + $0x89]]
    %v337 = vstv %s336
    %v338 = vmul.f32 %v337, %v120
    %v340 = vrot.slane %v338, 1
    %v342 = vadd.f32 %v335, %v340
    %s343 = sld [smem:[#allocation5 + $0x8a]]
    %v344 = vstv %s343
    %v345 = vmul.f32 %v344, %v120
    %v347 = vrot.slane %v345, 2
    %v349 = vadd.f32 %v342, %v347
    %s350 = sld [smem:[#allocation5 + $0x8b]]
    %v351 = vstv %s350
    %v352 = vmul.f32 %v351, %v120
    %v354 = vrot.slane %v352, 3
    %v356 = vadd.f32 %v349, %v354
    %s357 = sld [smem:[#allocation5 + $0x8c]]
    %v358 = vstv %s357
    %v359 = vmul.f32 %v358, %v120
    %v361 = vrot.slane %v359, 4
    %v363 = vadd.f32 %v356, %v361
    %s364 = sld [smem:[#allocation5 + $0x8d]]
    %v365 = vstv %s364
    %v366 = vmul.f32 %v365, %v120
    %v368 = vrot.slane %v366, 5
    %v370 = vadd.f32 %v363, %v368
    %s371 = sld [smem:[#allocation5 + $0x8e]]
    %v372 = vstv %s371
    %v373 = vmul.f32 %v372, %v120
    %v375 = vrot.slane %v373, 6
    %v377 = vadd.f32 %v370, %v375
    %s378 = sld [smem:[#allocation5 + $0x8f]]
    %v379 = vstv %s378
    %v380 = vmul.f32 %v379, %v120
    %v382 = vrot.slane %v380, 7
    %v384 = vadd.f32 %v377, %v382
    %s385 = sld [smem:[#allocation5 + $0x90]]
    %v386 = vstv %s385
    %v387 = vmul.f32 %v386, %v121
    %v388 = vadd.f32 %v384, %v387
    %s389 = sld [smem:[#allocation5 + $0x91]]
    %v390 = vstv %s389
    %v391 = vmul.f32 %v390, %v121
    %v393 = vrot.slane %v391, 1
    %v395 = vadd.f32 %v388, %v393
    %s396 = sld [smem:[#allocation5 + $0x92]]
    %v397 = vstv %s396
    %v398 = vmul.f32 %v397, %v121
    %v400 = vrot.slane %v398, 2
    %v402 = vadd.f32 %v395, %v400
    %s403 = sld [smem:[#allocation5 + $0x93]]
    %v404 = vstv %s403
    %v405 = vmul.f32 %v404, %v121
    %v407 = vrot.slane %v405, 3
    %v409 = vadd.f32 %v402, %v407
    %s410 = sld [smem:[#allocation5 + $0x94]]
    %v411 = vstv %s410
    %v412 = vmul.f32 %v411, %v121
    %v414 = vrot.slane %v412, 4
    %v416 = vadd.f32 %v409, %v414
    %s417 = sld [smem:[#allocation5 + $0x95]]
    %v418 = vstv %s417
    %v419 = vmul.f32 %v418, %v121
    %v421 = vrot.slane %v419, 5
    %v423 = vadd.f32 %v416, %v421
    %s424 = sld [smem:[#allocation5 + $0x96]]
    %v425 = vstv %s424
    %v426 = vmul.f32 %v425, %v121
    %v428 = vrot.slane %v426, 6
    %v430 = vadd.f32 %v423, %v428
    %s431 = sld [smem:[#allocation5 + $0x97]]
    %v432 = vstv %s431
    %v433 = vmul.f32 %v432, %v121
    %v435 = vrot.slane %v433, 7
    %v437 = vadd.f32 %v430, %v435
    %v439 = vrot.slane %v437, 7
    %vm441 = vcmask 1040384
    %v442 = vsel %vm441, %v279, %v439
    %v443 = vpack.c.bf16 %v442, %v442
    %v444 = vunpack.c.l.bf16 %v443
    %v445 = vsub.f32 %v442, %v444
    %vm446 = vcmask 31744
    %v448 = vsel %vm446, %v445, 0
    %vm450 = vcmask 1043456
    %v452 = vsel %vm450, %v100, 0
    %454 = vmatprep.subr.mxu0 0.0
    %455 = vmatpush1.msra.mxu0 0.0
    %456 = vmatprep.subr.mxu0 0.0
    %457 = vmatpush1.msra.mxu0 0.0
    %458 = vmatprep.subr.mxu0 0.0
    %459 = vmatpush1.msra.mxu0 0.0
    %460 = vmatprep.subr.mxu0 0.0
    %461 = vmatpush1.msra.mxu0 0.0
    %462 = vmatprep.subr.mxu0 0.0
    %463 = vmatpush1.msra.mxu0 0.0
    %464 = vmatprep.subr.mxu0 0.0
    %465 = vmatpush1.msra.mxu0 0.0
    %466 = vmatprep.subr.mxu0 0.0
    %467 = vmatpush1.msra.mxu0 0.0
    %468 = vmatprep.subr.mxu0 0.0
    %469 = vmatpush1.msra.mxu0 0.0
    %470 = vmatprep.subr.mxu0 0.0
    %471 = vmatpush1.msra.mxu0 0.0
    %472 = vmatprep.subr.mxu0 0.0
    %473 = vmatpush1.msra.mxu0 0.0
    %474 = vmatprep.subr.mxu0 0.0
    %475 = vmatpush1.msra.mxu0 0.0
    %476 = vmatprep.subr.mxu0 0.0
    %477 = vmatpush1.msra.mxu0 0.0
    %478 = vmatprep.subr.mxu0 0.0
    %479 = vmatpush1.msra.mxu0 0.0
    %480 = vmatprep.subr.mxu0 0.0
    %481 = vmatpush1.msra.mxu0 0.0
    %482 = vmatprep.subr.mxu0 0.0
    %483 = vmatpush1.msra.mxu0 0.0
    %484 = vmatprep.subr.mxu0 0.0
    %485 = vmatpush1.msra.mxu0 %v452
    %486 = vmatprep.subr.mxu0 0.0
    %487 = vmatpush2.msra.mxu0 0.0
    %488 = vmatprep.subr.mxu0 0.0
    %489 = vmatpush2.msra.mxu0 0.0
    %490 = vmatprep.subr.mxu0 0.0
    %491 = vmatpush2.msra.mxu0 0.0
    %492 = vmatprep.subr.mxu0 0.0
    %493 = vmatpush2.msra.mxu0 0.0
    %494 = vmatprep.subr.mxu0 0.0
    %495 = vmatpush2.msra.mxu0 0.0
    %496 = vmatprep.subr.mxu0 0.0
    %497 = vmatpush2.msra.mxu0 0.0
    %498 = vmatprep.subr.mxu0 0.0
    %499 = vmatpush2.msra.mxu0 0.0
    %500 = vmatprep.subr.mxu0 0.0
    %501 = vmatpush2.msra.mxu0 0.0
    %502 = vmatprep.subr.mxu0 0.0
    %503 = vmatpush2.msra.mxu0 0.0
    %504 = vmatprep.subr.mxu0 0.0
    %505 = vmatpush2.msra.mxu0 0.0
    %506 = vmatprep.subr.mxu0 0.0
    %507 = vmatpush2.msra.mxu0 0.0
    %508 = vmatprep.subr.mxu0 0.0
    %509 = vmatpush2.msra.mxu0 0.0
    %510 = vmatprep.subr.mxu0 0.0
    %511 = vmatpush2.msra.mxu0 0.0
    %512 = vmatprep.subr.mxu0 0.0
    %513 = vmatpush2.msra.mxu0 0.0
    %514 = vmatprep.subr.mxu0 0.0
    %515 = vmatpush2.msra.mxu0 0.0
    %516 = vmatprep.subr.mxu0 0.0
    %517 = vmatpush2.msra.mxu0 0.0
    %518 = vmatprep.mubr.f32.mxu0 0.0
    %519 = vmatmul.mubr.f32.gmra.mxu0 %v448
    %v520 = vpop.f32.mrf.mxu0
    %v521 = vadd.f32 0.0, %v520
    %v522 = vpop.f32.mrf.mxu0
    %523 = vdwg.mxu0
    %v525 = vsel %vm446, %v444, 0
    %527 = vmatprep.subr.mxu0 0.0
    %528 = vmatpush1.msra.mxu0 0.0
    %529 = vmatprep.subr.mxu0 0.0
    %530 = vmatpush1.msra.mxu0 0.0
    %531 = vmatprep.subr.mxu0 0.0
    %532 = vmatpush1.msra.mxu0 0.0
    %533 = vmatprep.subr.mxu0 0.0
    %534 = vmatpush1.msra.mxu0 0.0
    %535 = vmatprep.subr.mxu0 0.0
    %536 = vmatpush1.msra.mxu0 0.0
    %537 = vmatprep.subr.mxu0 0.0
    %538 = vmatpush1.msra.mxu0 0.0
    %539 = vmatprep.subr.mxu0 0.0
    %540 = vmatpush1.msra.mxu0 0.0
    %541 = vmatprep.subr.mxu0 0.0
    %542 = vmatpush1.msra.mxu0 0.0
    %543 = vmatprep.subr.mxu0 0.0
    %544 = vmatpush1.msra.mxu0 0.0
    %545 = vmatprep.subr.mxu0 0.0
    %546 = vmatpush1.msra.mxu0 0.0
    %547 = vmatprep.subr.mxu0 0.0
    %548 = vmatpush1.msra.mxu0 0.0
    %549 = vmatprep.subr.mxu0 0.0
    %550 = vmatpush1.msra.mxu0 0.0
    %551 = vmatprep.subr.mxu0 0.0
    %552 = vmatpush1.msra.mxu0 0.0
    %553 = vmatprep.subr.mxu0 0.0
    %554 = vmatpush1.msra.mxu0 0.0
    %555 = vmatprep.subr.mxu0 0.0
    %556 = vmatpush1.msra.mxu0 0.0
    %557 = vmatprep.subr.mxu0 0.0
    %558 = vmatpush1.msra.mxu0 %v452
    %559 = vmatprep.subr.mxu0 0.0
    %560 = vmatpush2.msra.mxu0 0.0
    %561 = vmatprep.subr.mxu0 0.0
    %562 = vmatpush2.msra.mxu0 0.0
    %563 = vmatprep.subr.mxu0 0.0
    %564 = vmatpush2.msra.mxu0 0.0
    %565 = vmatprep.subr.mxu0 0.0
    %566 = vmatpush2.msra.mxu0 0.0
    %567 = vmatprep.subr.mxu0 0.0
    %568 = vmatpush2.msra.mxu0 0.0
    %569 = vmatprep.subr.mxu0 0.0
    %570 = vmatpush2.msra.mxu0 0.0
    %571 = vmatprep.subr.mxu0 0.0
    %572 = vmatpush2.msra.mxu0 0.0
    %573 = vmatprep.subr.mxu0 0.0
    %574 = vmatpush2.msra.mxu0 0.0
    %575 = vmatprep.subr.mxu0 0.0
    %576 = vmatpush2.msra.mxu0 0.0
    %577 = vmatprep.subr.mxu0 0.0
    %578 = vmatpush2.msra.mxu0 0.0
    %579 = vmatprep.subr.mxu0 0.0
    %580 = vmatpush2.msra.mxu0 0.0
    %581 = vmatprep.subr.mxu0 0.0
    %582 = vmatpush2.msra.mxu0 0.0
    %583 = vmatprep.subr.mxu0 0.0
    %584 = vmatpush2.msra.mxu0 0.0
    %585 = vmatprep.subr.mxu0 0.0
    %586 = vmatpush2.msra.mxu0 0.0
    %587 = vmatprep.subr.mxu0 0.0
    %588 = vmatpush2.msra.mxu0 0.0
    %589 = vmatprep.subr.mxu0 0.0
    %590 = vmatpush2.msra.mxu0 0.0
    %591 = vmatprep.mubr.f32.mxu0 0.0
    %592 = vmatmul.mubr.f32.gmra.mxu0 %v525
    %v593 = vpop.f32.mrf.mxu0
    %v594 = vadd.f32 %v521, %v593
    %v595 = vpop.f32.mrf.mxu0
    %596 = vdwg.mxu0
    %s597 = sld [smem:[#allocation3]]
    %v598 = vstv %s597
    %v599 = vmul.f32 %v598, %v117
    %s600 = sld [smem:[#allocation3 + $0x1]]
    %v601 = vstv %s600
    %v602 = vmul.f32 %v601, %v117
    %v604 = vrot.slane %v602, 1
    %v606 = vadd.f32 %v599, %v604
    %s607 = sld [smem:[#allocation3 + $0x2]]
    %v608 = vstv %s607
    %v609 = vmul.f32 %v608, %v117
    %v611 = vrot.slane %v609, 2
    %v613 = vadd.f32 %v606, %v611
    %s614 = sld [smem:[#allocation3 + $0x3]]
    %v615 = vstv %s614
    %v616 = vmul.f32 %v615, %v117
    %v618 = vrot.slane %v616, 3
    %v620 = vadd.f32 %v613, %v618
    %s621 = sld [smem:[#allocation3 + $0x4]]
    %v622 = vstv %s621
    %v623 = vmul.f32 %v622, %v117
    %v625 = vrot.slane %v623, 4
    %v627 = vadd.f32 %v620, %v625
    %s628 = sld [smem:[#allocation3 + $0x5]]
    %v629 = vstv %s628
    %v630 = vmul.f32 %v629, %v117
    %v632 = vrot.slane %v630, 5
    %v634 = vadd.f32 %v627, %v632
    %s635 = sld [smem:[#allocation3 + $0x6]]
    %v636 = vstv %s635
    %v637 = vmul.f32 %v636, %v117
    %v639 = vrot.slane %v637, 6
    %v641 = vadd.f32 %v634, %v639
    %s642 = sld [smem:[#allocation3 + $0x7]]
    %v643 = vstv %s642
    %v644 = vmul.f32 %v643, %v117
    %v646 = vrot.slane %v644, 7
    %v648 = vadd.f32 %v641, %v646
    %s649 = sld [smem:[#allocation3 + $0x8]]
    %v650 = vstv %s649
    %v651 = vmul.f32 %v650, %v118
    %v652 = vadd.f32 %v648, %v651
    %s653 = sld [smem:[#allocation3 + $0x9]]
    %v654 = vstv %s653
    %v655 = vmul.f32 %v654, %v118
    %v657 = vrot.slane %v655, 1
    %v659 = vadd.f32 %v652, %v657
    %s660 = sld [smem:[#allocation3 + $0xa]]
    %v661 = vstv %s660
    %v662 = vmul.f32 %v661, %v118
    %v664 = vrot.slane %v662, 2
    %v666 = vadd.f32 %v659, %v664
    %s667 = sld [smem:[#allocation3 + $0xb]]
    %v668 = vstv %s667
    %v669 = vmul.f32 %v668, %v118
    %v671 = vrot.slane %v669, 3
    %v673 = vadd.f32 %v666, %v671
    %s674 = sld [smem:[#allocation3 + $0xc]]
    %v675 = vstv %s674
    %v676 = vmul.f32 %v675, %v118
    %v678 = vrot.slane %v676, 4
    %v680 = vadd.f32 %v673, %v678
    %s681 = sld [smem:[#allocation3 + $0xd]]
    %v682 = vstv %s681
    %v683 = vmul.f32 %v682, %v118
    %v685 = vrot.slane %v683, 5
    %v687 = vadd.f32 %v680, %v685
    %s688 = sld [smem:[#allocation3 + $0xe]]
    %v689 = vstv %s688
    %v690 = vmul.f32 %v689, %v118
    %v692 = vrot.slane %v690, 6
    %v694 = vadd.f32 %v687, %v692
    %s695 = sld [smem:[#allocation3 + $0xf]]
    %v696 = vstv %s695
    %v697 = vmul.f32 %v696, %v118
    %v699 = vrot.slane %v697, 7
    %v701 = vadd.f32 %v694, %v699
    %v702 = vadd.f32 %v701, %v594
    %v703 = vmax.f32 %v702, 0.0
    %s704 = sld [smem:[#allocation7]]
    %v705 = vstv %s704
    %v706 = vmul.f32 %v705, %v703
    %s707 = sld [smem:[#allocation3 + $0x80]]
    %v708 = vstv %s707
    %v709 = vmul.f32 %v708, %v117
    %s710 = sld [smem:[#allocation3 + $0x81]]
    %v711 = vstv %s710
    %v712 = vmul.f32 %v711, %v117
    %v714 = vrot.slane %v712, 1
    %v716 = vadd.f32 %v709, %v714
    %s717 = sld [smem:[#allocation3 + $0x82]]
    %v718 = vstv %s717
    %v719 = vmul.f32 %v718, %v117
    %v721 = vrot.slane %v719, 2
    %v723 = vadd.f32 %v716, %v721
    %s724 = sld [smem:[#allocation3 + $0x83]]
    %v725 = vstv %s724
    %v726 = vmul.f32 %v725, %v117
    %v728 = vrot.slane %v726, 3
    %v730 = vadd.f32 %v723, %v728
    %s731 = sld [smem:[#allocation3 + $0x84]]
    %v732 = vstv %s731
    %v733 = vmul.f32 %v732, %v117
    %v735 = vrot.slane %v733, 4
    %v737 = vadd.f32 %v730, %v735
    %s738 = sld [smem:[#allocation3 + $0x85]]
    %v739 = vstv %s738
    %v740 = vmul.f32 %v739, %v117
    %v742 = vrot.slane %v740, 5
    %v744 = vadd.f32 %v737, %v742
    %s745 = sld [smem:[#allocation3 + $0x86]]
    %v746 = vstv %s745
    %v747 = vmul.f32 %v746, %v117
    %v749 = vrot.slane %v747, 6
    %v751 = vadd.f32 %v744, %v749
    %s752 = sld [smem:[#allocation3 + $0x87]]
    %v753 = vstv %s752
    %v754 = vmul.f32 %v753, %v117
    %v756 = vrot.slane %v754, 7
    %v758 = vadd.f32 %v751, %v756
    %s759 = sld [smem:[#allocation3 + $0x88]]
    %v760 = vstv %s759
    %v761 = vmul.f32 %v760, %v118
    %v762 = vadd.f32 %v758, %v761
    %s763 = sld [smem:[#allocation3 + $0x89]]
    %v764 = vstv %s763
    %v765 = vmul.f32 %v764, %v118
    %v767 = vrot.slane %v765, 1
    %v769 = vadd.f32 %v762, %v767
    %s770 = sld [smem:[#allocation3 + $0x8a]]
    %v771 = vstv %s770
    %v772 = vmul.f32 %v771, %v118
    %v774 = vrot.slane %v772, 2
    %v776 = vadd.f32 %v769, %v774
    %s777 = sld [smem:[#allocation3 + $0x8b]]
    %v778 = vstv %s777
    %v779 = vmul.f32 %v778, %v118
    %v781 = vrot.slane %v779, 3
    %v783 = vadd.f32 %v776, %v781
    %s784 = sld [smem:[#allocation3 + $0x8c]]
    %v785 = vstv %s784
    %v786 = vmul.f32 %v785, %v118
    %v788 = vrot.slane %v786, 4
    %v790 = vadd.f32 %v783, %v788
    %s791 = sld [smem:[#allocation3 + $0x8d]]
    %v792 = vstv %s791
    %v793 = vmul.f32 %v792, %v118
    %v795 = vrot.slane %v793, 5
    %v797 = vadd.f32 %v790, %v795
    %s798 = sld [smem:[#allocation3 + $0x8e]]
    %v799 = vstv %s798
    %v800 = vmul.f32 %v799, %v118
    %v802 = vrot.slane %v800, 6
    %v804 = vadd.f32 %v797, %v802
    %s805 = sld [smem:[#allocation3 + $0x8f]]
    %v806 = vstv %s805
    %v807 = vmul.f32 %v806, %v118
    %v809 = vrot.slane %v807, 7
    %v811 = vadd.f32 %v804, %v809
    %v813 = vrot.slane %v594, 1
    %v815 = vadd.f32 %v811, %v813
    %v816 = vmax.f32 %v815, 0.0
    %s817 = sld [smem:[#allocation7 + $0x1]]
    %v818 = vstv %s817
    %v819 = vmul.f32 %v818, %v816
    %v820 = vadd.f32 %v706, %v819
    %s821 = sld [smem:[#allocation2]]
    %v822 = vstv %s821
    %v823 = vadd.f32 %v820, %v822
    %v824 = vxor.u32 %v823, 2147483648
    %v825 = vmul.f32 %v824, 1.442695
    %v826 = vpow.pop %v825
    %v827 = vadd.f32 %v826, 1.0
    %v828 = vrcp.pop %v827
    %v829 = vmul.f32 1.0, %v828
    %v830 = vpack.c.bf16 %v829, %v829
    %v831 = vunpack.c.l.bf16 %v830
    %v832 = vsub.f32 %v829, %v831
    %vm833 = vcmask 523264
    %v835 = vsel %vm833, %v832, 0
    %837 = vmatprep.subr.mxu0 0.0
    %838 = vmatpush1.msra.mxu0 0.0
    %839 = vmatprep.subr.mxu0 0.0
    %840 = vmatpush1.msra.mxu0 0.0
    %841 = vmatprep.subr.mxu0 0.0
    %842 = vmatpush1.msra.mxu0 0.0
    %843 = vmatprep.subr.mxu0 0.0
    %844 = vmatpush1.msra.mxu0 0.0
    %845 = vmatprep.subr.mxu0 0.0
    %846 = vmatpush1.msra.mxu0 0.0
    %847 = vmatprep.subr.mxu0 0.0
    %848 = vmatpush1.msra.mxu0 0.0
    %849 = vmatprep.subr.mxu0 0.0
    %850 = vmatpush1.msra.mxu0 0.0
    %851 = vmatprep.subr.mxu0 0.0
    %852 = vmatpush1.msra.mxu0 0.0
    %853 = vmatprep.subr.mxu0 %v116
    %854 = vmatpush1.msra.mxu0 %v115
    %855 = vmatprep.subr.mxu0 %v114
    %856 = vmatpush1.msra.mxu0 %v113
    %857 = vmatprep.subr.mxu0 %v112
    %858 = vmatpush1.msra.mxu0 %v111
    %859 = vmatprep.subr.mxu0 %v110
    %860 = vmatpush1.msra.mxu0 %v109
    %861 = vmatprep.subr.mxu0 %v108
    %862 = vmatpush1.msra.mxu0 %v107
    %863 = vmatprep.subr.mxu0 %v106
    %864 = vmatpush1.msra.mxu0 %v105
    %865 = vmatprep.subr.mxu0 %v104
    %866 = vmatpush1.msra.mxu0 %v103
    %867 = vmatprep.subr.mxu0 %v102
    %868 = vmatpush1.msra.mxu0 %v101
    %869 = vmatprep.subr.mxu0 0.0
    %870 = vmatpush2.msra.mxu0 0.0
    %871 = vmatprep.subr.mxu0 0.0
    %872 = vmatpush2.msra.mxu0 0.0
    %873 = vmatprep.subr.mxu0 0.0
    %874 = vmatpush2.msra.mxu0 0.0
    %875 = vmatprep.subr.mxu0 0.0
    %876 = vmatpush2.msra.mxu0 0.0
    %877 = vmatprep.subr.mxu0 0.0
    %878 = vmatpush2.msra.mxu0 0.0
    %879 = vmatprep.subr.mxu0 0.0
    %880 = vmatpush2.msra.mxu0 0.0
    %881 = vmatprep.subr.mxu0 0.0
    %882 = vmatpush2.msra.mxu0 0.0
    %883 = vmatprep.subr.mxu0 0.0
    %884 = vmatpush2.msra.mxu0 0.0
    %885 = vmatprep.subr.mxu0 0.0
    %886 = vmatpush2.msra.mxu0 0.0
    %887 = vmatprep.subr.mxu0 0.0
    %888 = vmatpush2.msra.mxu0 0.0
    %889 = vmatprep.subr.mxu0 0.0
    %890 = vmatpush2.msra.mxu0 0.0
    %891 = vmatprep.subr.mxu0 0.0
    %892 = vmatpush2.msra.mxu0 0.0
    %893 = vmatprep.subr.mxu0 0.0
    %894 = vmatpush2.msra.mxu0 0.0
    %895 = vmatprep.subr.mxu0 0.0
    %896 = vmatpush2.msra.mxu0 0.0
    %897 = vmatprep.subr.mxu0 0.0
    %898 = vmatpush2.msra.mxu0 0.0
    %899 = vmatprep.subr.mxu0 0.0
    %900 = vmatpush2.msra.mxu0 0.0
    %901 = vmatprep.mubr.f32.mxu0 0.0
    %902 = vmatmul.mubr.f32.gmra.mxu0 %v835
    %v903 = vpop.f32.mrf.mxu0
    %v904 = vadd.f32 0.0, %v903
    %v905 = vpop.f32.mrf.mxu0
    %v906 = vadd.f32 0.0, %v905
    %907 = vdwg.mxu0
    %v909 = vsel %vm833, %v831, 0
    %911 = vmatprep.subr.mxu0 0.0
    %912 = vmatpush1.msra.mxu0 0.0
    %913 = vmatprep.subr.mxu0 0.0
    %914 = vmatpush1.msra.mxu0 0.0
    %915 = vmatprep.subr.mxu0 0.0
    %916 = vmatpush1.msra.mxu0 0.0
    %917 = vmatprep.subr.mxu0 0.0
    %918 = vmatpush1.msra.mxu0 0.0
    %919 = vmatprep.subr.mxu0 0.0
    %920 = vmatpush1.msra.mxu0 0.0
    %921 = vmatprep.subr.mxu0 0.0
    %922 = vmatpush1.msra.mxu0 0.0
    %923 = vmatprep.subr.mxu0 0.0
    %924 = vmatpush1.msra.mxu0 0.0
    %925 = vmatprep.subr.mxu0 0.0
    %926 = vmatpush1.msra.mxu0 0.0
    %927 = vmatprep.subr.mxu0 %v116
    %928 = vmatpush1.msra.mxu0 %v115
    %929 = vmatprep.subr.mxu0 %v114
    %930 = vmatpush1.msra.mxu0 %v113
    %931 = vmatprep.subr.mxu0 %v112
    %932 = vmatpush1.msra.mxu0 %v111
    %933 = vmatprep.subr.mxu0 %v110
    %934 = vmatpush1.msra.mxu0 %v109
    %935 = vmatprep.subr.mxu0 %v108
    %936 = vmatpush1.msra.mxu0 %v107
    %937 = vmatprep.subr.mxu0 %v106
    %938 = vmatpush1.msra.mxu0 %v105
    %939 = vmatprep.subr.mxu0 %v104
    %940 = vmatpush1.msra.mxu0 %v103
    %941 = vmatprep.subr.mxu0 %v102
    %942 = vmatpush1.msra.mxu0 %v101
    %943 = vmatprep.subr.mxu0 0.0
    %944 = vmatpush2.msra.mxu0 0.0
    %945 = vmatprep.subr.mxu0 0.0
    %946 = vmatpush2.msra.mxu0 0.0
    %947 = vmatprep.subr.mxu0 0.0
    %948 = vmatpush2.msra.mxu0 0.0
    %949 = vmatprep.subr.mxu0 0.0
    %950 = vmatpush2.msra.mxu0 0.0
    %951 = vmatprep.subr.mxu0 0.0
    %952 = vmatpush2.msra.mxu0 0.0
    %953 = vmatprep.subr.mxu0 0.0
    %954 = vmatpush2.msra.mxu0 0.0
    %955 = vmatprep.subr.mxu0 0.0
    %956 = vmatpush2.msra.mxu0 0.0
    %957 = vmatprep.subr.mxu0 0.0
    %958 = vmatpush2.msra.mxu0 0.0
    %959 = vmatprep.subr.mxu0 0.0
    %960 = vmatpush2.msra.mxu0 0.0
    %961 = vmatprep.subr.mxu0 0.0
    %962 = vmatpush2.msra.mxu0 0.0
    %963 = vmatprep.subr.mxu0 0.0
    %964 = vmatpush2.msra.mxu0 0.0
    %965 = vmatprep.subr.mxu0 0.0
    %966 = vmatpush2.msra.mxu0 0.0
    %967 = vmatprep.subr.mxu0 0.0
    %968 = vmatpush2.msra.mxu0 0.0
    %969 = vmatprep.subr.mxu0 0.0
    %970 = vmatpush2.msra.mxu0 0.0
    %971 = vmatprep.subr.mxu0 0.0
    %972 = vmatpush2.msra.mxu0 0.0
    %973 = vmatprep.subr.mxu0 0.0
    %974 = vmatpush2.msra.mxu0 0.0
    %975 = vmatprep.mubr.f32.mxu0 0.0
    %976 = vmatmul.mubr.f32.gmra.mxu0 %v909
    %v977 = vpop.f32.mrf.mxu0
    %v978 = vadd.f32 %v904, %v977
    %v979 = vpop.f32.mrf.mxu0
    %v980 = vadd.f32 %v906, %v979
    %981 = vdwg.mxu0
    %v984 = vcombine.low %v978, %v980
    %v986 = vunpack.c.l.s4 1966171168
    %v987 = vunpack.c.0.s8 %v986
    %v988 = vlaneseq
    %v989 = vshrl.u32 %v988, 7
    %v990 = vsub.s32 %v987, %v989
    %v991 = vrot.slane %v984, %v990
    %v993 = vunpack.c.l.s4 1966171168
    %v994 = vunpack.c.0.s8 %v993
    %v995 = vlaneseq
    %v996 = vshrl.u32 %v995, 7
    %v997 = vsub.s32 %v994, %v996
    %v998 = vrot.slane %v991, %v997
    %v1000 = vlaneseq
    %vm1001 = vcmp.ge.s32.totalorder %v1000, 0
    %vm1002 = vcmp.lt.s32.totalorder %v1000, 256
    %vm1003 = vmand %vm1001, %vm1002
    %1004 = vst.msk [vmem:[%s12] sm:$0x3] %vm1003, %v998
    %v1005 = vld [vmem:[%s2] sm:$0xff]
    %v1006 = vlaneseq
    %v1007 = vshrl.u32 %v1006, 7
    %v1008 = vsub.s32 0, %v1007
    %v1009 = vrot.slane %v978, %v1008
    %v1010 = vlaneseq
    %v1011 = vshrl.u32 %v1010, 7
    %v1012 = vsub.s32 0, %v1011
    %v1013 = vrot.slane %v980, %v1012
    %v1015 = vcombine.high %v1005, %v1005
    %v1017 = vmul.f32 %v1009, %v1005
    %v1018 = vmul.f32 %v1013, %v1015
    %s1019 = sld [smem:[#allocation8]]
    %v1020 = vstv %s1019
    %v1021 = vmul.f32 %v1020, %v1017
    %v1022 = vmul.f32 %v1020, %v1018
    %s1023 = sld [smem:[#allocation8 + $0x1]]
    %v1024 = vstv %s1023
    %v1025 = vmul.f32 %v1024, %v1017
    %v1026 = vmul.f32 %v1024, %v1018
    %v1029 = vrot.slane %v1025, 1
    %v1030 = vrot.slane %v1026, 1
    %v1033 = vadd.f32 %v1021, %v1029
    %v1034 = vadd.f32 %v1022, %v1030
    %s1035 = sld [smem:[#allocation8 + $0x2]]
    %v1036 = vstv %s1035
    %v1037 = vmul.f32 %v1036, %v1017
    %v1038 = vmul.f32 %v1036, %v1018
    %v1041 = vrot.slane %v1037, 2
    %v1042 = vrot.slane %v1038, 2
    %v1045 = vadd.f32 %v1033, %v1041
    %v1046 = vadd.f32 %v1034, %v1042
    %s1047 = sld [smem:[#allocation8 + $0x3]]
    %v1048 = vstv %s1047
    %v1049 = vmul.f32 %v1048, %v1017
    %v1050 = vmul.f32 %v1048, %v1018
    %v1053 = vrot.slane %v1049, 3
    %v1054 = vrot.slane %v1050, 3
    %v1057 = vadd.f32 %v1045, %v1053
    %v1058 = vadd.f32 %v1046, %v1054
    %s1059 = sld [smem:[#allocation10]]
    %v1060 = vstv %s1059
    %v1061 = vadd.f32 %v1057, %v1060
    %v1062 = vadd.f32 %v1058, %v1060
    %s1063 = sld [smem:[#allocation8 + $0x80]]
    %v1064 = vstv %s1063
    %v1065 = vmul.f32 %v1064, %v1017
    %v1066 = vmul.f32 %v1064, %v1018
    %s1067 = sld [smem:[#allocation8 + $0x81]]
    %v1068 = vstv %s1067
    %v1069 = vmul.f32 %v1068, %v1017
    %v1070 = vmul.f32 %v1068, %v1018
    %v1073 = vrot.slane %v1069, 1
    %v1074 = vrot.slane %v1070, 1
    %v1077 = vadd.f32 %v1065, %v1073
    %v1078 = vadd.f32 %v1066, %v1074
    %s1079 = sld [smem:[#allocation8 + $0x82]]
    %v1080 = vstv %s1079
    %v1081 = vmul.f32 %v1080, %v1017
    %v1082 = vmul.f32 %v1080, %v1018
    %v1085 = vrot.slane %v1081, 2
    %v1086 = vrot.slane %v1082, 2
    %v1089 = vadd.f32 %v1077, %v1085
    %v1090 = vadd.f32 %v1078, %v1086
    %s1091 = sld [smem:[#allocation8 + $0x83]]
    %v1092 = vstv %s1091
    %v1093 = vmul.f32 %v1092, %v1017
    %v1094 = vmul.f32 %v1092, %v1018
    %v1097 = vrot.slane %v1093, 3
    %v1098 = vrot.slane %v1094, 3
    %v1101 = vadd.f32 %v1089, %v1097
    %v1102 = vadd.f32 %v1090, %v1098
    %s1103 = sld [smem:[#allocation10 + $0x1]]
    %v1104 = vstv %s1103
    %v1105 = vadd.f32 %v1101, %v1104
    %v1106 = vadd.f32 %v1102, %v1104
    %s1107 = sld [smem:[#allocation8 + $0x100]]
    %v1108 = vstv %s1107
    %v1109 = vmul.f32 %v1108, %v1017
    %v1110 = vmul.f32 %v1108, %v1018
    %s1111 = sld [smem:[#allocation8 + $0x101]]
    %v1112 = vstv %s1111
    %v1113 = vmul.f32 %v1112, %v1017
    %v1114 = vmul.f32 %v1112, %v1018
    %v1117 = vrot.slane %v1113, 1
    %v1118 = vrot.slane %v1114, 1
    %v1121 = vadd.f32 %v1109, %v1117
    %v1122 = vadd.f32 %v1110, %v1118
    %s1123 = sld [smem:[#allocation8 + $0x102]]
    %v1124 = vstv %s1123
    %v1125 = vmul.f32 %v1124, %v1017
    %v1126 = vmul.f32 %v1124, %v1018
    %v1129 = vrot.slane %v1125, 2
    %v1130 = vrot.slane %v1126, 2
    %v1133 = vadd.f32 %v1121, %v1129
    %v1134 = vadd.f32 %v1122, %v1130
    %s1135 = sld [smem:[#allocation8 + $0x103]]
    %v1136 = vstv %s1135
    %v1137 = vmul.f32 %v1136, %v1017
    %v1138 = vmul.f32 %v1136, %v1018
    %v1141 = vrot.slane %v1137, 3
    %v1142 = vrot.slane %v1138, 3
    %v1145 = vadd.f32 %v1133, %v1141
    %v1146 = vadd.f32 %v1134, %v1142
    %s1147 = sld [smem:[#allocation10 + $0x2]]
    %v1148 = vstv %s1147
    %v1149 = vadd.f32 %v1145, %v1148
    %v1150 = vadd.f32 %v1146, %v1148
    %s1151 = sld [smem:[#allocation8 + $0x180]]
    %v1152 = vstv %s1151
    %v1153 = vmul.f32 %v1152, %v1017
    %v1154 = vmul.f32 %v1152, %v1018
    %s1155 = sld [smem:[#allocation8 + $0x181]]
    %v1156 = vstv %s1155
    %v1157 = vmul.f32 %v1156, %v1017
    %v1158 = vmul.f32 %v1156, %v1018
    %v1161 = vrot.slane %v1157, 1
    %v1162 = vrot.slane %v1158, 1
    %v1165 = vadd.f32 %v1153, %v1161
    %v1166 = vadd.f32 %v1154, %v1162
    %s1167 = sld [smem:[#allocation8 + $0x182]]
    %v1168 = vstv %s1167
    %v1169 = vmul.f32 %v1168, %v1017
    %v1170 = vmul.f32 %v1168, %v1018
    %v1173 = vrot.slane %v1169, 2
    %v1174 = vrot.slane %v1170, 2
    %v1177 = vadd.f32 %v1165, %v1173
    %v1178 = vadd.f32 %v1166, %v1174
    %s1179 = sld [smem:[#allocation8 + $0x183]]
    %v1180 = vstv %s1179
    %v1181 = vmul.f32 %v1180, %v1017
    %v1182 = vmul.f32 %v1180, %v1018
    %v1185 = vrot.slane %v1181, 3
    %v1186 = vrot.slane %v1182, 3
    %v1189 = vadd.f32 %v1177, %v1185
    %v1190 = vadd.f32 %v1178, %v1186
    %s1191 = sld [smem:[#allocation10 + $0x3]]
    %v1192 = vstv %s1191
    %v1193 = vadd.f32 %v1189, %v1192
    %v1194 = vadd.f32 %v1190, %v1192
    %v1197 = vrot.slane %v1105, 7
    %v1198 = vrot.slane %v1106, 7
    %v1203 = vrot.slane %v1149, 6
    %v1204 = vrot.slane %v1150, 6
    %v1209 = vrot.slane %v1193, 5
    %v1210 = vrot.slane %v1194, 5
    %v1213 = vsel %vm441, %v1061, %v1197
    %v1214 = vsel %vm441, %v1062, %v1198
    %vm1215 = vcmask 1041408
    %v1216 = vsel %vm1215, %v1213, %v1203
    %v1217 = vsel %vm1215, %v1214, %v1204
    %vm1218 = vcmask 1042432
    %v1219 = vsel %vm1218, %v1216, %v1209
    %v1220 = vsel %vm1218, %v1217, %v1210
    %v1223 = vcombine.low %v1219, %v1220
    %1225 = vst [vmem:[%s11] sm:$0xff] %v1223
    %s1226 = scalar_lea.vmem %s0, 16
    %v1227 = vld [vmem:[%s1226] sm:$0xff]
    %v1228 = vld [vmem:[%s1226 + $0x8] sm:$0xff]
    %s1229 = scalar_lea.vmem %s1, 24
    %v1230 = vld [vmem:[%s1229] sm:$0xff]
    %v1231 = vld [vmem:[%s1229 + $0x8] sm:$0xff]
    %v1232 = vld [vmem:[%s1229 + $0x10] sm:$0xff]
    %s1233 = sld [smem:[#allocation5]]
    %v1234 = vstv %s1233
    %v1235 = vmul.f32 %v1234, %v1230
    %s1236 = sld [smem:[#allocation5 + $0x1]]
    %v1237 = vstv %s1236
    %v1238 = vmul.f32 %v1237, %v1230
    %v1240 = vrot.slane %v1238, 1
    %v1242 = vadd.f32 %v1235, %v1240
    %s1243 = sld [smem:[#allocation5 + $0x2]]
    %v1244 = vstv %s1243
    %v1245 = vmul.f32 %v1244, %v1230
    %v1247 = vrot.slane %v1245, 2
    %v1249 = vadd.f32 %v1242, %v1247
    %s1250 = sld [smem:[#allocation5 + $0x3]]
    %v1251 = vstv %s1250
    %v1252 = vmul.f32 %v1251, %v1230
    %v1254 = vrot.slane %v1252, 3
    %v1256 = vadd.f32 %v1249, %v1254
    %s1257 = sld [smem:[#allocation5 + $0x4]]
    %v1258 = vstv %s1257
    %v1259 = vmul.f32 %v1258, %v1230
    %v1261 = vrot.slane %v1259, 4
    %v1263 = vadd.f32 %v1256, %v1261
    %s1264 = sld [smem:[#allocation5 + $0x5]]
    %v1265 = vstv %s1264
    %v1266 = vmul.f32 %v1265, %v1230
    %v1268 = vrot.slane %v1266, 5
    %v1270 = vadd.f32 %v1263, %v1268
    %s1271 = sld [smem:[#allocation5 + $0x6]]
    %v1272 = vstv %s1271
    %v1273 = vmul.f32 %v1272, %v1230
    %v1275 = vrot.slane %v1273, 6
    %v1277 = vadd.f32 %v1270, %v1275
    %s1278 = sld [smem:[#allocation5 + $0x7]]
    %v1279 = vstv %s1278
    %v1280 = vmul.f32 %v1279, %v1230
    %v1282 = vrot.slane %v1280, 7
    %v1284 = vadd.f32 %v1277, %v1282
    %s1285 = sld [smem:[#allocation5 + $0x8]]
    %v1286 = vstv %s1285
    %v1287 = vmul.f32 %v1286, %v1231
    %v1288 = vadd.f32 %v1284, %v1287
    %s1289 = sld [smem:[#allocation5 + $0x9]]
    %v1290 = vstv %s1289
    %v1291 = vmul.f32 %v1290, %v1231
    %v1293 = vrot.slane %v1291, 1
    %v1295 = vadd.f32 %v1288, %v1293
    %s1296 = sld [smem:[#allocation5 + $0xa]]
    %v1297 = vstv %s1296
    %v1298 = vmul.f32 %v1297, %v1231
    %v1300 = vrot.slane %v1298, 2
    %v1302 = vadd.f32 %v1295, %v1300
    %s1303 = sld [smem:[#allocation5 + $0xb]]
    %v1304 = vstv %s1303
    %v1305 = vmul.f32 %v1304, %v1231
    %v1307 = vrot.slane %v1305, 3
    %v1309 = vadd.f32 %v1302, %v1307
    %s1310 = sld [smem:[#allocation5 + $0xc]]
    %v1311 = vstv %s1310
    %v1312 = vmul.f32 %v1311, %v1231
    %v1314 = vrot.slane %v1312, 4
    %v1316 = vadd.f32 %v1309, %v1314
    %s1317 = sld [smem:[#allocation5 + $0xd]]
    %v1318 = vstv %s1317
    %v1319 = vmul.f32 %v1318, %v1231
    %v1321 = vrot.slane %v1319, 5
    %v1323 = vadd.f32 %v1316, %v1321
    %s1324 = sld [smem:[#allocation5 + $0xe]]
    %v1325 = vstv %s1324
    %v1326 = vmul.f32 %v1325, %v1231
    %v1328 = vrot.slane %v1326, 6
    %v1330 = vadd.f32 %v1323, %v1328
    %s1331 = sld [smem:[#allocation5 + $0xf]]
    %v1332 = vstv %s1331
    %v1333 = vmul.f32 %v1332, %v1231
    %v1335 = vrot.slane %v1333, 7
    %v1337 = vadd.f32 %v1330, %v1335
    %s1338 = sld [smem:[#allocation5 + $0x10]]
    %v1339 = vstv %s1338
    %v1340 = vmul.f32 %v1339, %v1232
    %v1341 = vadd.f32 %v1337, %v1340
    %s1342 = sld [smem:[#allocation5 + $0x11]]
    %v1343 = vstv %s1342
    %v1344 = vmul.f32 %v1343, %v1232
    %v1346 = vrot.slane %v1344, 1
    %v1348 = vadd.f32 %v1341, %v1346
    %s1349 = sld [smem:[#allocation5 + $0x12]]
    %v1350 = vstv %s1349
    %v1351 = vmul.f32 %v1350, %v1232
    %v1353 = vrot.slane %v1351, 2
    %v1355 = vadd.f32 %v1348, %v1353
    %s1356 = sld [smem:[#allocation5 + $0x13]]
    %v1357 = vstv %s1356
    %v1358 = vmul.f32 %v1357, %v1232
    %v1360 = vrot.slane %v1358, 3
    %v1362 = vadd.f32 %v1355, %v1360
    %s1363 = sld [smem:[#allocation5 + $0x14]]
    %v1364 = vstv %s1363
    %v1365 = vmul.f32 %v1364, %v1232
    %v1367 = vrot.slane %v1365, 4
    %v1369 = vadd.f32 %v1362, %v1367
    %s1370 = sld [smem:[#allocation5 + $0x15]]
    %v1371 = vstv %s1370
    %v1372 = vmul.f32 %v1371, %v1232
    %v1374 = vrot.slane %v1372, 5
    %v1376 = vadd.f32 %v1369, %v1374
    %s1377 = sld [smem:[#allocation5 + $0x16]]
    %v1378 = vstv %s1377
    %v1379 = vmul.f32 %v1378, %v1232
    %v1381 = vrot.slane %v1379, 6
    %v1383 = vadd.f32 %v1376, %v1381
    %s1384 = sld [smem:[#allocation5 + $0x17]]
    %v1385 = vstv %s1384
    %v1386 = vmul.f32 %v1385, %v1232
    %v1388 = vrot.slane %v1386, 7
    %v1390 = vadd.f32 %v1383, %v1388
    %s1391 = sld [smem:[#allocation5 + $0x80]]
    %v1392 = vstv %s1391
    %v1393 = vmul.f32 %v1392, %v1230
    %s1394 = sld [smem:[#allocation5 + $0x81]]
    %v1395 = vstv %s1394
    %v1396 = vmul.f32 %v1395, %v1230
    %v1398 = vrot.slane %v1396, 1
    %v1400 = vadd.f32 %v1393, %v1398
    %s1401 = sld [smem:[#allocation5 + $0x82]]
    %v1402 = vstv %s1401
    %v1403 = vmul.f32 %v1402, %v1230
    %v1405 = vrot.slane %v1403, 2
    %v1407 = vadd.f32 %v1400, %v1405
    %s1408 = sld [smem:[#allocation5 + $0x83]]
    %v1409 = vstv %s1408
    %v1410 = vmul.f32 %v1409, %v1230
    %v1412 = vrot.slane %v1410, 3
    %v1414 = vadd.f32 %v1407, %v1412
    %s1415 = sld [smem:[#allocation5 + $0x84]]
    %v1416 = vstv %s1415
    %v1417 = vmul.f32 %v1416, %v1230
    %v1419 = vrot.slane %v1417, 4
    %v1421 = vadd.f32 %v1414, %v1419
    %s1422 = sld [smem:[#allocation5 + $0x85]]
    %v1423 = vstv %s1422
    %v1424 = vmul.f32 %v1423, %v1230
    %v1426 = vrot.slane %v1424, 5
    %v1428 = vadd.f32 %v1421, %v1426
    %s1429 = sld [smem:[#allocation5 + $0x86]]
    %v1430 = vstv %s1429
    %v1431 = vmul.f32 %v1430, %v1230
    %v1433 = vrot.slane %v1431, 6
    %v1435 = vadd.f32 %v1428, %v1433
    %s1436 = sld [smem:[#allocation5 + $0x87]]
    %v1437 = vstv %s1436
    %v1438 = vmul.f32 %v1437, %v1230
    %v1440 = vrot.slane %v1438, 7
    %v1442 = vadd.f32 %v1435, %v1440
    %s1443 = sld [smem:[#allocation5 + $0x88]]
    %v1444 = vstv %s1443
    %v1445 = vmul.f32 %v1444, %v1231
    %v1446 = vadd.f32 %v1442, %v1445
    %s1447 = sld [smem:[#allocation5 + $0x89]]
    %v1448 = vstv %s1447
    %v1449 = vmul.f32 %v1448, %v1231
    %v1451 = vrot.slane %v1449, 1
    %v1453 = vadd.f32 %v1446, %v1451
    %s1454 = sld [smem:[#allocation5 + $0x8a]]
    %v1455 = vstv %s1454
    %v1456 = vmul.f32 %v1455, %v1231
    %v1458 = vrot.slane %v1456, 2
    %v1460 = vadd.f32 %v1453, %v1458
    %s1461 = sld [smem:[#allocation5 + $0x8b]]
    %v1462 = vstv %s1461
    %v1463 = vmul.f32 %v1462, %v1231
    %v1465 = vrot.slane %v1463, 3
    %v1467 = vadd.f32 %v1460, %v1465
    %s1468 = sld [smem:[#allocation5 + $0x8c]]
    %v1469 = vstv %s1468
    %v1470 = vmul.f32 %v1469, %v1231
    %v1472 = vrot.slane %v1470, 4
    %v1474 = vadd.f32 %v1467, %v1472
    %s1475 = sld [smem:[#allocation5 + $0x8d]]
    %v1476 = vstv %s1475
    %v1477 = vmul.f32 %v1476, %v1231
    %v1479 = vrot.slane %v1477, 5
    %v1481 = vadd.f32 %v1474, %v1479
    %s1482 = sld [smem:[#allocation5 + $0x8e]]
    %v1483 = vstv %s1482
    %v1484 = vmul.f32 %v1483, %v1231
    %v1486 = vrot.slane %v1484, 6
    %v1488 = vadd.f32 %v1481, %v1486
    %s1489 = sld [smem:[#allocation5 + $0x8f]]
    %v1490 = vstv %s1489
    %v1491 = vmul.f32 %v1490, %v1231
    %v1493 = vrot.slane %v1491, 7
    %v1495 = vadd.f32 %v1488, %v1493
    %s1496 = sld [smem:[#allocation5 + $0x90]]
    %v1497 = vstv %s1496
    %v1498 = vmul.f32 %v1497, %v1232
    %v1499 = vadd.f32 %v1495, %v1498
    %s1500 = sld [smem:[#allocation5 + $0x91]]
    %v1501 = vstv %s1500
    %v1502 = vmul.f32 %v1501, %v1232
    %v1504 = vrot.slane %v1502, 1
    %v1506 = vadd.f32 %v1499, %v1504
    %s1507 = sld [smem:[#allocation5 + $0x92]]
    %v1508 = vstv %s1507
    %v1509 = vmul.f32 %v1508, %v1232
    %v1511 = vrot.slane %v1509, 2
    %v1513 = vadd.f32 %v1506, %v1511
    %s1514 = sld [smem:[#allocation5 + $0x93]]
    %v1515 = vstv %s1514
    %v1516 = vmul.f32 %v1515, %v1232
    %v1518 = vrot.slane %v1516, 3
    %v1520 = vadd.f32 %v1513, %v1518
    %s1521 = sld [smem:[#allocation5 + $0x94]]
    %v1522 = vstv %s1521
    %v1523 = vmul.f32 %v1522, %v1232
    %v1525 = vrot.slane %v1523, 4
    %v1527 = vadd.f32 %v1520, %v1525
    %s1528 = sld [smem:[#allocation5 + $0x95]]
    %v1529 = vstv %s1528
    %v1530 = vmul.f32 %v1529, %v1232
    %v1532 = vrot.slane %v1530, 5
    %v1534 = vadd.f32 %v1527, %v1532
    %s1535 = sld [smem:[#allocation5 + $0x96]]
    %v1536 = vstv %s1535
    %v1537 = vmul.f32 %v1536, %v1232
    %v1539 = vrot.slane %v1537, 6
    %v1541 = vadd.f32 %v1534, %v1539
    %s1542 = sld [smem:[#allocation5 + $0x97]]
    %v1543 = vstv %s1542
    %v1544 = vmul.f32 %v1543, %v1232
    %v1546 = vrot.slane %v1544, 7
    %v1548 = vadd.f32 %v1541, %v1546
    %v1550 = vrot.slane %v1548, 7
    %v1552 = vsel %vm441, %v1390, %v1550
    %v1553 = vpack.c.bf16 %v1552, %v1552
    %v1554 = vunpack.c.l.bf16 %v1553
    %v1555 = vsub.f32 %v1552, %v1554
    %v1557 = vsel %vm446, %v1555, 0
    %1559 = vmatprep.subr.mxu0 0.0
    %1560 = vmatpush1.msra.mxu0 0.0
    %1561 = vmatprep.subr.mxu0 0.0
    %1562 = vmatpush1.msra.mxu0 0.0
    %1563 = vmatprep.subr.mxu0 0.0
    %1564 = vmatpush1.msra.mxu0 0.0
    %1565 = vmatprep.subr.mxu0 0.0
    %1566 = vmatpush1.msra.mxu0 0.0
    %1567 = vmatprep.subr.mxu0 0.0
    %1568 = vmatpush1.msra.mxu0 0.0
    %1569 = vmatprep.subr.mxu0 0.0
    %1570 = vmatpush1.msra.mxu0 0.0
    %1571 = vmatprep.subr.mxu0 0.0
    %1572 = vmatpush1.msra.mxu0 0.0
    %1573 = vmatprep.subr.mxu0 0.0
    %1574 = vmatpush1.msra.mxu0 0.0
    %1575 = vmatprep.subr.mxu0 0.0
    %1576 = vmatpush1.msra.mxu0 0.0
    %1577 = vmatprep.subr.mxu0 0.0
    %1578 = vmatpush1.msra.mxu0 0.0
    %1579 = vmatprep.subr.mxu0 0.0
    %1580 = vmatpush1.msra.mxu0 0.0
    %1581 = vmatprep.subr.mxu0 0.0
    %1582 = vmatpush1.msra.mxu0 0.0
    %1583 = vmatprep.subr.mxu0 0.0
    %1584 = vmatpush1.msra.mxu0 0.0
    %1585 = vmatprep.subr.mxu0 0.0
    %1586 = vmatpush1.msra.mxu0 0.0
    %1587 = vmatprep.subr.mxu0 0.0
    %1588 = vmatpush1.msra.mxu0 0.0
    %1589 = vmatprep.subr.mxu0 0.0
    %1590 = vmatpush1.msra.mxu0 %v452
    %1591 = vmatprep.subr.mxu0 0.0
    %1592 = vmatpush2.msra.mxu0 0.0
    %1593 = vmatprep.subr.mxu0 0.0
    %1594 = vmatpush2.msra.mxu0 0.0
    %1595 = vmatprep.subr.mxu0 0.0
    %1596 = vmatpush2.msra.mxu0 0.0
    %1597 = vmatprep.subr.mxu0 0.0
    %1598 = vmatpush2.msra.mxu0 0.0
    %1599 = vmatprep.subr.mxu0 0.0
    %1600 = vmatpush2.msra.mxu0 0.0
    %1601 = vmatprep.subr.mxu0 0.0
    %1602 = vmatpush2.msra.mxu0 0.0
    %1603 = vmatprep.subr.mxu0 0.0
    %1604 = vmatpush2.msra.mxu0 0.0
    %1605 = vmatprep.subr.mxu0 0.0
    %1606 = vmatpush2.msra.mxu0 0.0
    %1607 = vmatprep.subr.mxu0 0.0
    %1608 = vmatpush2.msra.mxu0 0.0
    %1609 = vmatprep.subr.mxu0 0.0
    %1610 = vmatpush2.msra.mxu0 0.0
    %1611 = vmatprep.subr.mxu0 0.0
    %1612 = vmatpush2.msra.mxu0 0.0
    %1613 = vmatprep.subr.mxu0 0.0
    %1614 = vmatpush2.msra.mxu0 0.0
    %1615 = vmatprep.subr.mxu0 0.0
    %1616 = vmatpush2.msra.mxu0 0.0
    %1617 = vmatprep.subr.mxu0 0.0
    %1618 = vmatpush2.msra.mxu0 0.0
    %1619 = vmatprep.subr.mxu0 0.0
    %1620 = vmatpush2.msra.mxu0 0.0
    %1621 = vmatprep.subr.mxu0 0.0
    %1622 = vmatpush2.msra.mxu0 0.0
    %1623 = vmatprep.mubr.f32.mxu0 0.0
    %1624 = vmatmul.mubr.f32.gmra.mxu0 %v1557
    %v1625 = vpop.f32.mrf.mxu0
    %v1626 = vadd.f32 0.0, %v1625
    %v1627 = vpop.f32.mrf.mxu0
    %1628 = vdwg.mxu0
    %v1630 = vsel %vm446, %v1554, 0
    %1632 = vmatprep.subr.mxu0 0.0
    %1633 = vmatpush1.msra.mxu0 0.0
    %1634 = vmatprep.subr.mxu0 0.0
    %1635 = vmatpush1.msra.mxu0 0.0
    %1636 = vmatprep.subr.mxu0 0.0
    %1637 = vmatpush1.msra.mxu0 0.0
    %1638 = vmatprep.subr.mxu0 0.0
    %1639 = vmatpush1.msra.mxu0 0.0
    %1640 = vmatprep.subr.mxu0 0.0
    %1641 = vmatpush1.msra.mxu0 0.0
    %1642 = vmatprep.subr.mxu0 0.0
    %1643 = vmatpush1.msra.mxu0 0.0
    %1644 = vmatprep.subr.mxu0 0.0
    %1645 = vmatpush1.msra.mxu0 0.0
    %1646 = vmatprep.subr.mxu0 0.0
    %1647 = vmatpush1.msra.mxu0 0.0
    %1648 = vmatprep.subr.mxu0 0.0
    %1649 = vmatpush1.msra.mxu0 0.0
    %1650 = vmatprep.subr.mxu0 0.0
    %1651 = vmatpush1.msra.mxu0 0.0
    %1652 = vmatprep.subr.mxu0 0.0
    %1653 = vmatpush1.msra.mxu0 0.0
    %1654 = vmatprep.subr.mxu0 0.0
    %1655 = vmatpush1.msra.mxu0 0.0
    %1656 = vmatprep.subr.mxu0 0.0
    %1657 = vmatpush1.msra.mxu0 0.0
    %1658 = vmatprep.subr.mxu0 0.0
    %1659 = vmatpush1.msra.mxu0 0.0
    %1660 = vmatprep.subr.mxu0 0.0
    %1661 = vmatpush1.msra.mxu0 0.0
    %1662 = vmatprep.subr.mxu0 0.0
    %1663 = vmatpush1.msra.mxu0 %v452
    %1664 = vmatprep.subr.mxu0 0.0
    %1665 = vmatpush2.msra.mxu0 0.0
    %1666 = vmatprep.subr.mxu0 0.0
    %1667 = vmatpush2.msra.mxu0 0.0
    %1668 = vmatprep.subr.mxu0 0.0
    %1669 = vmatpush2.msra.mxu0 0.0
    %1670 = vmatprep.subr.mxu0 0.0
    %1671 = vmatpush2.msra.mxu0 0.0
    %1672 = vmatprep.subr.mxu0 0.0
    %1673 = vmatpush2.msra.mxu0 0.0
    %1674 = vmatprep.subr.mxu0 0.0
    %1675 = vmatpush2.msra.mxu0 0.0
    %1676 = vmatprep.subr.mxu0 0.0
    %1677 = vmatpush2.msra.mxu0 0.0
    %1678 = vmatprep.subr.mxu0 0.0
    %1679 = vmatpush2.msra.mxu0 0.0
    %1680 = vmatprep.subr.mxu0 0.0
    %1681 = vmatpush2.msra.mxu0 0.0
    %1682 = vmatprep.subr.mxu0 0.0
    %1683 = vmatpush2.msra.mxu0 0.0
    %1684 = vmatprep.subr.mxu0 0.0
    %1685 = vmatpush2.msra.mxu0 0.0
    %1686 = vmatprep.subr.mxu0 0.0
    %1687 = vmatpush2.msra.mxu0 0.0
    %1688 = vmatprep.subr.mxu0 0.0
    %1689 = vmatpush2.msra.mxu0 0.0
    %1690 = vmatprep.subr.mxu0 0.0
    %1691 = vmatpush2.msra.mxu0 0.0
    %1692 = vmatprep.subr.mxu0 0.0
    %1693 = vmatpush2.msra.mxu0 0.0
    %1694 = vmatprep.subr.mxu0 0.0
    %1695 = vmatpush2.msra.mxu0 0.0
    %1696 = vmatprep.mubr.f32.mxu0 0.0
    %1697 = vmatmul.mubr.f32.gmra.mxu0 %v1630
    %v1698 = vpop.f32.mrf.mxu0
    %v1699 = vadd.f32 %v1626, %v1698
    %v1700 = vpop.f32.mrf.mxu0
    %1701 = vdwg.mxu0
    %s1702 = sld [smem:[#allocation3]]
    %v1703 = vstv %s1702
    %v1704 = vmul.f32 %v1703, %v1227
    %s1705 = sld [smem:[#allocation3 + $0x1]]
    %v1706 = vstv %s1705
    %v1707 = vmul.f32 %v1706, %v1227
    %v1709 = vrot.slane %v1707, 1
    %v1711 = vadd.f32 %v1704, %v1709
    %s1712 = sld [smem:[#allocation3 + $0x2]]
    %v1713 = vstv %s1712
    %v1714 = vmul.f32 %v1713, %v1227
    %v1716 = vrot.slane %v1714, 2
    %v1718 = vadd.f32 %v1711, %v1716
    %s1719 = sld [smem:[#allocation3 + $0x3]]
    %v1720 = vstv %s1719
    %v1721 = vmul.f32 %v1720, %v1227
    %v1723 = vrot.slane %v1721, 3
    %v1725 = vadd.f32 %v1718, %v1723
    %s1726 = sld [smem:[#allocation3 + $0x4]]
    %v1727 = vstv %s1726
    %v1728 = vmul.f32 %v1727, %v1227
    %v1730 = vrot.slane %v1728, 4
    %v1732 = vadd.f32 %v1725, %v1730
    %s1733 = sld [smem:[#allocation3 + $0x5]]
    %v1734 = vstv %s1733
    %v1735 = vmul.f32 %v1734, %v1227
    %v1737 = vrot.slane %v1735, 5
    %v1739 = vadd.f32 %v1732, %v1737
    %s1740 = sld [smem:[#allocation3 + $0x6]]
    %v1741 = vstv %s1740
    %v1742 = vmul.f32 %v1741, %v1227
    %v1744 = vrot.slane %v1742, 6
    %v1746 = vadd.f32 %v1739, %v1744
    %s1747 = sld [smem:[#allocation3 + $0x7]]
    %v1748 = vstv %s1747
    %v1749 = vmul.f32 %v1748, %v1227
    %v1751 = vrot.slane %v1749, 7
    %v1753 = vadd.f32 %v1746, %v1751
    %s1754 = sld [smem:[#allocation3 + $0x8]]
    %v1755 = vstv %s1754
    %v1756 = vmul.f32 %v1755, %v1228
    %v1757 = vadd.f32 %v1753, %v1756
    %s1758 = sld [smem:[#allocation3 + $0x9]]
    %v1759 = vstv %s1758
    %v1760 = vmul.f32 %v1759, %v1228
    %v1762 = vrot.slane %v1760, 1
    %v1764 = vadd.f32 %v1757, %v1762
    %s1765 = sld [smem:[#allocation3 + $0xa]]
    %v1766 = vstv %s1765
    %v1767 = vmul.f32 %v1766, %v1228
    %v1769 = vrot.slane %v1767, 2
    %v1771 = vadd.f32 %v1764, %v1769
    %s1772 = sld [smem:[#allocation3 + $0xb]]
    %v1773 = vstv %s1772
    %v1774 = vmul.f32 %v1773, %v1228
    %v1776 = vrot.slane %v1774, 3
    %v1778 = vadd.f32 %v1771, %v1776
    %s1779 = sld [smem:[#allocation3 + $0xc]]
    %v1780 = vstv %s1779
    %v1781 = vmul.f32 %v1780, %v1228
    %v1783 = vrot.slane %v1781, 4
    %v1785 = vadd.f32 %v1778, %v1783
    %s1786 = sld [smem:[#allocation3 + $0xd]]
    %v1787 = vstv %s1786
    %v1788 = vmul.f32 %v1787, %v1228
    %v1790 = vrot.slane %v1788, 5
    %v1792 = vadd.f32 %v1785, %v1790
    %s1793 = sld [smem:[#allocation3 + $0xe]]
    %v1794 = vstv %s1793
    %v1795 = vmul.f32 %v1794, %v1228
    %v1797 = vrot.slane %v1795, 6
    %v1799 = vadd.f32 %v1792, %v1797
    %s1800 = sld [smem:[#allocation3 + $0xf]]
    %v1801 = vstv %s1800
    %v1802 = vmul.f32 %v1801, %v1228
    %v1804 = vrot.slane %v1802, 7
    %v1806 = vadd.f32 %v1799, %v1804
    %v1807 = vadd.f32 %v1806, %v1699
    %v1808 = vmax.f32 %v1807, 0.0
    %s1809 = sld [smem:[#allocation7]]
    %v1810 = vstv %s1809
    %v1811 = vmul.f32 %v1810, %v1808
    %s1812 = sld [smem:[#allocation3 + $0x80]]
    %v1813 = vstv %s1812
    %v1814 = vmul.f32 %v1813, %v1227
    %s1815 = sld [smem:[#allocation3 + $0x81]]
    %v1816 = vstv %s1815
    %v1817 = vmul.f32 %v1816, %v1227
    %v1819 = vrot.slane %v1817, 1
    %v1821 = vadd.f32 %v1814, %v1819
    %s1822 = sld [smem:[#allocation3 + $0x82]]
    %v1823 = vstv %s1822
    %v1824 = vmul.f32 %v1823, %v1227
    %v1826 = vrot.slane %v1824, 2
    %v1828 = vadd.f32 %v1821, %v1826
    %s1829 = sld [smem:[#allocation3 + $0x83]]
    %v1830 = vstv %s1829
    %v1831 = vmul.f32 %v1830, %v1227
    %v1833 = vrot.slane %v1831, 3
    %v1835 = vadd.f32 %v1828, %v1833
    %s1836 = sld [smem:[#allocation3 + $0x84]]
    %v1837 = vstv %s1836
    %v1838 = vmul.f32 %v1837, %v1227
    %v1840 = vrot.slane %v1838, 4
    %v1842 = vadd.f32 %v1835, %v1840
    %s1843 = sld [smem:[#allocation3 + $0x85]]
    %v1844 = vstv %s1843
    %v1845 = vmul.f32 %v1844, %v1227
    %v1847 = vrot.slane %v1845, 5
    %v1849 = vadd.f32 %v1842, %v1847
    %s1850 = sld [smem:[#allocation3 + $0x86]]
    %v1851 = vstv %s1850
    %v1852 = vmul.f32 %v1851, %v1227
    %v1854 = vrot.slane %v1852, 6
    %v1856 = vadd.f32 %v1849, %v1854
    %s1857 = sld [smem:[#allocation3 + $0x87]]
    %v1858 = vstv %s1857
    %v1859 = vmul.f32 %v1858, %v1227
    %v1861 = vrot.slane %v1859, 7
    %v1863 = vadd.f32 %v1856, %v1861
    %s1864 = sld [smem:[#allocation3 + $0x88]]
    %v1865 = vstv %s1864
    %v1866 = vmul.f32 %v1865, %v1228
    %v1867 = vadd.f32 %v1863, %v1866
    %s1868 = sld [smem:[#allocation3 + $0x89]]
    %v1869 = vstv %s1868
    %v1870 = vmul.f32 %v1869, %v1228
    %v1872 = vrot.slane %v1870, 1
    %v1874 = vadd.f32 %v1867, %v1872
    %s1875 = sld [smem:[#allocation3 + $0x8a]]
    %v1876 = vstv %s1875
    %v1877 = vmul.f32 %v1876, %v1228
    %v1879 = vrot.slane %v1877, 2
    %v1881 = vadd.f32 %v1874, %v1879
    %s1882 = sld [smem:[#allocation3 + $0x8b]]
    %v1883 = vstv %s1882
    %v1884 = vmul.f32 %v1883, %v1228
    %v1886 = vrot.slane %v1884, 3
    %v1888 = vadd.f32 %v1881, %v1886
    %s1889 = sld [smem:[#allocation3 + $0x8c]]
    %v1890 = vstv %s1889
    %v1891 = vmul.f32 %v1890, %v1228
    %v1893 = vrot.slane %v1891, 4
    %v1895 = vadd.f32 %v1888, %v1893
    %s1896 = sld [smem:[#allocation3 + $0x8d]]
    %v1897 = vstv %s1896
    %v1898 = vmul.f32 %v1897, %v1228
    %v1900 = vrot.slane %v1898, 5
    %v1902 = vadd.f32 %v1895, %v1900
    %s1903 = sld [smem:[#allocation3 + $0x8e]]
    %v1904 = vstv %s1903
    %v1905 = vmul.f32 %v1904, %v1228
    %v1907 = vrot.slane %v1905, 6
    %v1909 = vadd.f32 %v1902, %v1907
    %s1910 = sld [smem:[#allocation3 + $0x8f]]
    %v1911 = vstv %s1910
    %v1912 = vmul.f32 %v1911, %v1228
    %v1914 = vrot.slane %v1912, 7
    %v1916 = vadd.f32 %v1909, %v1914
    %v1918 = vrot.slane %v1699, 1
    %v1920 = vadd.f32 %v1916, %v1918
    %v1921 = vmax.f32 %v1920, 0.0
    %s1922 = sld [smem:[#allocation7 + $0x1]]
    %v1923 = vstv %s1922
    %v1924 = vmul.f32 %v1923, %v1921
    %v1925 = vadd.f32 %v1811, %v1924
    %s1926 = sld [smem:[#allocation2]]
    %v1927 = vstv %s1926
    %v1928 = vadd.f32 %v1925, %v1927
    %v1929 = vxor.u32 %v1928, 2147483648
    %v1930 = vmul.f32 %v1929, 1.442695
    %v1931 = vpow.pop %v1930
    %v1932 = vadd.f32 %v1931, 1.0
    %v1933 = vrcp.pop %v1932
    %v1934 = vmul.f32 1.0, %v1933
    %v1935 = vpack.c.bf16 %v1934, %v1934
    %v1936 = vunpack.c.l.bf16 %v1935
    %v1937 = vsub.f32 %v1934, %v1936
    %v1939 = vsel %vm833, %v1937, 0
    %1941 = vmatprep.subr.mxu0 0.0
    %1942 = vmatpush1.msra.mxu0 0.0
    %1943 = vmatprep.subr.mxu0 0.0
    %1944 = vmatpush1.msra.mxu0 0.0
    %1945 = vmatprep.subr.mxu0 0.0
    %1946 = vmatpush1.msra.mxu0 0.0
    %1947 = vmatprep.subr.mxu0 0.0
    %1948 = vmatpush1.msra.mxu0 0.0
    %1949 = vmatprep.subr.mxu0 0.0
    %1950 = vmatpush1.msra.mxu0 0.0
    %1951 = vmatprep.subr.mxu0 0.0
    %1952 = vmatpush1.msra.mxu0 0.0
    %1953 = vmatprep.subr.mxu0 0.0
    %1954 = vmatpush1.msra.mxu0 0.0
    %1955 = vmatprep.subr.mxu0 0.0
    %1956 = vmatpush1.msra.mxu0 0.0
    %1957 = vmatprep.subr.mxu0 %v116
    %1958 = vmatpush1.msra.mxu0 %v115
    %1959 = vmatprep.subr.mxu0 %v114
    %1960 = vmatpush1.msra.mxu0 %v113
    %1961 = vmatprep.subr.mxu0 %v112
    %1962 = vmatpush1.msra.mxu0 %v111
    %1963 = vmatprep.subr.mxu0 %v110
    %1964 = vmatpush1.msra.mxu0 %v109
    %1965 = vmatprep.subr.mxu0 %v108
    %1966 = vmatpush1.msra.mxu0 %v107
    %1967 = vmatprep.subr.mxu0 %v106
    %1968 = vmatpush1.msra.mxu0 %v105
    %1969 = vmatprep.subr.mxu0 %v104
    %1970 = vmatpush1.msra.mxu0 %v103
    %1971 = vmatprep.subr.mxu0 %v102
    %1972 = vmatpush1.msra.mxu0 %v101
    %1973 = vmatprep.subr.mxu0 0.0
    %1974 = vmatpush2.msra.mxu0 0.0
    %1975 = vmatprep.subr.mxu0 0.0
    %1976 = vmatpush2.msra.mxu0 0.0
    %1977 = vmatprep.subr.mxu0 0.0
    %1978 = vmatpush2.msra.mxu0 0.0
    %1979 = vmatprep.subr.mxu0 0.0
    %1980 = vmatpush2.msra.mxu0 0.0
    %1981 = vmatprep.subr.mxu0 0.0
    %1982 = vmatpush2.msra.mxu0 0.0
    %1983 = vmatprep.subr.mxu0 0.0
    %1984 = vmatpush2.msra.mxu0 0.0
    %1985 = vmatprep.subr.mxu0 0.0
    %1986 = vmatpush2.msra.mxu0 0.0
    %1987 = vmatprep.subr.mxu0 0.0
    %1988 = vmatpush2.msra.mxu0 0.0
    %1989 = vmatprep.subr.mxu0 0.0
    %1990 = vmatpush2.msra.mxu0 0.0
    %1991 = vmatprep.subr.mxu0 0.0
    %1992 = vmatpush2.msra.mxu0 0.0
    %1993 = vmatprep.subr.mxu0 0.0
    %1994 = vmatpush2.msra.mxu0 0.0
    %1995 = vmatprep.subr.mxu0 0.0
    %1996 = vmatpush2.msra.mxu0 0.0
    %1997 = vmatprep.subr.mxu0 0.0
    %1998 = vmatpush2.msra.mxu0 0.0
    %1999 = vmatprep.subr.mxu0 0.0
    %2000 = vmatpush2.msra.mxu0 0.0
    %2001 = vmatprep.subr.mxu0 0.0
    %2002 = vmatpush2.msra.mxu0 0.0
    %2003 = vmatprep.subr.mxu0 0.0
    %2004 = vmatpush2.msra.mxu0 0.0
    %2005 = vmatprep.mubr.f32.mxu0 0.0
    %2006 = vmatmul.mubr.f32.gmra.mxu0 %v1939
    %v2007 = vpop.f32.mrf.mxu0
    %v2008 = vadd.f32 0.0, %v2007
    %v2009 = vpop.f32.mrf.mxu0
    %v2010 = vadd.f32 0.0, %v2009
    %2011 = vdwg.mxu0
    %v2013 = vsel %vm833, %v1936, 0
    %2015 = vmatprep.subr.mxu0 0.0
    %2016 = vmatpush1.msra.mxu0 0.0
    %2017 = vmatprep.subr.mxu0 0.0
    %2018 = vmatpush1.msra.mxu0 0.0
    %2019 = vmatprep.subr.mxu0 0.0
    %2020 = vmatpush1.msra.mxu0 0.0
    %2021 = vmatprep.subr.mxu0 0.0
    %2022 = vmatpush1.msra.mxu0 0.0
    %2023 = vmatprep.subr.mxu0 0.0
    %2024 = vmatpush1.msra.mxu0 0.0
    %2025 = vmatprep.subr.mxu0 0.0
    %2026 = vmatpush1.msra.mxu0 0.0
    %2027 = vmatprep.subr.mxu0 0.0
    %2028 = vmatpush1.msra.mxu0 0.0
    %2029 = vmatprep.subr.mxu0 0.0
    %2030 = vmatpush1.msra.mxu0 0.0
    %2031 = vmatprep.subr.mxu0 %v116
    %2032 = vmatpush1.msra.mxu0 %v115
    %2033 = vmatprep.subr.mxu0 %v114
    %2034 = vmatpush1.msra.mxu0 %v113
    %2035 = vmatprep.subr.mxu0 %v112
    %2036 = vmatpush1.msra.mxu0 %v111
    %2037 = vmatprep.subr.mxu0 %v110
    %2038 = vmatpush1.msra.mxu0 %v109
    %2039 = vmatprep.subr.mxu0 %v108
    %2040 = vmatpush1.msra.mxu0 %v107
    %2041 = vmatprep.subr.mxu0 %v106
    %2042 = vmatpush1.msra.mxu0 %v105
    %2043 = vmatprep.subr.mxu0 %v104
    %2044 = vmatpush1.msra.mxu0 %v103
    %2045 = vmatprep.subr.mxu0 %v102
    %2046 = vmatpush1.msra.mxu0 %v101
    %2047 = vmatprep.subr.mxu0 0.0
    %2048 = vmatpush2.msra.mxu0 0.0
    %2049 = vmatprep.subr.mxu0 0.0
    %2050 = vmatpush2.msra.mxu0 0.0
    %2051 = vmatprep.subr.mxu0 0.0
    %2052 = vmatpush2.msra.mxu0 0.0
    %2053 = vmatprep.subr.mxu0 0.0
    %2054 = vmatpush2.msra.mxu0 0.0
    %2055 = vmatprep.subr.mxu0 0.0
    %2056 = vmatpush2.msra.mxu0 0.0
    %2057 = vmatprep.subr.mxu0 0.0
    %2058 = vmatpush2.msra.mxu0 0.0
    %2059 = vmatprep.subr.mxu0 0.0
    %2060 = vmatpush2.msra.mxu0 0.0
    %2061 = vmatprep.subr.mxu0 0.0
    %2062 = vmatpush2.msra.mxu0 0.0
    %2063 = vmatprep.subr.mxu0 0.0
    %2064 = vmatpush2.msra.mxu0 0.0
    %2065 = vmatprep.subr.mxu0 0.0
    %2066 = vmatpush2.msra.mxu0 0.0
    %2067 = vmatprep.subr.mxu0 0.0
    %2068 = vmatpush2.msra.mxu0 0.0
    %2069 = vmatprep.subr.mxu0 0.0
    %2070 = vmatpush2.msra.mxu0 0.0
    %2071 = vmatprep.subr.mxu0 0.0
    %2072 = vmatpush2.msra.mxu0 0.0
    %2073 = vmatprep.subr.mxu0 0.0
    %2074 = vmatpush2.msra.mxu0 0.0
    %2075 = vmatprep.subr.mxu0 0.0
    %2076 = vmatpush2.msra.mxu0 0.0
    %2077 = vmatprep.subr.mxu0 0.0
    %2078 = vmatpush2.msra.mxu0 0.0
    %2079 = vmatprep.mubr.f32.mxu0 0.0
    %2080 = vmatmul.mubr.f32.gmra.mxu0 %v2013
    %v2081 = vpop.f32.mrf.mxu0
    %v2082 = vadd.f32 %v2008, %v2081
    %v2083 = vpop.f32.mrf.mxu0
    %v2084 = vadd.f32 %v2010, %v2083
    %2085 = vdwg.mxu0
    %v2088 = vcombine.low %v2082, %v2084
    %v2090 = vunpack.c.l.s4 1966171168
    %v2091 = vunpack.c.0.s8 %v2090
    %v2092 = vlaneseq
    %v2093 = vshrl.u32 %v2092, 7
    %v2094 = vsub.s32 %v2091, %v2093
    %v2095 = vrot.slane %v2088, %v2094
    %v2097 = vunpack.c.l.s4 1966171168
    %v2098 = vunpack.c.0.s8 %v2097
    %v2099 = vlaneseq
    %v2100 = vshrl.u32 %v2099, 7
    %v2101 = vsub.s32 %v2098, %v2100
    %v2102 = vrot.slane %v2095, %v2101
    %s2104 = scalar_lea.vmem %s12, 2
    %2105 = vst.msk [vmem:[%s2104] sm:$0x3] %vm1003, %v2102
    %s2106 = scalar_lea.vmem %s2, 8
    %v2107 = vld [vmem:[%s2106] sm:$0xff]
    %v2108 = vlaneseq
    %v2109 = vshrl.u32 %v2108, 7
    %v2110 = vsub.s32 0, %v2109
    %v2111 = vrot.slane %v2082, %v2110
    %v2112 = vlaneseq
    %v2113 = vshrl.u32 %v2112, 7
    %v2114 = vsub.s32 0, %v2113
    %v2115 = vrot.slane %v2084, %v2114
    %v2117 = vcombine.high %v2107, %v2107
    %v2119 = vmul.f32 %v2111, %v2107
    %v2120 = vmul.f32 %v2115, %v2117
    %s2121 = sld [smem:[#allocation8]]
    %v2122 = vstv %s2121
    %v2123 = vmul.f32 %v2122, %v2119
    %v2124 = vmul.f32 %v2122, %v2120
    %s2125 = sld [smem:[#allocation8 + $0x1]]
    %v2126 = vstv %s2125
    %v2127 = vmul.f32 %v2126, %v2119
    %v2128 = vmul.f32 %v2126, %v2120
    %v2131 = vrot.slane %v2127, 1
    %v2132 = vrot.slane %v2128, 1
    %v2135 = vadd.f32 %v2123, %v2131
    %v2136 = vadd.f32 %v2124, %v2132
    %s2137 = sld [smem:[#allocation8 + $0x2]]
    %v2138 = vstv %s2137
    %v2139 = vmul.f32 %v2138, %v2119
    %v2140 = vmul.f32 %v2138, %v2120
    %v2143 = vrot.slane %v2139, 2
    %v2144 = vrot.slane %v2140, 2
    %v2147 = vadd.f32 %v2135, %v2143
    %v2148 = vadd.f32 %v2136, %v2144
    %s2149 = sld [smem:[#allocation8 + $0x3]]
    %v2150 = vstv %s2149
    %v2151 = vmul.f32 %v2150, %v2119
    %v2152 = vmul.f32 %v2150, %v2120
    %v2155 = vrot.slane %v2151, 3
    %v2156 = vrot.slane %v2152, 3
    %v2159 = vadd.f32 %v2147, %v2155
    %v2160 = vadd.f32 %v2148, %v2156
    %s2161 = sld [smem:[#allocation10]]
    %v2162 = vstv %s2161
    %v2163 = vadd.f32 %v2159, %v2162
    %v2164 = vadd.f32 %v2160, %v2162
    %s2165 = sld [smem:[#allocation8 + $0x80]]
    %v2166 = vstv %s2165
    %v2167 = vmul.f32 %v2166, %v2119
    %v2168 = vmul.f32 %v2166, %v2120
    %s2169 = sld [smem:[#allocation8 + $0x81]]
    %v2170 = vstv %s2169
    %v2171 = vmul.f32 %v2170, %v2119
    %v2172 = vmul.f32 %v2170, %v2120
    %v2175 = vrot.slane %v2171, 1
    %v2176 = vrot.slane %v2172, 1
    %v2179 = vadd.f32 %v2167, %v2175
    %v2180 = vadd.f32 %v2168, %v2176
    %s2181 = sld [smem:[#allocation8 + $0x82]]
    %v2182 = vstv %s2181
    %v2183 = vmul.f32 %v2182, %v2119
    %v2184 = vmul.f32 %v2182, %v2120
    %v2187 = vrot.slane %v2183, 2
    %v2188 = vrot.slane %v2184, 2
    %v2191 = vadd.f32 %v2179, %v2187
    %v2192 = vadd.f32 %v2180, %v2188
    %s2193 = sld [smem:[#allocation8 + $0x83]]
    %v2194 = vstv %s2193
    %v2195 = vmul.f32 %v2194, %v2119
    %v2196 = vmul.f32 %v2194, %v2120
    %v2199 = vrot.slane %v2195, 3
    %v2200 = vrot.slane %v2196, 3
    %v2203 = vadd.f32 %v2191, %v2199
    %v2204 = vadd.f32 %v2192, %v2200
    %s2205 = sld [smem:[#allocation10 + $0x1]]
    %v2206 = vstv %s2205
    %v2207 = vadd.f32 %v2203, %v2206
    %v2208 = vadd.f32 %v2204, %v2206
    %s2209 = sld [smem:[#allocation8 + $0x100]]
    %v2210 = vstv %s2209
    %v2211 = vmul.f32 %v2210, %v2119
    %v2212 = vmul.f32 %v2210, %v2120
    %s2213 = sld [smem:[#allocation8 + $0x101]]
    %v2214 = vstv %s2213
    %v2215 = vmul.f32 %v2214, %v2119
    %v2216 = vmul.f32 %v2214, %v2120
    %v2219 = vrot.slane %v2215, 1
    %v2220 = vrot.slane %v2216, 1
    %v2223 = vadd.f32 %v2211, %v2219
    %v2224 = vadd.f32 %v2212, %v2220
    %s2225 = sld [smem:[#allocation8 + $0x102]]
    %v2226 = vstv %s2225
    %v2227 = vmul.f32 %v2226, %v2119
    %v2228 = vmul.f32 %v2226, %v2120
    %v2231 = vrot.slane %v2227, 2
    %v2232 = vrot.slane %v2228, 2
    %v2235 = vadd.f32 %v2223, %v2231
    %v2236 = vadd.f32 %v2224, %v2232
    %s2237 = sld [smem:[#allocation8 + $0x103]]
    %v2238 = vstv %s2237
    %v2239 = vmul.f32 %v2238, %v2119
    %v2240 = vmul.f32 %v2238, %v2120
    %v2243 = vrot.slane %v2239, 3
    %v2244 = vrot.slane %v2240, 3
    %v2247 = vadd.f32 %v2235, %v2243
    %v2248 = vadd.f32 %v2236, %v2244
    %s2249 = sld [smem:[#allocation10 + $0x2]]
    %v2250 = vstv %s2249
    %v2251 = vadd.f32 %v2247, %v2250
    %v2252 = vadd.f32 %v2248, %v2250
    %s2253 = sld [smem:[#allocation8 + $0x180]]
    %v2254 = vstv %s2253
    %v2255 = vmul.f32 %v2254, %v2119
    %v2256 = vmul.f32 %v2254, %v2120
    %s2257 = sld [smem:[#allocation8 + $0x181]]
    %v2258 = vstv %s2257
    %v2259 = vmul.f32 %v2258, %v2119
    %v2260 = vmul.f32 %v2258, %v2120
    %v2263 = vrot.slane %v2259, 1
    %v2264 = vrot.slane %v2260, 1
    %v2267 = vadd.f32 %v2255, %v2263
    %v2268 = vadd.f32 %v2256, %v2264
    %s2269 = sld [smem:[#allocation8 + $0x182]]
    %v2270 = vstv %s2269
    %v2271 = vmul.f32 %v2270, %v2119
    %v2272 = vmul.f32 %v2270, %v2120
    %v2275 = vrot.slane %v2271, 2
    %v2276 = vrot.slane %v2272, 2
    %v2279 = vadd.f32 %v2267, %v2275
    %v2280 = vadd.f32 %v2268, %v2276
    %s2281 = sld [smem:[#allocation8 + $0x183]]
    %v2282 = vstv %s2281
    %v2283 = vmul.f32 %v2282, %v2119
    %v2284 = vmul.f32 %v2282, %v2120
    %v2287 = vrot.slane %v2283, 3
    %v2288 = vrot.slane %v2284, 3
    %v2291 = vadd.f32 %v2279, %v2287
    %v2292 = vadd.f32 %v2280, %v2288
    %s2293 = sld [smem:[#allocation10 + $0x3]]
    %v2294 = vstv %s2293
    %v2295 = vadd.f32 %v2291, %v2294
    %v2296 = vadd.f32 %v2292, %v2294
    %v2299 = vrot.slane %v2207, 7
    %v2300 = vrot.slane %v2208, 7
    %v2305 = vrot.slane %v2251, 6
    %v2306 = vrot.slane %v2252, 6
    %v2311 = vrot.slane %v2295, 5
    %v2312 = vrot.slane %v2296, 5
    %v2315 = vsel %vm441, %v2163, %v2299
    %v2316 = vsel %vm441, %v2164, %v2300
    %v2317 = vsel %vm1215, %v2315, %v2305
    %v2318 = vsel %vm1215, %v2316, %v2306
    %v2319 = vsel %vm1218, %v2317, %v2311
    %v2320 = vsel %vm1218, %v2318, %v2312
    %v2323 = vcombine.low %v2319, %v2320
    %s2325 = scalar_lea.vmem %s11, 8
    %2326 = vst [vmem:[%s2325] sm:$0xff] %v2323
    // Predicated region
    $region66: #{grid_attention_forward.1} parent=1 // pred_check
      _
    $region67: #{grid_attention_forward.1} parent=1 // pred_check_branch
      %2328 = sbr.rel (0) target = $region69
    $region68: #{grid_attention_forward.1} parent=1 // pred_region
      _
    $region69: #{grid_attention_forward.1} parent=1 // pred_fallthru
      _
    // Predicated region
    $region70: #{grid_attention_forward.1} parent=1 // pred_check
      _
    $region71: #{grid_attention_forward.1} parent=1 // pred_check_branch
      %2330 = sbr.rel (0) target = $region73
    $region72: #{grid_attention_forward.1} parent=1 // pred_region
      _
    $region73: #{grid_attention_forward.1} parent=1 // pred_fallthru
      _
    // Predicated region
    $region74: #{grid_attention_forward.1} parent=1 // pred_check
      _
    $region75: #{grid_attention_forward.1} parent=1 // pred_check_branch
      %2332 = sbr.rel (0) target = $region77
    $region76: #{grid_attention_forward.1} parent=1 // pred_region
      _
    $region77: #{grid_attention_forward.1} parent=1 // pred_fallthru
      _
    // Predicated region
    $region78: #{grid_attention_forward.1} parent=1 // pred_check
      _
    $region79: #{grid_attention_forward.1} parent=1 // pred_check_branch
      %2334 = sbr.rel (0) target = $region81
    $region80: #{grid_attention_forward.1} parent=1 // pred_region
      _
    $region81: #{grid_attention_forward.1} parent=1 // pred_fallthru
      _
    %2335 = vsyncpa [#allocation4], 1
    %2336 = vsyncpa [#allocation6], 1
    %2337 = vsyncpa [#allocation9], 1

</llo_original>
